<compile_context>
chip_gen: v7x
topology: tpu7x:2x2x1
jax: 0.10.0
libtpu: 0.0.40
codegen_flags: <defaults>
</compile_context>

<pallas_src>
import functools
import math

import jax
import jax.numpy as jnp
from jax.experimental import pallas as pl
from jax.experimental.pallas import tpu as pltpu


def _layer_norm(x, gamma, beta, eps=1e-5):
    mu = jnp.mean(x, axis=-1, keepdims=True)
    var = jnp.mean((x - mu) ** 2, axis=-1, keepdims=True)
    return (x - mu) * jax.lax.rsqrt(var + eps) * gamma + beta


def _gelu_tanh(x):
    # TODO(synk): PyTorch activation='gelu' uses the exact erf formulation;
    # the tanh approximation is used here (max abs deviation ~1e-3).
    c = 0.7978845608028654  # sqrt(2/pi)
    return 0.5 * x * (1.0 + jnp.tanh(c * (x + 0.044715 * x * x * x)))


def _softmax_last(x):
    m = jnp.max(x, axis=-1, keepdims=True)
    e = jnp.exp(x - m)
    return e / jnp.sum(e, axis=-1, keepdims=True)


def _encoder_kernel(x_ref, key_bias_ref, emb_w_ref, emb_b_ref, pos_ref,
                    ln1_g_ref, ln1_b_ref, qkv_w_ref, qkv_b_ref,
                    out_w_ref, out_b_ref, ln2_g_ref, ln2_b_ref,
                    ff1_w_ref, ff1_b_ref, ff2_w_ref, ff2_b_ref,
                    o_ref, *, n_layers, n_heads):
    x = x_ref[0].astype(jnp.float32)                  # [N, F] one batch element
    key_bias = key_bias_ref[0].astype(jnp.float32)    # [1, N] additive key-pad bias
    d_model = emb_w_ref.shape[1]
    head_dim = d_model // n_heads
    scale = 1.0 / math.sqrt(head_dim)

    # Node embedding + positional encoding.
    h = jnp.dot(x, emb_w_ref[...], preferred_element_type=jnp.float32)
    h = h + emb_b_ref[...] + pos_ref[...]             # [N, D]

    # Valid-token column mask (padding token == all-zero feature row).
    valid = (jnp.sum(x, axis=-1, keepdims=True) != 0.0).astype(jnp.float32)  # [N, 1]

    for l in range(n_layers):
        # ---------------- self-attention block (pre-norm) ----------------
        y = _layer_norm(h, ln1_g_ref[l], ln1_b_ref[l])
        qkv = jnp.dot(y, qkv_w_ref[l], preferred_element_type=jnp.float32)
        qkv = qkv + qkv_b_ref[l]                      # [N, 3D] fused q/k/v matmul
        q = qkv[:, :d_model]
        k = qkv[:, d_model:2 * d_model]
        v = qkv[:, 2 * d_model:]
        out_w = out_w_ref[l]                          # [D, D]

        attn = jnp.zeros(h.shape, jnp.float32)
        for hh in range(n_heads):
            s = hh * head_dim
            q_h = q[:, s:s + head_dim] * scale
            k_h = k[:, s:s + head_dim]
            v_h = v[:, s:s + head_dim]
            scores = jnp.einsum('nd,md->nm', q_h, k_h,
                                preferred_element_type=jnp.float32)
            p = _softmax_last(scores + key_bias)      # key-padding mask
            ctx = jnp.dot(p, v_h, preferred_element_type=jnp.float32)
            # out_proj folded per head: concat(heads) @ W == sum_h ctx_h @ W[rows_h]
            attn = attn + jnp.dot(ctx, out_w[s:s + head_dim, :],
                                  preferred_element_type=jnp.float32)
        h = h + attn + out_b_ref[l]

        # ---------------- feed-forward block (pre-norm) -------------------
        y = _layer_norm(h, ln2_g_ref[l], ln2_b_ref[l])
        z = jnp.dot(y, ff1_w_ref[l], preferred_element_type=jnp.float32)
        z = _gelu_tanh(z + ff1_b_ref[l])
        h = (h + jnp.dot(z, ff2_w_ref[l], preferred_element_type=jnp.float32)
               + ff2_b_ref[l])

    # Masked mean pooling over valid (non-padded) tokens.
    summed = jnp.sum(h * valid, axis=0, keepdims=True)                # [1, D]
    count = jnp.maximum(jnp.sum(valid, axis=0, keepdims=True), 1e-9)  # [1, 1]
    o_ref[0] = (summed / count).astype(o_ref.dtype)


def transformer_encoder(tree_features, params, *, n_heads, n_layers):
    """Pallas forward of TransformerEncoder (eval semantics, dropout = identity)."""
    B, N, F = tree_features.shape
    D = params["emb_w"].shape[1]
    L = n_layers

    # Additive key-padding bias per batch row: [B, 1, N] (cheap host-graph op).
    pad = jnp.sum(tree_features, axis=-1, keepdims=True) == 0.0       # [B, N, 1]
    key_bias = jnp.where(pad, -1e30, 0.0).transpose(0, 2, 1)          # [B, 1, N]
    pos = params["pos"][0, :N, :]                                     # [N, D]

    inputs = (tree_features, key_bias, params["emb_w"], params["emb_b"], pos,
              params["ln1_g"], params["ln1_b"], params["qkv_w"], params["qkv_b"],
              params["out_w"], params["out_b"], params["ln2_g"], params["ln2_b"],
              params["ff1_w"], params["ff1_b"], params["ff2_w"], params["ff2_b"])

    batch3 = lambda b: (b, 0, 0)
    full2 = lambda b: (0, 0)
    full3 = lambda b: (0, 0, 0)
    in_specs = [
        pl.BlockSpec((1, N, F), batch3),           # tree_features (per batch elem)
        pl.BlockSpec((1, 1, N), batch3),           # key-padding bias
        pl.BlockSpec((F, D), full2),               # embedding weight
        pl.BlockSpec((1, D), full2),               # embedding bias
        pl.BlockSpec((N, D), full2),               # positional encoding slice
        pl.BlockSpec((L, 1, D), full3),            # ln1 gamma
        pl.BlockSpec((L, 1, D), full3),            # ln1 beta
        pl.BlockSpec((L, D, 3 * D), full3),        # fused qkv weight
        pl.BlockSpec((L, 1, 3 * D), full3),        # fused qkv bias
        pl.BlockSpec((L, D, D), full3),            # attn out_proj weight
        pl.BlockSpec((L, 1, D), full3),            # attn out_proj bias
        pl.BlockSpec((L, 1, D), full3),            # ln2 gamma
        pl.BlockSpec((L, 1, D), full3),            # ln2 beta
        pl.BlockSpec((L, D, 4 * D), full3),        # ffn linear1 weight
        pl.BlockSpec((L, 1, 4 * D), full3),        # ffn linear1 bias
        pl.BlockSpec((L, 4 * D, D), full3),        # ffn linear2 weight
        pl.BlockSpec((L, 1, D), full3),            # ffn linear2 bias
    ]

    kernel = functools.partial(_encoder_kernel, n_layers=n_layers, n_heads=n_heads)
    out = pl.pallas_call(
        kernel,
        grid=(B,),
        in_specs=in_specs,
        out_specs=pl.BlockSpec((1, 1, D), batch3),
        out_shape=jax.ShapeDtypeStruct((B, 1, D), jnp.float32),
        compiler_params=pltpu.CompilerParams(dimension_semantics=("parallel",)),
    )(*inputs)
    return out.reshape(B, D)


def init_params(key, node_feature_dim, hidden_dim, n_heads, n_layers,
                max_nodes=100, dtype=jnp.float32):
    """Deterministic synthetic parameters. Linear weights stored [in, out]."""
    D, F, L = hidden_dim, node_feature_dim, n_layers
    ks = iter(jax.random.split(key, 16))

    def rnd(shape, scale=0.1):
        return jax.random.normal(next(ks), shape, dtype) * scale

    return {
        "emb_w": rnd((F, D)),
        "emb_b": rnd((1, D)),
        "pos": rnd((1, max_nodes, D), 0.02),
        "ln1_g": 1.0 + rnd((L, 1, D)),
        "ln1_b": rnd((L, 1, D)),
        "qkv_w": rnd((L, D, 3 * D)),
        "qkv_b": rnd((L, 1, 3 * D)),
        "out_w": rnd((L, D, D)),
        "out_b": rnd((L, 1, D)),
        "ln2_g": 1.0 + rnd((L, 1, D)),
        "ln2_b": rnd((L, 1, D)),
        "ff1_w": rnd((L, D, 4 * D)),
        "ff1_b": rnd((L, 1, 4 * D)),
        "ff2_w": rnd((L, 4 * D, D)),
        "ff2_b": rnd((L, 1, D)),
    }


def _reference(tree_features, params, *, n_heads, n_layers):
    """Pure-JAX reference mirroring the PyTorch forward (eval mode)."""
    x = tree_features.astype(jnp.float32)
    B, N, _ = x.shape
    D = params["emb_w"].shape[1]
    Hd = D // n_heads

    h = x @ params["emb_w"] + params["emb_b"] + params["pos"][:, :N, :]
    pad = jnp.sum(x, axis=-1) == 0.0                                  # [B, N]
    key_bias = jnp.where(pad, -1e30, 0.0)[:, None, None, :]           # [B,1,1,N]

    for l in range(n_layers):
        y = _layer_norm(h, params["ln1_g"][l], params["ln1_b"][l])
        qkv = y @ params["qkv_w"][l] + params["qkv_b"][l]
        q, k, v = jnp.split(qkv, 3, axis=-1)

        def heads(t):
            return t.reshape(B, N, n_heads, Hd).transpose(0, 2, 1, 3)

        qh, kh, vh = heads(q), heads(k), heads(v)
        scores = jnp.einsum('bhnd,bhmd->bhnm', qh, kh) / math.sqrt(Hd) + key_bias
        p = jax.nn.softmax(scores, axis=-1)
        ctx = jnp.einsum('bhnm,bhmd->bhnd', p, vh)
        ctx = ctx.transpose(0, 2, 1, 3).reshape(B, N, D)
        h = h + ctx @ params["out_w"][l] + params["out_b"][l]

        y = _layer_norm(h, params["ln2_g"][l], params["ln2_b"][l])
        z = _gelu_tanh(y @ params["ff1_w"][l] + params["ff1_b"][l])
        h = h + z @ params["ff2_w"][l] + params["ff2_b"][l]

    m = (~pad)[..., None].astype(jnp.float32)
    summed = (h * m).sum(axis=1)
    cnt = jnp.maximum(m.sum(axis=1), 1e-9)
    return summed / cnt


if __name__ == "__main__":
    B, MAX_NODES, FEAT, HIDDEN, HEADS, LAYERS = 2, 8, 16, 32, 4, 2

    key = jax.random.PRNGKey(0)
    k_params, k_x = jax.random.split(key)
    params = init_params(k_params, FEAT, HIDDEN, HEADS, LAYERS)

    x = jax.random.normal(k_x, (B, MAX_NODES, FEAT), jnp.float32)
    # Mark the tail of each sequence as padding (all-zero feature rows).
    valid_lens = jnp.array([5, 7])
    pad = jnp.arange(MAX_NODES)[None, :] >= valid_lens[:, None]       # [B, N]
    x = jnp.where(pad[:, :, None], 0.0, x)

    out = transformer_encoder(x, params, n_heads=HEADS, n_layers=LAYERS)
    jax.block_until_ready(out)
    assert out.shape == (B, HIDDEN)

    ref = _reference(x, params, n_heads=HEADS, n_layers=LAYERS)
    max_err = float(jnp.max(jnp.abs(out - ref)))
    assert jnp.allclose(out, ref, atol=2e-4, rtol=2e-4), f"max_err={max_err}"

    print("KERNEL_OK")
</pallas_src>

<mosaic_0001>
module attributes {stable_mosaic.version = 11 : i64} {
  func.func @_encoder_kernel(%arg0: i32, %arg1: memref<1x8x16xf32, #tpu.memory_space<vmem>>, %arg2: memref<1x1x8xf32, #tpu.memory_space<vmem>>, %arg3: memref<16x32xf32, #tpu.memory_space<vmem>>, %arg4: memref<1x32xf32, #tpu.memory_space<vmem>>, %arg5: memref<8x32xf32, #tpu.memory_space<vmem>>, %arg6: memref<2x1x32xf32, #tpu.memory_space<vmem>>, %arg7: memref<2x1x32xf32, #tpu.memory_space<vmem>>, %arg8: memref<2x32x96xf32, #tpu.memory_space<vmem>>, %arg9: memref<2x1x96xf32, #tpu.memory_space<vmem>>, %arg10: memref<2x32x32xf32, #tpu.memory_space<vmem>>, %arg11: memref<2x1x32xf32, #tpu.memory_space<vmem>>, %arg12: memref<2x1x32xf32, #tpu.memory_space<vmem>>, %arg13: memref<2x1x32xf32, #tpu.memory_space<vmem>>, %arg14: memref<2x32x128xf32, #tpu.memory_space<vmem>>, %arg15: memref<2x1x128xf32, #tpu.memory_space<vmem>>, %arg16: memref<2x128x32xf32, #tpu.memory_space<vmem>>, %arg17: memref<2x1x32xf32, #tpu.memory_space<vmem>>, %arg18: memref<1x1x32xf32, #tpu.memory_space<vmem>>) attributes {dimension_semantics = [#tpu.dimension_semantics<parallel>], iteration_bounds = array<i64: 2>, scalar_prefetch = 0 : i64, scratch_operands = 0 : i64, tpu.core_type = #tpu.core_type<tc>, window_params = [{transform_indices = @transform_0, window_bounds = array<i64: 1, 8, 16>}, {transform_indices = @transform_1, window_bounds = array<i64: 1, 1, 8>}, {pipeline_mode = #tpu.pipeline_mode<synchronous>, transform_indices = @transform_2, window_bounds = array<i64: 16, 32>}, {pipeline_mode = #tpu.pipeline_mode<synchronous>, transform_indices = @transform_3, window_bounds = array<i64: 1, 32>}, {pipeline_mode = #tpu.pipeline_mode<synchronous>, transform_indices = @transform_4, window_bounds = array<i64: 8, 32>}, {pipeline_mode = #tpu.pipeline_mode<synchronous>, transform_indices = @transform_5, window_bounds = array<i64: 2, 1, 32>}, {pipeline_mode = #tpu.pipeline_mode<synchronous>, transform_indices = @transform_6, window_bounds = array<i64: 2, 1, 32>}, {pipeline_mode = #tpu.pipeline_mode<synchronous>, transform_indices = @transform_7, window_bounds = array<i64: 2, 32, 96>}, {pipeline_mode = #tpu.pipeline_mode<synchronous>, transform_indices = @transform_8, window_bounds = array<i64: 2, 1, 96>}, {pipeline_mode = #tpu.pipeline_mode<synchronous>, transform_indices = @transform_9, window_bounds = array<i64: 2, 32, 32>}, {pipeline_mode = #tpu.pipeline_mode<synchronous>, transform_indices = @transform_10, window_bounds = array<i64: 2, 1, 32>}, {pipeline_mode = #tpu.pipeline_mode<synchronous>, transform_indices = @transform_11, window_bounds = array<i64: 2, 1, 32>}, {pipeline_mode = #tpu.pipeline_mode<synchronous>, transform_indices = @transform_12, window_bounds = array<i64: 2, 1, 32>}, {pipeline_mode = #tpu.pipeline_mode<synchronous>, transform_indices = @transform_13, window_bounds = array<i64: 2, 32, 128>}, {pipeline_mode = #tpu.pipeline_mode<synchronous>, transform_indices = @transform_14, window_bounds = array<i64: 2, 1, 128>}, {pipeline_mode = #tpu.pipeline_mode<synchronous>, transform_indices = @transform_15, window_bounds = array<i64: 2, 128, 32>}, {pipeline_mode = #tpu.pipeline_mode<synchronous>, transform_indices = @transform_16, window_bounds = array<i64: 2, 1, 32>}, {transform_indices = @transform_17, window_bounds = array<i64: 1, 1, 32>}]} {
    %c0 = arith.constant 0 : index
    %c0_0 = arith.constant 0 : index
    %c0_1 = arith.constant 0 : index
    %0 = vector.load %arg1[%c0, %c0_0, %c0_1] : memref<1x8x16xf32, #tpu.memory_space<vmem>>, vector<1x8x16xf32>
    %1 = vector.shape_cast %0 : vector<1x8x16xf32> to vector<8x16xf32>
    %c0_2 = arith.constant 0 : index
    %c0_3 = arith.constant 0 : index
    %c0_4 = arith.constant 0 : index
    %2 = vector.load %arg2[%c0_2, %c0_3, %c0_4] : memref<1x1x8xf32, #tpu.memory_space<vmem>>, vector<1x1x8xf32>
    %3 = vector.shape_cast %2 : vector<1x1x8xf32> to vector<1x8xf32>
    %c0_5 = arith.constant 0 : index
    %c0_6 = arith.constant 0 : index
    %4 = vector.load %arg3[%c0_5, %c0_6] : memref<16x32xf32, #tpu.memory_space<vmem>>, vector<16x32xf32>
    %cst = arith.constant dense<0.000000e+00> : vector<8x32xf32>
    %5 = tpu.matmul %1, %4, %cst {dimension_numbers = #tpu.dot_dimension_numbers<[1], [0], [0], [1], [0, 0, 1, 1], [], []>} : vector<8x16xf32>, vector<16x32xf32>, vector<8x32xf32> -> vector<8x32xf32>
    %c0_7 = arith.constant 0 : index
    %c0_8 = arith.constant 0 : index
    %6 = vector.load %arg4[%c0_7, %c0_8] : memref<1x32xf32, #tpu.memory_space<vmem>>, vector<1x32xf32>
    %7 = vector.broadcast %6 : vector<1x32xf32> to vector<8x32xf32>
    %8 = arith.addf %5, %7 : vector<8x32xf32>
    %c0_9 = arith.constant 0 : index
    %c0_10 = arith.constant 0 : index
    %9 = vector.load %arg5[%c0_9, %c0_10] : memref<8x32xf32, #tpu.memory_space<vmem>>, vector<8x32xf32>
    %10 = arith.addf %8, %9 : vector<8x32xf32>
    %cst_11 = arith.constant dense<0.000000e+00> : vector<8xf32>
    %11 = vector.multi_reduction <add>, %1, %cst_11 [1] : vector<8x16xf32> to vector<8xf32>
    %12 = vector.shape_cast %11 : vector<8xf32> to vector<8x1xf32>
    %cst_12 = arith.constant 0.000000e+00 : f32
    %13 = vector.broadcast %cst_12 : f32 to vector<8x1xf32>
    %14 = arith.cmpf one, %12, %13 : vector<8x1xf32>
    %15 = arith.extui %14 : vector<8x1xi1> to vector<8x1xi32>
    %16 = arith.sitofp %15 : vector<8x1xi32> to vector<8x1xf32>
    %c0_13 = arith.constant 0 : index
    %c0_14 = arith.constant 0 : index
    %c0_15 = arith.constant 0 : index
    %17 = vector.load %arg6[%c0_13, %c0_14, %c0_15] : memref<2x1x32xf32, #tpu.memory_space<vmem>>, vector<1x1x32xf32>
    %18 = vector.shape_cast %17 : vector<1x1x32xf32> to vector<1x32xf32>
    %c0_16 = arith.constant 0 : index
    %c0_17 = arith.constant 0 : index
    %c0_18 = arith.constant 0 : index
    %19 = vector.load %arg7[%c0_16, %c0_17, %c0_18] : memref<2x1x32xf32, #tpu.memory_space<vmem>>, vector<1x1x32xf32>
    %20 = vector.shape_cast %19 : vector<1x1x32xf32> to vector<1x32xf32>
    %cst_19 = arith.constant dense<0.000000e+00> : vector<8xf32>
    %21 = vector.multi_reduction <add>, %10, %cst_19 [1] : vector<8x32xf32> to vector<8xf32>
    %22 = vector.shape_cast %21 : vector<8xf32> to vector<8x1xf32>
    %cst_20 = arith.constant 3.200000e+01 : f32
    %23 = vector.broadcast %cst_20 : f32 to vector<8x1xf32>
    %24 = arith.divf %22, %23 : vector<8x1xf32>
    %25 = vector.broadcast %24 : vector<8x1xf32> to vector<8x32xf32>
    %26 = arith.subf %10, %25 : vector<8x32xf32>
    %27 = arith.mulf %26, %26 : vector<8x32xf32>
    %cst_21 = arith.constant dense<0.000000e+00> : vector<8xf32>
    %28 = vector.multi_reduction <add>, %27, %cst_21 [1] : vector<8x32xf32> to vector<8xf32>
    %29 = vector.shape_cast %28 : vector<8xf32> to vector<8x1xf32>
    %cst_22 = arith.constant 3.200000e+01 : f32
    %30 = vector.broadcast %cst_22 : f32 to vector<8x1xf32>
    %31 = arith.divf %29, %30 : vector<8x1xf32>
    %32 = vector.broadcast %24 : vector<8x1xf32> to vector<8x32xf32>
    %33 = arith.subf %10, %32 : vector<8x32xf32>
    %cst_23 = arith.constant 9.99999974E-6 : f32
    %34 = vector.broadcast %cst_23 : f32 to vector<8x1xf32>
    %35 = arith.addf %31, %34 : vector<8x1xf32>
    %36 = math.rsqrt %35 : vector<8x1xf32>
    %37 = vector.broadcast %36 : vector<8x1xf32> to vector<8x32xf32>
    %38 = arith.mulf %33, %37 : vector<8x32xf32>
    %39 = vector.broadcast %18 : vector<1x32xf32> to vector<8x32xf32>
    %40 = arith.mulf %38, %39 : vector<8x32xf32>
    %41 = vector.broadcast %20 : vector<1x32xf32> to vector<8x32xf32>
    %42 = arith.addf %40, %41 : vector<8x32xf32>
    %c0_24 = arith.constant 0 : index
    %c0_25 = arith.constant 0 : index
    %c0_26 = arith.constant 0 : index
    %43 = vector.load %arg8[%c0_24, %c0_25, %c0_26] : memref<2x32x96xf32, #tpu.memory_space<vmem>>, vector<1x32x96xf32>
    %44 = vector.shape_cast %43 : vector<1x32x96xf32> to vector<32x96xf32>
    %cst_27 = arith.constant dense<0.000000e+00> : vector<8x96xf32>
    %45 = tpu.matmul %42, %44, %cst_27 {dimension_numbers = #tpu.dot_dimension_numbers<[1], [0], [0], [1], [0, 0, 1, 1], [], []>} : vector<8x32xf32>, vector<32x96xf32>, vector<8x96xf32> -> vector<8x96xf32>
    %c0_28 = arith.constant 0 : index
    %c0_29 = arith.constant 0 : index
    %c0_30 = arith.constant 0 : index
    %46 = vector.load %arg9[%c0_28, %c0_29, %c0_30] : memref<2x1x96xf32, #tpu.memory_space<vmem>>, vector<1x1x96xf32>
    %47 = vector.shape_cast %46 : vector<1x1x96xf32> to vector<1x96xf32>
    %48 = vector.broadcast %47 : vector<1x96xf32> to vector<8x96xf32>
    %49 = arith.addf %45, %48 : vector<8x96xf32>
    %50 = vector.extract_strided_slice %49 {offsets = [0, 0], sizes = [8, 32], strides = [1, 1]} : vector<8x96xf32> to vector<8x32xf32>
    %51 = vector.extract_strided_slice %49 {offsets = [0, 32], sizes = [8, 32], strides = [1, 1]} : vector<8x96xf32> to vector<8x32xf32>
    %52 = vector.extract_strided_slice %49 {offsets = [0, 64], sizes = [8, 32], strides = [1, 1]} : vector<8x96xf32> to vector<8x32xf32>
    %c0_31 = arith.constant 0 : index
    %c0_32 = arith.constant 0 : index
    %c0_33 = arith.constant 0 : index
    %53 = vector.load %arg10[%c0_31, %c0_32, %c0_33] : memref<2x32x32xf32, #tpu.memory_space<vmem>>, vector<1x32x32xf32>
    %54 = vector.shape_cast %53 : vector<1x32x32xf32> to vector<32x32xf32>
    %cst_34 = arith.constant 0.000000e+00 : f32
    %55 = vector.broadcast %cst_34 : f32 to vector<8x32xf32>
    %56 = vector.extract_strided_slice %50 {offsets = [0, 0], sizes = [8, 8], strides = [1, 1]} : vector<8x32xf32> to vector<8x8xf32>
    %cst_35 = arith.constant 0.353553385 : f32
    %57 = vector.broadcast %cst_35 : f32 to vector<8x8xf32>
    %58 = arith.mulf %56, %57 : vector<8x8xf32>
    %59 = vector.extract_strided_slice %51 {offsets = [0, 0], sizes = [8, 8], strides = [1, 1]} : vector<8x32xf32> to vector<8x8xf32>
    %60 = vector.extract_strided_slice %52 {offsets = [0, 0], sizes = [8, 8], strides = [1, 1]} : vector<8x32xf32> to vector<8x8xf32>
    "tpu.trace_start"() <{level = 10 : i32, message = "nd,md->nm"}> : () -> ()
    %cst_36 = arith.constant dense<0.000000e+00> : vector<8x8xf32>
    %61 = tpu.matmul %58, %59, %cst_36 {dimension_numbers = #tpu.dot_dimension_numbers<[1], [1], [0], [0], [0, 0, 1, 0], [], []>} : vector<8x8xf32>, vector<8x8xf32>, vector<8x8xf32> -> vector<8x8xf32>
    "tpu.trace_stop"() : () -> ()
    %62 = vector.broadcast %3 : vector<1x8xf32> to vector<8x8xf32>
    %63 = arith.addf %61, %62 : vector<8x8xf32>
    %cst_37 = arith.constant dense<0xFF800000> : vector<8xf32>
    %64 = vector.multi_reduction <maximumf>, %63, %cst_37 [1] : vector<8x8xf32> to vector<8xf32>
    %65 = vector.shape_cast %64 : vector<8xf32> to vector<8x1xf32>
    %66 = vector.broadcast %65 : vector<8x1xf32> to vector<8x8xf32>
    %67 = arith.subf %63, %66 : vector<8x8xf32>
    %68 = math.exp %67 : vector<8x8xf32>
    %cst_38 = arith.constant dense<0.000000e+00> : vector<8xf32>
    %69 = vector.multi_reduction <add>, %68, %cst_38 [1] : vector<8x8xf32> to vector<8xf32>
    %70 = vector.shape_cast %69 : vector<8xf32> to vector<8x1xf32>
    %71 = vector.broadcast %70 : vector<8x1xf32> to vector<8x8xf32>
    %72 = arith.divf %68, %71 : vector<8x8xf32>
    %cst_39 = arith.constant dense<0.000000e+00> : vector<8x8xf32>
    %73 = tpu.matmul %72, %60, %cst_39 {dimension_numbers = #tpu.dot_dimension_numbers<[1], [0], [0], [1], [0, 0, 1, 1], [], []>} : vector<8x8xf32>, vector<8x8xf32>, vector<8x8xf32> -> vector<8x8xf32>
    %74 = vector.extract_strided_slice %54 {offsets = [0, 0], sizes = [8, 32], strides = [1, 1]} : vector<32x32xf32> to vector<8x32xf32>
    %cst_40 = arith.constant dense<0.000000e+00> : vector<8x32xf32>
    %75 = tpu.matmul %73, %74, %cst_40 {dimension_numbers = #tpu.dot_dimension_numbers<[1], [0], [0], [1], [0, 0, 1, 1], [], []>} : vector<8x8xf32>, vector<8x32xf32>, vector<8x32xf32> -> vector<8x32xf32>
    %76 = arith.addf %55, %75 : vector<8x32xf32>
    %77 = vector.extract_strided_slice %50 {offsets = [0, 8], sizes = [8, 8], strides = [1, 1]} : vector<8x32xf32> to vector<8x8xf32>
    %cst_41 = arith.constant 0.353553385 : f32
    %78 = vector.broadcast %cst_41 : f32 to vector<8x8xf32>
    %79 = arith.mulf %77, %78 : vector<8x8xf32>
    %80 = vector.extract_strided_slice %51 {offsets = [0, 8], sizes = [8, 8], strides = [1, 1]} : vector<8x32xf32> to vector<8x8xf32>
    %81 = vector.extract_strided_slice %52 {offsets = [0, 8], sizes = [8, 8], strides = [1, 1]} : vector<8x32xf32> to vector<8x8xf32>
    "tpu.trace_start"() <{level = 10 : i32, message = "nd,md->nm"}> : () -> ()
    %cst_42 = arith.constant dense<0.000000e+00> : vector<8x8xf32>
    %82 = tpu.matmul %79, %80, %cst_42 {dimension_numbers = #tpu.dot_dimension_numbers<[1], [1], [0], [0], [0, 0, 1, 0], [], []>} : vector<8x8xf32>, vector<8x8xf32>, vector<8x8xf32> -> vector<8x8xf32>
    "tpu.trace_stop"() : () -> ()
    %83 = vector.broadcast %3 : vector<1x8xf32> to vector<8x8xf32>
    %84 = arith.addf %82, %83 : vector<8x8xf32>
    %cst_43 = arith.constant dense<0xFF800000> : vector<8xf32>
    %85 = vector.multi_reduction <maximumf>, %84, %cst_43 [1] : vector<8x8xf32> to vector<8xf32>
    %86 = vector.shape_cast %85 : vector<8xf32> to vector<8x1xf32>
    %87 = vector.broadcast %86 : vector<8x1xf32> to vector<8x8xf32>
    %88 = arith.subf %84, %87 : vector<8x8xf32>
    %89 = math.exp %88 : vector<8x8xf32>
    %cst_44 = arith.constant dense<0.000000e+00> : vector<8xf32>
    %90 = vector.multi_reduction <add>, %89, %cst_44 [1] : vector<8x8xf32> to vector<8xf32>
    %91 = vector.shape_cast %90 : vector<8xf32> to vector<8x1xf32>
    %92 = vector.broadcast %91 : vector<8x1xf32> to vector<8x8xf32>
    %93 = arith.divf %89, %92 : vector<8x8xf32>
    %cst_45 = arith.constant dense<0.000000e+00> : vector<8x8xf32>
    %94 = tpu.matmul %93, %81, %cst_45 {dimension_numbers = #tpu.dot_dimension_numbers<[1], [0], [0], [1], [0, 0, 1, 1], [], []>} : vector<8x8xf32>, vector<8x8xf32>, vector<8x8xf32> -> vector<8x8xf32>
    %95 = vector.extract_strided_slice %54 {offsets = [8, 0], sizes = [8, 32], strides = [1, 1]} : vector<32x32xf32> to vector<8x32xf32>
    %cst_46 = arith.constant dense<0.000000e+00> : vector<8x32xf32>
    %96 = tpu.matmul %94, %95, %cst_46 {dimension_numbers = #tpu.dot_dimension_numbers<[1], [0], [0], [1], [0, 0, 1, 1], [], []>} : vector<8x8xf32>, vector<8x32xf32>, vector<8x32xf32> -> vector<8x32xf32>
    %97 = arith.addf %76, %96 : vector<8x32xf32>
    %98 = vector.extract_strided_slice %50 {offsets = [0, 16], sizes = [8, 8], strides = [1, 1]} : vector<8x32xf32> to vector<8x8xf32>
    %cst_47 = arith.constant 0.353553385 : f32
    %99 = vector.broadcast %cst_47 : f32 to vector<8x8xf32>
    %100 = arith.mulf %98, %99 : vector<8x8xf32>
    %101 = vector.extract_strided_slice %51 {offsets = [0, 16], sizes = [8, 8], strides = [1, 1]} : vector<8x32xf32> to vector<8x8xf32>
    %102 = vector.extract_strided_slice %52 {offsets = [0, 16], sizes = [8, 8], strides = [1, 1]} : vector<8x32xf32> to vector<8x8xf32>
    "tpu.trace_start"() <{level = 10 : i32, message = "nd,md->nm"}> : () -> ()
    %cst_48 = arith.constant dense<0.000000e+00> : vector<8x8xf32>
    %103 = tpu.matmul %100, %101, %cst_48 {dimension_numbers = #tpu.dot_dimension_numbers<[1], [1], [0], [0], [0, 0, 1, 0], [], []>} : vector<8x8xf32>, vector<8x8xf32>, vector<8x8xf32> -> vector<8x8xf32>
    "tpu.trace_stop"() : () -> ()
    %104 = vector.broadcast %3 : vector<1x8xf32> to vector<8x8xf32>
    %105 = arith.addf %103, %104 : vector<8x8xf32>
    %cst_49 = arith.constant dense<0xFF800000> : vector<8xf32>
    %106 = vector.multi_reduction <maximumf>, %105, %cst_49 [1] : vector<8x8xf32> to vector<8xf32>
    %107 = vector.shape_cast %106 : vector<8xf32> to vector<8x1xf32>
    %108 = vector.broadcast %107 : vector<8x1xf32> to vector<8x8xf32>
    %109 = arith.subf %105, %108 : vector<8x8xf32>
    %110 = math.exp %109 : vector<8x8xf32>
    %cst_50 = arith.constant dense<0.000000e+00> : vector<8xf32>
    %111 = vector.multi_reduction <add>, %110, %cst_50 [1] : vector<8x8xf32> to vector<8xf32>
    %112 = vector.shape_cast %111 : vector<8xf32> to vector<8x1xf32>
    %113 = vector.broadcast %112 : vector<8x1xf32> to vector<8x8xf32>
    %114 = arith.divf %110, %113 : vector<8x8xf32>
    %cst_51 = arith.constant dense<0.000000e+00> : vector<8x8xf32>
    %115 = tpu.matmul %114, %102, %cst_51 {dimension_numbers = #tpu.dot_dimension_numbers<[1], [0], [0], [1], [0, 0, 1, 1], [], []>} : vector<8x8xf32>, vector<8x8xf32>, vector<8x8xf32> -> vector<8x8xf32>
    %116 = vector.extract_strided_slice %54 {offsets = [16, 0], sizes = [8, 32], strides = [1, 1]} : vector<32x32xf32> to vector<8x32xf32>
    %cst_52 = arith.constant dense<0.000000e+00> : vector<8x32xf32>
    %117 = tpu.matmul %115, %116, %cst_52 {dimension_numbers = #tpu.dot_dimension_numbers<[1], [0], [0], [1], [0, 0, 1, 1], [], []>} : vector<8x8xf32>, vector<8x32xf32>, vector<8x32xf32> -> vector<8x32xf32>
    %118 = arith.addf %97, %117 : vector<8x32xf32>
    %119 = vector.extract_strided_slice %50 {offsets = [0, 24], sizes = [8, 8], strides = [1, 1]} : vector<8x32xf32> to vector<8x8xf32>
    %cst_53 = arith.constant 0.353553385 : f32
    %120 = vector.broadcast %cst_53 : f32 to vector<8x8xf32>
    %121 = arith.mulf %119, %120 : vector<8x8xf32>
    %122 = vector.extract_strided_slice %51 {offsets = [0, 24], sizes = [8, 8], strides = [1, 1]} : vector<8x32xf32> to vector<8x8xf32>
    %123 = vector.extract_strided_slice %52 {offsets = [0, 24], sizes = [8, 8], strides = [1, 1]} : vector<8x32xf32> to vector<8x8xf32>
    "tpu.trace_start"() <{level = 10 : i32, message = "nd,md->nm"}> : () -> ()
    %cst_54 = arith.constant dense<0.000000e+00> : vector<8x8xf32>
    %124 = tpu.matmul %121, %122, %cst_54 {dimension_numbers = #tpu.dot_dimension_numbers<[1], [1], [0], [0], [0, 0, 1, 0], [], []>} : vector<8x8xf32>, vector<8x8xf32>, vector<8x8xf32> -> vector<8x8xf32>
    "tpu.trace_stop"() : () -> ()
    %125 = vector.broadcast %3 : vector<1x8xf32> to vector<8x8xf32>
    %126 = arith.addf %124, %125 : vector<8x8xf32>
    %cst_55 = arith.constant dense<0xFF800000> : vector<8xf32>
    %127 = vector.multi_reduction <maximumf>, %126, %cst_55 [1] : vector<8x8xf32> to vector<8xf32>
    %128 = vector.shape_cast %127 : vector<8xf32> to vector<8x1xf32>
    %129 = vector.broadcast %128 : vector<8x1xf32> to vector<8x8xf32>
    %130 = arith.subf %126, %129 : vector<8x8xf32>
    %131 = math.exp %130 : vector<8x8xf32>
    %cst_56 = arith.constant dense<0.000000e+00> : vector<8xf32>
    %132 = vector.multi_reduction <add>, %131, %cst_56 [1] : vector<8x8xf32> to vector<8xf32>
    %133 = vector.shape_cast %132 : vector<8xf32> to vector<8x1xf32>
    %134 = vector.broadcast %133 : vector<8x1xf32> to vector<8x8xf32>
    %135 = arith.divf %131, %134 : vector<8x8xf32>
    %cst_57 = arith.constant dense<0.000000e+00> : vector<8x8xf32>
    %136 = tpu.matmul %135, %123, %cst_57 {dimension_numbers = #tpu.dot_dimension_numbers<[1], [0], [0], [1], [0, 0, 1, 1], [], []>} : vector<8x8xf32>, vector<8x8xf32>, vector<8x8xf32> -> vector<8x8xf32>
    %137 = vector.extract_strided_slice %54 {offsets = [24, 0], sizes = [8, 32], strides = [1, 1]} : vector<32x32xf32> to vector<8x32xf32>
    %cst_58 = arith.constant dense<0.000000e+00> : vector<8x32xf32>
    %138 = tpu.matmul %136, %137, %cst_58 {dimension_numbers = #tpu.dot_dimension_numbers<[1], [0], [0], [1], [0, 0, 1, 1], [], []>} : vector<8x8xf32>, vector<8x32xf32>, vector<8x32xf32> -> vector<8x32xf32>
    %139 = arith.addf %118, %138 : vector<8x32xf32>
    %140 = arith.addf %10, %139 : vector<8x32xf32>
    %c0_59 = arith.constant 0 : index
    %c0_60 = arith.constant 0 : index
    %c0_61 = arith.constant 0 : index
    %141 = vector.load %arg11[%c0_59, %c0_60, %c0_61] : memref<2x1x32xf32, #tpu.memory_space<vmem>>, vector<1x1x32xf32>
    %142 = vector.shape_cast %141 : vector<1x1x32xf32> to vector<1x32xf32>
    %143 = vector.broadcast %142 : vector<1x32xf32> to vector<8x32xf32>
    %144 = arith.addf %140, %143 : vector<8x32xf32>
    %c0_62 = arith.constant 0 : index
    %c0_63 = arith.constant 0 : index
    %c0_64 = arith.constant 0 : index
    %145 = vector.load %arg12[%c0_62, %c0_63, %c0_64] : memref<2x1x32xf32, #tpu.memory_space<vmem>>, vector<1x1x32xf32>
    %146 = vector.shape_cast %145 : vector<1x1x32xf32> to vector<1x32xf32>
    %c0_65 = arith.constant 0 : index
    %c0_66 = arith.constant 0 : index
    %c0_67 = arith.constant 0 : index
    %147 = vector.load %arg13[%c0_65, %c0_66, %c0_67] : memref<2x1x32xf32, #tpu.memory_space<vmem>>, vector<1x1x32xf32>
    %148 = vector.shape_cast %147 : vector<1x1x32xf32> to vector<1x32xf32>
    %cst_68 = arith.constant dense<0.000000e+00> : vector<8xf32>
    %149 = vector.multi_reduction <add>, %144, %cst_68 [1] : vector<8x32xf32> to vector<8xf32>
    %150 = vector.shape_cast %149 : vector<8xf32> to vector<8x1xf32>
    %cst_69 = arith.constant 3.200000e+01 : f32
    %151 = vector.broadcast %cst_69 : f32 to vector<8x1xf32>
    %152 = arith.divf %150, %151 : vector<8x1xf32>
    %153 = vector.broadcast %152 : vector<8x1xf32> to vector<8x32xf32>
    %154 = arith.subf %144, %153 : vector<8x32xf32>
    %155 = arith.mulf %154, %154 : vector<8x32xf32>
    %cst_70 = arith.constant dense<0.000000e+00> : vector<8xf32>
    %156 = vector.multi_reduction <add>, %155, %cst_70 [1] : vector<8x32xf32> to vector<8xf32>
    %157 = vector.shape_cast %156 : vector<8xf32> to vector<8x1xf32>
    %cst_71 = arith.constant 3.200000e+01 : f32
    %158 = vector.broadcast %cst_71 : f32 to vector<8x1xf32>
    %159 = arith.divf %157, %158 : vector<8x1xf32>
    %160 = vector.broadcast %152 : vector<8x1xf32> to vector<8x32xf32>
    %161 = arith.subf %144, %160 : vector<8x32xf32>
    %cst_72 = arith.constant 9.99999974E-6 : f32
    %162 = vector.broadcast %cst_72 : f32 to vector<8x1xf32>
    %163 = arith.addf %159, %162 : vector<8x1xf32>
    %164 = math.rsqrt %163 : vector<8x1xf32>
    %165 = vector.broadcast %164 : vector<8x1xf32> to vector<8x32xf32>
    %166 = arith.mulf %161, %165 : vector<8x32xf32>
    %167 = vector.broadcast %146 : vector<1x32xf32> to vector<8x32xf32>
    %168 = arith.mulf %166, %167 : vector<8x32xf32>
    %169 = vector.broadcast %148 : vector<1x32xf32> to vector<8x32xf32>
    %170 = arith.addf %168, %169 : vector<8x32xf32>
    %c0_73 = arith.constant 0 : index
    %c0_74 = arith.constant 0 : index
    %c0_75 = arith.constant 0 : index
    %171 = vector.load %arg14[%c0_73, %c0_74, %c0_75] : memref<2x32x128xf32, #tpu.memory_space<vmem>>, vector<1x32x128xf32>
    %172 = vector.shape_cast %171 : vector<1x32x128xf32> to vector<32x128xf32>
    %cst_76 = arith.constant dense<0.000000e+00> : vector<8x128xf32>
    %173 = tpu.matmul %170, %172, %cst_76 {dimension_numbers = #tpu.dot_dimension_numbers<[1], [0], [0], [1], [0, 0, 1, 1], [], []>} : vector<8x32xf32>, vector<32x128xf32>, vector<8x128xf32> -> vector<8x128xf32>
    %c0_77 = arith.constant 0 : index
    %c0_78 = arith.constant 0 : index
    %c0_79 = arith.constant 0 : index
    %174 = vector.load %arg15[%c0_77, %c0_78, %c0_79] : memref<2x1x128xf32, #tpu.memory_space<vmem>>, vector<1x1x128xf32>
    %175 = vector.shape_cast %174 : vector<1x1x128xf32> to vector<1x128xf32>
    %176 = vector.broadcast %175 : vector<1x128xf32> to vector<8x128xf32>
    %177 = arith.addf %173, %176 : vector<8x128xf32>
    %cst_80 = arith.constant 5.000000e-01 : f32
    %178 = vector.broadcast %cst_80 : f32 to vector<8x128xf32>
    %179 = arith.mulf %178, %177 : vector<8x128xf32>
    %cst_81 = arith.constant 4.471500e-02 : f32
    %180 = vector.broadcast %cst_81 : f32 to vector<8x128xf32>
    %181 = arith.mulf %180, %177 : vector<8x128xf32>
    %182 = arith.mulf %181, %177 : vector<8x128xf32>
    %183 = arith.mulf %182, %177 : vector<8x128xf32>
    %184 = arith.addf %177, %183 : vector<8x128xf32>
    %cst_82 = arith.constant 0.797884583 : f32
    %185 = vector.broadcast %cst_82 : f32 to vector<8x128xf32>
    %186 = arith.mulf %185, %184 : vector<8x128xf32>
    %187 = math.tanh %186 : vector<8x128xf32>
    %cst_83 = arith.constant 1.000000e+00 : f32
    %188 = vector.broadcast %cst_83 : f32 to vector<8x128xf32>
    %189 = arith.addf %188, %187 : vector<8x128xf32>
    %190 = arith.mulf %179, %189 : vector<8x128xf32>
    %c0_84 = arith.constant 0 : index
    %c0_85 = arith.constant 0 : index
    %c0_86 = arith.constant 0 : index
    %191 = vector.load %arg16[%c0_84, %c0_85, %c0_86] : memref<2x128x32xf32, #tpu.memory_space<vmem>>, vector<1x128x32xf32>
    %192 = vector.shape_cast %191 : vector<1x128x32xf32> to vector<128x32xf32>
    %cst_87 = arith.constant dense<0.000000e+00> : vector<8x32xf32>
    %193 = tpu.matmul %190, %192, %cst_87 {dimension_numbers = #tpu.dot_dimension_numbers<[1], [0], [0], [1], [0, 0, 1, 1], [], []>} : vector<8x128xf32>, vector<128x32xf32>, vector<8x32xf32> -> vector<8x32xf32>
    %194 = arith.addf %144, %193 : vector<8x32xf32>
    %c0_88 = arith.constant 0 : index
    %c0_89 = arith.constant 0 : index
    %c0_90 = arith.constant 0 : index
    %195 = vector.load %arg17[%c0_88, %c0_89, %c0_90] : memref<2x1x32xf32, #tpu.memory_space<vmem>>, vector<1x1x32xf32>
    %196 = vector.shape_cast %195 : vector<1x1x32xf32> to vector<1x32xf32>
    %197 = vector.broadcast %196 : vector<1x32xf32> to vector<8x32xf32>
    %198 = arith.addf %194, %197 : vector<8x32xf32>
    %c1 = arith.constant 1 : index
    %c0_91 = arith.constant 0 : index
    %c0_92 = arith.constant 0 : index
    %199 = vector.load %arg6[%c1, %c0_91, %c0_92] : memref<2x1x32xf32, #tpu.memory_space<vmem>>, vector<1x1x32xf32>
    %200 = vector.shape_cast %199 : vector<1x1x32xf32> to vector<1x32xf32>
    %c1_93 = arith.constant 1 : index
    %c0_94 = arith.constant 0 : index
    %c0_95 = arith.constant 0 : index
    %201 = vector.load %arg7[%c1_93, %c0_94, %c0_95] : memref<2x1x32xf32, #tpu.memory_space<vmem>>, vector<1x1x32xf32>
    %202 = vector.shape_cast %201 : vector<1x1x32xf32> to vector<1x32xf32>
    %cst_96 = arith.constant dense<0.000000e+00> : vector<8xf32>
    %203 = vector.multi_reduction <add>, %198, %cst_96 [1] : vector<8x32xf32> to vector<8xf32>
    %204 = vector.shape_cast %203 : vector<8xf32> to vector<8x1xf32>
    %cst_97 = arith.constant 3.200000e+01 : f32
    %205 = vector.broadcast %cst_97 : f32 to vector<8x1xf32>
    %206 = arith.divf %204, %205 : vector<8x1xf32>
    %207 = vector.broadcast %206 : vector<8x1xf32> to vector<8x32xf32>
    %208 = arith.subf %198, %207 : vector<8x32xf32>
    %209 = arith.mulf %208, %208 : vector<8x32xf32>
    %cst_98 = arith.constant dense<0.000000e+00> : vector<8xf32>
    %210 = vector.multi_reduction <add>, %209, %cst_98 [1] : vector<8x32xf32> to vector<8xf32>
    %211 = vector.shape_cast %210 : vector<8xf32> to vector<8x1xf32>
    %cst_99 = arith.constant 3.200000e+01 : f32
    %212 = vector.broadcast %cst_99 : f32 to vector<8x1xf32>
    %213 = arith.divf %211, %212 : vector<8x1xf32>
    %214 = vector.broadcast %206 : vector<8x1xf32> to vector<8x32xf32>
    %215 = arith.subf %198, %214 : vector<8x32xf32>
    %cst_100 = arith.constant 9.99999974E-6 : f32
    %216 = vector.broadcast %cst_100 : f32 to vector<8x1xf32>
    %217 = arith.addf %213, %216 : vector<8x1xf32>
    %218 = math.rsqrt %217 : vector<8x1xf32>
    %219 = vector.broadcast %218 : vector<8x1xf32> to vector<8x32xf32>
    %220 = arith.mulf %215, %219 : vector<8x32xf32>
    %221 = vector.broadcast %200 : vector<1x32xf32> to vector<8x32xf32>
    %222 = arith.mulf %220, %221 : vector<8x32xf32>
    %223 = vector.broadcast %202 : vector<1x32xf32> to vector<8x32xf32>
    %224 = arith.addf %222, %223 : vector<8x32xf32>
    %c1_101 = arith.constant 1 : index
    %c0_102 = arith.constant 0 : index
    %c0_103 = arith.constant 0 : index
    %225 = vector.load %arg8[%c1_101, %c0_102, %c0_103] : memref<2x32x96xf32, #tpu.memory_space<vmem>>, vector<1x32x96xf32>
    %226 = vector.shape_cast %225 : vector<1x32x96xf32> to vector<32x96xf32>
    %cst_104 = arith.constant dense<0.000000e+00> : vector<8x96xf32>
    %227 = tpu.matmul %224, %226, %cst_104 {dimension_numbers = #tpu.dot_dimension_numbers<[1], [0], [0], [1], [0, 0, 1, 1], [], []>} : vector<8x32xf32>, vector<32x96xf32>, vector<8x96xf32> -> vector<8x96xf32>
    %c1_105 = arith.constant 1 : index
    %c0_106 = arith.constant 0 : index
    %c0_107 = arith.constant 0 : index
    %228 = vector.load %arg9[%c1_105, %c0_106, %c0_107] : memref<2x1x96xf32, #tpu.memory_space<vmem>>, vector<1x1x96xf32>
    %229 = vector.shape_cast %228 : vector<1x1x96xf32> to vector<1x96xf32>
    %230 = vector.broadcast %229 : vector<1x96xf32> to vector<8x96xf32>
    %231 = arith.addf %227, %230 : vector<8x96xf32>
    %232 = vector.extract_strided_slice %231 {offsets = [0, 0], sizes = [8, 32], strides = [1, 1]} : vector<8x96xf32> to vector<8x32xf32>
    %233 = vector.extract_strided_slice %231 {offsets = [0, 32], sizes = [8, 32], strides = [1, 1]} : vector<8x96xf32> to vector<8x32xf32>
    %234 = vector.extract_strided_slice %231 {offsets = [0, 64], sizes = [8, 32], strides = [1, 1]} : vector<8x96xf32> to vector<8x32xf32>
    %c1_108 = arith.constant 1 : index
    %c0_109 = arith.constant 0 : index
    %c0_110 = arith.constant 0 : index
    %235 = vector.load %arg10[%c1_108, %c0_109, %c0_110] : memref<2x32x32xf32, #tpu.memory_space<vmem>>, vector<1x32x32xf32>
    %236 = vector.shape_cast %235 : vector<1x32x32xf32> to vector<32x32xf32>
    %cst_111 = arith.constant 0.000000e+00 : f32
    %237 = vector.broadcast %cst_111 : f32 to vector<8x32xf32>
    %238 = vector.extract_strided_slice %232 {offsets = [0, 0], sizes = [8, 8], strides = [1, 1]} : vector<8x32xf32> to vector<8x8xf32>
    %cst_112 = arith.constant 0.353553385 : f32
    %239 = vector.broadcast %cst_112 : f32 to vector<8x8xf32>
    %240 = arith.mulf %238, %239 : vector<8x8xf32>
    %241 = vector.extract_strided_slice %233 {offsets = [0, 0], sizes = [8, 8], strides = [1, 1]} : vector<8x32xf32> to vector<8x8xf32>
    %242 = vector.extract_strided_slice %234 {offsets = [0, 0], sizes = [8, 8], strides = [1, 1]} : vector<8x32xf32> to vector<8x8xf32>
    "tpu.trace_start"() <{level = 10 : i32, message = "nd,md->nm"}> : () -> ()
    %cst_113 = arith.constant dense<0.000000e+00> : vector<8x8xf32>
    %243 = tpu.matmul %240, %241, %cst_113 {dimension_numbers = #tpu.dot_dimension_numbers<[1], [1], [0], [0], [0, 0, 1, 0], [], []>} : vector<8x8xf32>, vector<8x8xf32>, vector<8x8xf32> -> vector<8x8xf32>
    "tpu.trace_stop"() : () -> ()
    %244 = vector.broadcast %3 : vector<1x8xf32> to vector<8x8xf32>
    %245 = arith.addf %243, %244 : vector<8x8xf32>
    %cst_114 = arith.constant dense<0xFF800000> : vector<8xf32>
    %246 = vector.multi_reduction <maximumf>, %245, %cst_114 [1] : vector<8x8xf32> to vector<8xf32>
    %247 = vector.shape_cast %246 : vector<8xf32> to vector<8x1xf32>
    %248 = vector.broadcast %247 : vector<8x1xf32> to vector<8x8xf32>
    %249 = arith.subf %245, %248 : vector<8x8xf32>
    %250 = math.exp %249 : vector<8x8xf32>
    %cst_115 = arith.constant dense<0.000000e+00> : vector<8xf32>
    %251 = vector.multi_reduction <add>, %250, %cst_115 [1] : vector<8x8xf32> to vector<8xf32>
    %252 = vector.shape_cast %251 : vector<8xf32> to vector<8x1xf32>
    %253 = vector.broadcast %252 : vector<8x1xf32> to vector<8x8xf32>
    %254 = arith.divf %250, %253 : vector<8x8xf32>
    %cst_116 = arith.constant dense<0.000000e+00> : vector<8x8xf32>
    %255 = tpu.matmul %254, %242, %cst_116 {dimension_numbers = #tpu.dot_dimension_numbers<[1], [0], [0], [1], [0, 0, 1, 1], [], []>} : vector<8x8xf32>, vector<8x8xf32>, vector<8x8xf32> -> vector<8x8xf32>
    %256 = vector.extract_strided_slice %236 {offsets = [0, 0], sizes = [8, 32], strides = [1, 1]} : vector<32x32xf32> to vector<8x32xf32>
    %cst_117 = arith.constant dense<0.000000e+00> : vector<8x32xf32>
    %257 = tpu.matmul %255, %256, %cst_117 {dimension_numbers = #tpu.dot_dimension_numbers<[1], [0], [0], [1], [0, 0, 1, 1], [], []>} : vector<8x8xf32>, vector<8x32xf32>, vector<8x32xf32> -> vector<8x32xf32>
    %258 = arith.addf %237, %257 : vector<8x32xf32>
    %259 = vector.extract_strided_slice %232 {offsets = [0, 8], sizes = [8, 8], strides = [1, 1]} : vector<8x32xf32> to vector<8x8xf32>
    %cst_118 = arith.constant 0.353553385 : f32
    %260 = vector.broadcast %cst_118 : f32 to vector<8x8xf32>
    %261 = arith.mulf %259, %260 : vector<8x8xf32>
    %262 = vector.extract_strided_slice %233 {offsets = [0, 8], sizes = [8, 8], strides = [1, 1]} : vector<8x32xf32> to vector<8x8xf32>
    %263 = vector.extract_strided_slice %234 {offsets = [0, 8], sizes = [8, 8], strides = [1, 1]} : vector<8x32xf32> to vector<8x8xf32>
    "tpu.trace_start"() <{level = 10 : i32, message = "nd,md->nm"}> : () -> ()
    %cst_119 = arith.constant dense<0.000000e+00> : vector<8x8xf32>
    %264 = tpu.matmul %261, %262, %cst_119 {dimension_numbers = #tpu.dot_dimension_numbers<[1], [1], [0], [0], [0, 0, 1, 0], [], []>} : vector<8x8xf32>, vector<8x8xf32>, vector<8x8xf32> -> vector<8x8xf32>
    "tpu.trace_stop"() : () -> ()
    %265 = vector.broadcast %3 : vector<1x8xf32> to vector<8x8xf32>
    %266 = arith.addf %264, %265 : vector<8x8xf32>
    %cst_120 = arith.constant dense<0xFF800000> : vector<8xf32>
    %267 = vector.multi_reduction <maximumf>, %266, %cst_120 [1] : vector<8x8xf32> to vector<8xf32>
    %268 = vector.shape_cast %267 : vector<8xf32> to vector<8x1xf32>
    %269 = vector.broadcast %268 : vector<8x1xf32> to vector<8x8xf32>
    %270 = arith.subf %266, %269 : vector<8x8xf32>
    %271 = math.exp %270 : vector<8x8xf32>
    %cst_121 = arith.constant dense<0.000000e+00> : vector<8xf32>
    %272 = vector.multi_reduction <add>, %271, %cst_121 [1] : vector<8x8xf32> to vector<8xf32>
    %273 = vector.shape_cast %272 : vector<8xf32> to vector<8x1xf32>
    %274 = vector.broadcast %273 : vector<8x1xf32> to vector<8x8xf32>
    %275 = arith.divf %271, %274 : vector<8x8xf32>
    %cst_122 = arith.constant dense<0.000000e+00> : vector<8x8xf32>
    %276 = tpu.matmul %275, %263, %cst_122 {dimension_numbers = #tpu.dot_dimension_numbers<[1], [0], [0], [1], [0, 0, 1, 1], [], []>} : vector<8x8xf32>, vector<8x8xf32>, vector<8x8xf32> -> vector<8x8xf32>
    %277 = vector.extract_strided_slice %236 {offsets = [8, 0], sizes = [8, 32], strides = [1, 1]} : vector<32x32xf32> to vector<8x32xf32>
    %cst_123 = arith.constant dense<0.000000e+00> : vector<8x32xf32>
    %278 = tpu.matmul %276, %277, %cst_123 {dimension_numbers = #tpu.dot_dimension_numbers<[1], [0], [0], [1], [0, 0, 1, 1], [], []>} : vector<8x8xf32>, vector<8x32xf32>, vector<8x32xf32> -> vector<8x32xf32>
    %279 = arith.addf %258, %278 : vector<8x32xf32>
    %280 = vector.extract_strided_slice %232 {offsets = [0, 16], sizes = [8, 8], strides = [1, 1]} : vector<8x32xf32> to vector<8x8xf32>
    %cst_124 = arith.constant 0.353553385 : f32
    %281 = vector.broadcast %cst_124 : f32 to vector<8x8xf32>
    %282 = arith.mulf %280, %281 : vector<8x8xf32>
    %283 = vector.extract_strided_slice %233 {offsets = [0, 16], sizes = [8, 8], strides = [1, 1]} : vector<8x32xf32> to vector<8x8xf32>
    %284 = vector.extract_strided_slice %234 {offsets = [0, 16], sizes = [8, 8], strides = [1, 1]} : vector<8x32xf32> to vector<8x8xf32>
    "tpu.trace_start"() <{level = 10 : i32, message = "nd,md->nm"}> : () -> ()
    %cst_125 = arith.constant dense<0.000000e+00> : vector<8x8xf32>
    %285 = tpu.matmul %282, %283, %cst_125 {dimension_numbers = #tpu.dot_dimension_numbers<[1], [1], [0], [0], [0, 0, 1, 0], [], []>} : vector<8x8xf32>, vector<8x8xf32>, vector<8x8xf32> -> vector<8x8xf32>
    "tpu.trace_stop"() : () -> ()
    %286 = vector.broadcast %3 : vector<1x8xf32> to vector<8x8xf32>
    %287 = arith.addf %285, %286 : vector<8x8xf32>
    %cst_126 = arith.constant dense<0xFF800000> : vector<8xf32>
    %288 = vector.multi_reduction <maximumf>, %287, %cst_126 [1] : vector<8x8xf32> to vector<8xf32>
    %289 = vector.shape_cast %288 : vector<8xf32> to vector<8x1xf32>
    %290 = vector.broadcast %289 : vector<8x1xf32> to vector<8x8xf32>
    %291 = arith.subf %287, %290 : vector<8x8xf32>
    %292 = math.exp %291 : vector<8x8xf32>
    %cst_127 = arith.constant dense<0.000000e+00> : vector<8xf32>
    %293 = vector.multi_reduction <add>, %292, %cst_127 [1] : vector<8x8xf32> to vector<8xf32>
    %294 = vector.shape_cast %293 : vector<8xf32> to vector<8x1xf32>
    %295 = vector.broadcast %294 : vector<8x1xf32> to vector<8x8xf32>
    %296 = arith.divf %292, %295 : vector<8x8xf32>
    %cst_128 = arith.constant dense<0.000000e+00> : vector<8x8xf32>
    %297 = tpu.matmul %296, %284, %cst_128 {dimension_numbers = #tpu.dot_dimension_numbers<[1], [0], [0], [1], [0, 0, 1, 1], [], []>} : vector<8x8xf32>, vector<8x8xf32>, vector<8x8xf32> -> vector<8x8xf32>
    %298 = vector.extract_strided_slice %236 {offsets = [16, 0], sizes = [8, 32], strides = [1, 1]} : vector<32x32xf32> to vector<8x32xf32>
    %cst_129 = arith.constant dense<0.000000e+00> : vector<8x32xf32>
    %299 = tpu.matmul %297, %298, %cst_129 {dimension_numbers = #tpu.dot_dimension_numbers<[1], [0], [0], [1], [0, 0, 1, 1], [], []>} : vector<8x8xf32>, vector<8x32xf32>, vector<8x32xf32> -> vector<8x32xf32>
    %300 = arith.addf %279, %299 : vector<8x32xf32>
    %301 = vector.extract_strided_slice %232 {offsets = [0, 24], sizes = [8, 8], strides = [1, 1]} : vector<8x32xf32> to vector<8x8xf32>
    %cst_130 = arith.constant 0.353553385 : f32
    %302 = vector.broadcast %cst_130 : f32 to vector<8x8xf32>
    %303 = arith.mulf %301, %302 : vector<8x8xf32>
    %304 = vector.extract_strided_slice %233 {offsets = [0, 24], sizes = [8, 8], strides = [1, 1]} : vector<8x32xf32> to vector<8x8xf32>
    %305 = vector.extract_strided_slice %234 {offsets = [0, 24], sizes = [8, 8], strides = [1, 1]} : vector<8x32xf32> to vector<8x8xf32>
    "tpu.trace_start"() <{level = 10 : i32, message = "nd,md->nm"}> : () -> ()
    %cst_131 = arith.constant dense<0.000000e+00> : vector<8x8xf32>
    %306 = tpu.matmul %303, %304, %cst_131 {dimension_numbers = #tpu.dot_dimension_numbers<[1], [1], [0], [0], [0, 0, 1, 0], [], []>} : vector<8x8xf32>, vector<8x8xf32>, vector<8x8xf32> -> vector<8x8xf32>
    "tpu.trace_stop"() : () -> ()
    %307 = vector.broadcast %3 : vector<1x8xf32> to vector<8x8xf32>
    %308 = arith.addf %306, %307 : vector<8x8xf32>
    %cst_132 = arith.constant dense<0xFF800000> : vector<8xf32>
    %309 = vector.multi_reduction <maximumf>, %308, %cst_132 [1] : vector<8x8xf32> to vector<8xf32>
    %310 = vector.shape_cast %309 : vector<8xf32> to vector<8x1xf32>
    %311 = vector.broadcast %310 : vector<8x1xf32> to vector<8x8xf32>
    %312 = arith.subf %308, %311 : vector<8x8xf32>
    %313 = math.exp %312 : vector<8x8xf32>
    %cst_133 = arith.constant dense<0.000000e+00> : vector<8xf32>
    %314 = vector.multi_reduction <add>, %313, %cst_133 [1] : vector<8x8xf32> to vector<8xf32>
    %315 = vector.shape_cast %314 : vector<8xf32> to vector<8x1xf32>
    %316 = vector.broadcast %315 : vector<8x1xf32> to vector<8x8xf32>
    %317 = arith.divf %313, %316 : vector<8x8xf32>
    %cst_134 = arith.constant dense<0.000000e+00> : vector<8x8xf32>
    %318 = tpu.matmul %317, %305, %cst_134 {dimension_numbers = #tpu.dot_dimension_numbers<[1], [0], [0], [1], [0, 0, 1, 1], [], []>} : vector<8x8xf32>, vector<8x8xf32>, vector<8x8xf32> -> vector<8x8xf32>
    %319 = vector.extract_strided_slice %236 {offsets = [24, 0], sizes = [8, 32], strides = [1, 1]} : vector<32x32xf32> to vector<8x32xf32>
    %cst_135 = arith.constant dense<0.000000e+00> : vector<8x32xf32>
    %320 = tpu.matmul %318, %319, %cst_135 {dimension_numbers = #tpu.dot_dimension_numbers<[1], [0], [0], [1], [0, 0, 1, 1], [], []>} : vector<8x8xf32>, vector<8x32xf32>, vector<8x32xf32> -> vector<8x32xf32>
    %321 = arith.addf %300, %320 : vector<8x32xf32>
    %322 = arith.addf %198, %321 : vector<8x32xf32>
    %c1_136 = arith.constant 1 : index
    %c0_137 = arith.constant 0 : index
    %c0_138 = arith.constant 0 : index
    %323 = vector.load %arg11[%c1_136, %c0_137, %c0_138] : memref<2x1x32xf32, #tpu.memory_space<vmem>>, vector<1x1x32xf32>
    %324 = vector.shape_cast %323 : vector<1x1x32xf32> to vector<1x32xf32>
    %325 = vector.broadcast %324 : vector<1x32xf32> to vector<8x32xf32>
    %326 = arith.addf %322, %325 : vector<8x32xf32>
    %c1_139 = arith.constant 1 : index
    %c0_140 = arith.constant 0 : index
    %c0_141 = arith.constant 0 : index
    %327 = vector.load %arg12[%c1_139, %c0_140, %c0_141] : memref<2x1x32xf32, #tpu.memory_space<vmem>>, vector<1x1x32xf32>
    %328 = vector.shape_cast %327 : vector<1x1x32xf32> to vector<1x32xf32>
    %c1_142 = arith.constant 1 : index
    %c0_143 = arith.constant 0 : index
    %c0_144 = arith.constant 0 : index
    %329 = vector.load %arg13[%c1_142, %c0_143, %c0_144] : memref<2x1x32xf32, #tpu.memory_space<vmem>>, vector<1x1x32xf32>
    %330 = vector.shape_cast %329 : vector<1x1x32xf32> to vector<1x32xf32>
    %cst_145 = arith.constant dense<0.000000e+00> : vector<8xf32>
    %331 = vector.multi_reduction <add>, %326, %cst_145 [1] : vector<8x32xf32> to vector<8xf32>
    %332 = vector.shape_cast %331 : vector<8xf32> to vector<8x1xf32>
    %cst_146 = arith.constant 3.200000e+01 : f32
    %333 = vector.broadcast %cst_146 : f32 to vector<8x1xf32>
    %334 = arith.divf %332, %333 : vector<8x1xf32>
    %335 = vector.broadcast %334 : vector<8x1xf32> to vector<8x32xf32>
    %336 = arith.subf %326, %335 : vector<8x32xf32>
    %337 = arith.mulf %336, %336 : vector<8x32xf32>
    %cst_147 = arith.constant dense<0.000000e+00> : vector<8xf32>
    %338 = vector.multi_reduction <add>, %337, %cst_147 [1] : vector<8x32xf32> to vector<8xf32>
    %339 = vector.shape_cast %338 : vector<8xf32> to vector<8x1xf32>
    %cst_148 = arith.constant 3.200000e+01 : f32
    %340 = vector.broadcast %cst_148 : f32 to vector<8x1xf32>
    %341 = arith.divf %339, %340 : vector<8x1xf32>
    %342 = vector.broadcast %334 : vector<8x1xf32> to vector<8x32xf32>
    %343 = arith.subf %326, %342 : vector<8x32xf32>
    %cst_149 = arith.constant 9.99999974E-6 : f32
    %344 = vector.broadcast %cst_149 : f32 to vector<8x1xf32>
    %345 = arith.addf %341, %344 : vector<8x1xf32>
    %346 = math.rsqrt %345 : vector<8x1xf32>
    %347 = vector.broadcast %346 : vector<8x1xf32> to vector<8x32xf32>
    %348 = arith.mulf %343, %347 : vector<8x32xf32>
    %349 = vector.broadcast %328 : vector<1x32xf32> to vector<8x32xf32>
    %350 = arith.mulf %348, %349 : vector<8x32xf32>
    %351 = vector.broadcast %330 : vector<1x32xf32> to vector<8x32xf32>
    %352 = arith.addf %350, %351 : vector<8x32xf32>
    %c1_150 = arith.constant 1 : index
    %c0_151 = arith.constant 0 : index
    %c0_152 = arith.constant 0 : index
    %353 = vector.load %arg14[%c1_150, %c0_151, %c0_152] : memref<2x32x128xf32, #tpu.memory_space<vmem>>, vector<1x32x128xf32>
    %354 = vector.shape_cast %353 : vector<1x32x128xf32> to vector<32x128xf32>
    %cst_153 = arith.constant dense<0.000000e+00> : vector<8x128xf32>
    %355 = tpu.matmul %352, %354, %cst_153 {dimension_numbers = #tpu.dot_dimension_numbers<[1], [0], [0], [1], [0, 0, 1, 1], [], []>} : vector<8x32xf32>, vector<32x128xf32>, vector<8x128xf32> -> vector<8x128xf32>
    %c1_154 = arith.constant 1 : index
    %c0_155 = arith.constant 0 : index
    %c0_156 = arith.constant 0 : index
    %356 = vector.load %arg15[%c1_154, %c0_155, %c0_156] : memref<2x1x128xf32, #tpu.memory_space<vmem>>, vector<1x1x128xf32>
    %357 = vector.shape_cast %356 : vector<1x1x128xf32> to vector<1x128xf32>
    %358 = vector.broadcast %357 : vector<1x128xf32> to vector<8x128xf32>
    %359 = arith.addf %355, %358 : vector<8x128xf32>
    %cst_157 = arith.constant 5.000000e-01 : f32
    %360 = vector.broadcast %cst_157 : f32 to vector<8x128xf32>
    %361 = arith.mulf %360, %359 : vector<8x128xf32>
    %cst_158 = arith.constant 4.471500e-02 : f32
    %362 = vector.broadcast %cst_158 : f32 to vector<8x128xf32>
    %363 = arith.mulf %362, %359 : vector<8x128xf32>
    %364 = arith.mulf %363, %359 : vector<8x128xf32>
    %365 = arith.mulf %364, %359 : vector<8x128xf32>
    %366 = arith.addf %359, %365 : vector<8x128xf32>
    %cst_159 = arith.constant 0.797884583 : f32
    %367 = vector.broadcast %cst_159 : f32 to vector<8x128xf32>
    %368 = arith.mulf %367, %366 : vector<8x128xf32>
    %369 = math.tanh %368 : vector<8x128xf32>
    %cst_160 = arith.constant 1.000000e+00 : f32
    %370 = vector.broadcast %cst_160 : f32 to vector<8x128xf32>
    %371 = arith.addf %370, %369 : vector<8x128xf32>
    %372 = arith.mulf %361, %371 : vector<8x128xf32>
    %c1_161 = arith.constant 1 : index
    %c0_162 = arith.constant 0 : index
    %c0_163 = arith.constant 0 : index
    %373 = vector.load %arg16[%c1_161, %c0_162, %c0_163] : memref<2x128x32xf32, #tpu.memory_space<vmem>>, vector<1x128x32xf32>
    %374 = vector.shape_cast %373 : vector<1x128x32xf32> to vector<128x32xf32>
    %cst_164 = arith.constant dense<0.000000e+00> : vector<8x32xf32>
    %375 = tpu.matmul %372, %374, %cst_164 {dimension_numbers = #tpu.dot_dimension_numbers<[1], [0], [0], [1], [0, 0, 1, 1], [], []>} : vector<8x128xf32>, vector<128x32xf32>, vector<8x32xf32> -> vector<8x32xf32>
    %376 = arith.addf %326, %375 : vector<8x32xf32>
    %c1_165 = arith.constant 1 : index
    %c0_166 = arith.constant 0 : index
    %c0_167 = arith.constant 0 : index
    %377 = vector.load %arg17[%c1_165, %c0_166, %c0_167] : memref<2x1x32xf32, #tpu.memory_space<vmem>>, vector<1x1x32xf32>
    %378 = vector.shape_cast %377 : vector<1x1x32xf32> to vector<1x32xf32>
    %379 = vector.broadcast %378 : vector<1x32xf32> to vector<8x32xf32>
    %380 = arith.addf %376, %379 : vector<8x32xf32>
    %381 = vector.broadcast %16 : vector<8x1xf32> to vector<8x32xf32>
    %382 = arith.mulf %380, %381 : vector<8x32xf32>
    %cst_168 = arith.constant dense<0.000000e+00> : vector<32xf32>
    %383 = vector.multi_reduction <add>, %382, %cst_168 [0] : vector<8x32xf32> to vector<32xf32>
    %384 = vector.shape_cast %383 : vector<32xf32> to vector<1x32xf32>
    %cst_169 = arith.constant dense<0.000000e+00> : vector<1xf32>
    %385 = vector.multi_reduction <add>, %16, %cst_169 [0] : vector<8x1xf32> to vector<1xf32>
    %386 = vector.shape_cast %385 : vector<1xf32> to vector<1x1xf32>
    %cst_170 = arith.constant 9.99999971E-10 : f32
    %387 = vector.broadcast %cst_170 : f32 to vector<1x1xf32>
    %388 = arith.maximumf %386, %387 : vector<1x1xf32>
    %389 = vector.broadcast %388 : vector<1x1xf32> to vector<1x32xf32>
    %390 = arith.divf %384, %389 : vector<1x32xf32>
    %c0_171 = arith.constant 0 : index
    %c0_172 = arith.constant 0 : index
    %c0_173 = arith.constant 0 : index
    %391 = vector.load %arg18[%c0_171, %c0_172, %c0_173] : memref<1x1x32xf32, #tpu.memory_space<vmem>>, vector<1x1x32xf32>
    %392 = vector.shape_cast %391 : vector<1x1x32xf32> to vector<1x32xf32>
    %393 = vector.shape_cast %390 : vector<1x32xf32> to vector<1x1x32xf32>
    tpu.vector_store %arg18[%c0_171, %c0_172, %c0_173], %393 {strides = array<i32>} : memref<1x1x32xf32, #tpu.memory_space<vmem>>, vector<1x1x32xf32>,
    return
  }
  func.func @transform_0(%arg0: i32) -> (i32, i32, i32) {
    %c0_i32 = arith.constant 0 : i32
    %c0_i32_0 = arith.constant 0 : i32
    %c0_i32_1 = arith.constant 0 : i32
    return %arg0, %c0_i32, %c0_i32_0 : i32, i32, i32
  }
  func.func @transform_1(%arg0: i32) -> (i32, i32, i32) {
    %c0_i32 = arith.constant 0 : i32
    %c0_i32_0 = arith.constant 0 : i32
    %c0_i32_1 = arith.constant 0 : i32
    return %arg0, %c0_i32, %c0_i32_0 : i32, i32, i32
  }
  func.func @transform_2(%arg0: i32) -> (i32, i32) {
    %c0_i32 = arith.constant 0 : i32
    %c0_i32_0 = arith.constant 0 : i32
    %c0_i32_1 = arith.constant 0 : i32
    return %c0_i32, %c0_i32_0 : i32, i32
  }
  func.func @transform_3(%arg0: i32) -> (i32, i32) {
    %c0_i32 = arith.constant 0 : i32
    %c0_i32_0 = arith.constant 0 : i32
    %c0_i32_1 = arith.constant 0 : i32
    return %c0_i32, %c0_i32_0 : i32, i32
  }
  func.func @transform_4(%arg0: i32) -> (i32, i32) {
    %c0_i32 = arith.constant 0 : i32
    %c0_i32_0 = arith.constant 0 : i32
    %c0_i32_1 = arith.constant 0 : i32
    return %c0_i32, %c0_i32_0 : i32, i32
  }
  func.func @transform_5(%arg0: i32) -> (i32, i32, i32) {
    %c0_i32 = arith.constant 0 : i32
    %c0_i32_0 = arith.constant 0 : i32
    %c0_i32_1 = arith.constant 0 : i32
    %c0_i32_2 = arith.constant 0 : i32
    return %c0_i32, %c0_i32_0, %c0_i32_1 : i32, i32, i32
  }
  func.func @transform_6(%arg0: i32) -> (i32, i32, i32) {
    %c0_i32 = arith.constant 0 : i32
    %c0_i32_0 = arith.constant 0 : i32
    %c0_i32_1 = arith.constant 0 : i32
    %c0_i32_2 = arith.constant 0 : i32
    return %c0_i32, %c0_i32_0, %c0_i32_1 : i32, i32, i32
  }
  func.func @transform_7(%arg0: i32) -> (i32, i32, i32) {
    %c0_i32 = arith.constant 0 : i32
    %c0_i32_0 = arith.constant 0 : i32
    %c0_i32_1 = arith.constant 0 : i32
    %c0_i32_2 = arith.constant 0 : i32
    return %c0_i32, %c0_i32_0, %c0_i32_1 : i32, i32, i32
  }
  func.func @transform_8(%arg0: i32) -> (i32, i32, i32) {
    %c0_i32 = arith.constant 0 : i32
    %c0_i32_0 = arith.constant 0 : i32
    %c0_i32_1 = arith.constant 0 : i32
    %c0_i32_2 = arith.constant 0 : i32
    return %c0_i32, %c0_i32_0, %c0_i32_1 : i32, i32, i32
  }
  func.func @transform_9(%arg0: i32) -> (i32, i32, i32) {
    %c0_i32 = arith.constant 0 : i32
    %c0_i32_0 = arith.constant 0 : i32
    %c0_i32_1 = arith.constant 0 : i32
    %c0_i32_2 = arith.constant 0 : i32
    return %c0_i32, %c0_i32_0, %c0_i32_1 : i32, i32, i32
  }
  func.func @transform_10(%arg0: i32) -> (i32, i32, i32) {
    %c0_i32 = arith.constant 0 : i32
    %c0_i32_0 = arith.constant 0 : i32
    %c0_i32_1 = arith.constant 0 : i32
    %c0_i32_2 = arith.constant 0 : i32
    return %c0_i32, %c0_i32_0, %c0_i32_1 : i32, i32, i32
  }
  func.func @transform_11(%arg0: i32) -> (i32, i32, i32) {
    %c0_i32 = arith.constant 0 : i32
    %c0_i32_0 = arith.constant 0 : i32
    %c0_i32_1 = arith.constant 0 : i32
    %c0_i32_2 = arith.constant 0 : i32
    return %c0_i32, %c0_i32_0, %c0_i32_1 : i32, i32, i32
  }
  func.func @transform_12(%arg0: i32) -> (i32, i32, i32) {
    %c0_i32 = arith.constant 0 : i32
    %c0_i32_0 = arith.constant 0 : i32
    %c0_i32_1 = arith.constant 0 : i32
    %c0_i32_2 = arith.constant 0 : i32
    return %c0_i32, %c0_i32_0, %c0_i32_1 : i32, i32, i32
  }
  func.func @transform_13(%arg0: i32) -> (i32, i32, i32) {
    %c0_i32 = arith.constant 0 : i32
    %c0_i32_0 = arith.constant 0 : i32
    %c0_i32_1 = arith.constant 0 : i32
    %c0_i32_2 = arith.constant 0 : i32
    return %c0_i32, %c0_i32_0, %c0_i32_1 : i32, i32, i32
  }
  func.func @transform_14(%arg0: i32) -> (i32, i32, i32) {
    %c0_i32 = arith.constant 0 : i32
    %c0_i32_0 = arith.constant 0 : i32
    %c0_i32_1 = arith.constant 0 : i32
    %c0_i32_2 = arith.constant 0 : i32
    return %c0_i32, %c0_i32_0, %c0_i32_1 : i32, i32, i32
  }
  func.func @transform_15(%arg0: i32) -> (i32, i32, i32) {
    %c0_i32 = arith.constant 0 : i32
    %c0_i32_0 = arith.constant 0 : i32
    %c0_i32_1 = arith.constant 0 : i32
    %c0_i32_2 = arith.constant 0 : i32
    return %c0_i32, %c0_i32_0, %c0_i32_1 : i32, i32, i32
  }
  func.func @transform_16(%arg0: i32) -> (i32, i32, i32) {
    %c0_i32 = arith.constant 0 : i32
    %c0_i32_0 = arith.constant 0 : i32
    %c0_i32_1 = arith.constant 0 : i32
    %c0_i32_2 = arith.constant 0 : i32
    return %c0_i32, %c0_i32_0, %c0_i32_1 : i32, i32, i32
  }
  func.func @transform_17(%arg0: i32) -> (i32, i32, i32) {
    %c0_i32 = arith.constant 0 : i32
    %c0_i32_0 = arith.constant 0 : i32
    %c0_i32_1 = arith.constant 0 : i32
    return %arg0, %c0_i32, %c0_i32_0 : i32, i32, i32
  }
}

</mosaic_0001>

<llo_original>
// kernel: tpu_custom_call.1
$region0: #{tpu_custom_call.1}
  #allocation0 [shape = 'u32[]', space=smem, size = 0x4, offset = 0x4, fixed_abs, tag = 'smem constant byte address 0x4 - core index']
  #allocation1 [shape = 'u32[144,128]{1,0:T(1,128)}', space=vmem, size = 0x12000, scoped, tag = 'internal scratch']
  %s0 = inlined_call_operand.vmem [shape: f32[2,8,16], index: 0, kind: input, shape index: {}]
  %s1 = inlined_call_operand.vmem [shape: f32[2,1,8], index: 1, kind: input, shape index: {}]
  %s2 = inlined_call_operand.vmem [shape: f32[16,32], index: 2, kind: input, shape index: {}]
  %s3 = inlined_call_operand.vmem [shape: f32[1,32], index: 3, kind: input, shape index: {}]
  %s4 = inlined_call_operand.vmem [shape: f32[8,32], index: 4, kind: input, shape index: {}]
  %s5 = inlined_call_operand.vmem [shape: f32[2,1,32], index: 5, kind: input, shape index: {}]
  %s6 = inlined_call_operand.vmem [shape: f32[2,1,32], index: 6, kind: input, shape index: {}]
  %s7 = inlined_call_operand.vmem [shape: f32[2,32,96], index: 7, kind: input, shape index: {}]
  %s8 = inlined_call_operand.vmem [shape: f32[2,1,96], index: 8, kind: input, shape index: {}]
  %s9 = inlined_call_operand.vmem [shape: f32[2,32,32], index: 9, kind: input, shape index: {}]
  %s10 = inlined_call_operand.vmem [shape: f32[2,1,32], index: 10, kind: input, shape index: {}]
  %s11 = inlined_call_operand.vmem [shape: f32[2,1,32], index: 11, kind: input, shape index: {}]
  %s12 = inlined_call_operand.vmem [shape: f32[2,1,32], index: 12, kind: input, shape index: {}]
  %s13 = inlined_call_operand.vmem [shape: f32[2,32,128], index: 13, kind: input, shape index: {}]
  %s14 = inlined_call_operand.vmem [shape: f32[2,1,128], index: 14, kind: input, shape index: {}]
  %s15 = inlined_call_operand.vmem [shape: f32[2,128,32], index: 15, kind: input, shape index: {}]
  %s16 = inlined_call_operand.vmem [shape: f32[2,1,32], index: 16, kind: input, shape index: {}]
  %s17 = inlined_call_operand.hbm [shape: f32[2,1,32], index: 17, kind: output, shape index: {}]
  %s18 = sld [smem:[#allocation0]]
  $region101: #{tpu_custom_call.1} parent=0
    _
  %s20 = ssub.s32 1, %s18
  %s21 = scalar_select 0, %s20, %s18
  $region1: #{tpu_custom_call.1} parent=0
    #allocation2 [shape = 'u8[1024]{0}', space=vmem, size = 0x400, scoped, tag = 'output window, operand 0']
    #allocation3 [shape = 's32[2]{0}', space=sflag, size = 0x8, scoped, tag = 'scoped memory for tpu_custom_call.1']
    %22 = vsyncpa [#allocation3], 0
    %s23 = scalar_lea.sflag [#allocation3], 1
    %24 = vsyncpa %s23, 0
    loop: start=0, step=1, limit=4
    $region2: #{tpu_custom_call.1} parent=1 // loop_pre_header
      _
    $region3: #{tpu_custom_call.1} parent=1 // loop_header
      %s26 = sphi 0, %s30
      %p27 = scmp.ge.s32.totalorder %s26, 4
      %s36 = sphi 0, %s38
      %s39 = sphi 0, %s36
      %s40 = sphi 0, %s39
      %s56 = sphi 0, %s40
      %s62 = sphi 0, %s64
      %s65 = sphi 0, %s62
      %s66 = sphi 0, %s65
      %s82 = sphi 0, %s66
      %s86 = sphi 0, %s86
      %s88 = sphi 0, %s86
      %s89 = sphi 0, %s88
      %s103 = sphi 0, %s89
      %s107 = sphi 0, %s107
      %s109 = sphi 0, %s107
      %s110 = sphi 0, %s109
      %s124 = sphi 0, %s110
      %s128 = sphi 0, %s128
      %s130 = sphi 0, %s128
      %s131 = sphi 0, %s130
      %s145 = sphi 0, %s131
      %s149 = sphi 0, %s149
      %s151 = sphi 0, %s149
      %s152 = sphi 0, %s151
      %s166 = sphi 0, %s152
      %s170 = sphi 0, %s170
      %s172 = sphi 0, %s170
      %s173 = sphi 0, %s172
      %s187 = sphi 0, %s173
      %s191 = sphi 0, %s191
      %s193 = sphi 0, %s191
      %s194 = sphi 0, %s193
      %s208 = sphi 0, %s194
      %s212 = sphi 0, %s212
      %s214 = sphi 0, %s212
      %s215 = sphi 0, %s214
      %s229 = sphi 0, %s215
      %s233 = sphi 0, %s233
      %s235 = sphi 0, %s233
      %s236 = sphi 0, %s235
      %s250 = sphi 0, %s236
      %s254 = sphi 0, %s254
      %s256 = sphi 0, %s254
      %s257 = sphi 0, %s256
      %s271 = sphi 0, %s257
      %s275 = sphi 0, %s275
      %s277 = sphi 0, %s275
      %s278 = sphi 0, %s277
      %s292 = sphi 0, %s278
      %s296 = sphi 0, %s296
      %s298 = sphi 0, %s296
      %s299 = sphi 0, %s298
      %s313 = sphi 0, %s299
      %s317 = sphi 0, %s317
      %s319 = sphi 0, %s317
      %s320 = sphi 0, %s319
      %s334 = sphi 0, %s320
      %s338 = sphi 0, %s338
      %s340 = sphi 0, %s338
      %s341 = sphi 0, %s340
      %s355 = sphi 0, %s341
      %s359 = sphi 0, %s359
      %s361 = sphi 0, %s359
      %s362 = sphi 0, %s361
      %s376 = sphi 0, %s362
      %s380 = sphi 0, %s380
      %s382 = sphi 0, %s380
      %s383 = sphi 0, %s382
      %s397 = sphi 0, %s383
      %s403 = sphi 0, %s405
      %s406 = sphi 0, %s403
      %s407 = sphi 0, %s406
      %s423 = sphi 0, %s407
    $region4: #{tpu_custom_call.1} parent=1 // loop_header_branch
      %29 = sbr.rel (%p27) target = $region8
    $region5: #{tpu_custom_call.1} parent=1 // loop_body
      %s31 = ssub.s32 %s26, 1
      %s32 = ssub.s32 %s26, 2
      %s33 = sadd.s32 %s26, 1
      %s34 = ssub.s32 %s26, %s33
      %p35 = scmp.eq.s32.totalorder %s34, 0
      %s37 = sadd.s32 %s36, 1
      %s38 = scalar_select %p35, %s36, %s37
      %p41 = pneg %p35
      %p42 = scmp.eq.s32.totalorder %s26, 1
      %p43 = por %p41, %p42
      %p44 = scmp.ne.s32.totalorder %s36, %s39
      %p45 = scmp.eq.s32.totalorder %s26, 0
      %p46 = por %p44, %p45
      %p47 = scmp.ne.s32.totalorder %s36, %s39
      %p48 = scmp.eq.s32.totalorder %s31, 1
      %p49 = por %p47, %p48
      %p50 = scmp.ne.s32.totalorder %s39, %s40
      %p51 = scmp.eq.s32.totalorder %s31, 0
      %p52 = por %p50, %p51
      %p53 = scmp.ne.s32.totalorder %s39, %s40
      %p54 = scmp.eq.s32.totalorder %s32, 1
      %p55 = por %p53, %p54
      %p57 = scmp.ne.s32.totalorder %s40, %s56
      %p58 = scmp.eq.s32.totalorder %s32, 0
      %p59 = por %p57, %p58
      %s60 = ssub.s32 %s26, %s33
      %p61 = scmp.eq.s32.totalorder %s60, 0
      %s63 = sadd.s32 %s62, 1
      %s64 = scalar_select %p61, %s62, %s63
      %p67 = pneg %p61
      %p68 = scmp.eq.s32.totalorder %s26, 1
      %p69 = por %p67, %p68
      %p70 = scmp.ne.s32.totalorder %s62, %s65
      %p71 = scmp.eq.s32.totalorder %s26, 0
      %p72 = por %p70, %p71
      %p73 = scmp.ne.s32.totalorder %s62, %s65
      %p74 = scmp.eq.s32.totalorder %s31, 1
      %p75 = por %p73, %p74
      %p76 = scmp.ne.s32.totalorder %s65, %s66
      %p77 = scmp.eq.s32.totalorder %s31, 0
      %p78 = por %p76, %p77
      %p79 = scmp.ne.s32.totalorder %s65, %s66
      %p80 = scmp.eq.s32.totalorder %s32, 1
      %p81 = por %p79, %p80
      %p83 = scmp.ne.s32.totalorder %s66, %s82
      %p84 = scmp.eq.s32.totalorder %s32, 0
      %p85 = por %p83, %p84
      %s87 = sadd.s32 %s86, 1
      %p90 = scmp.eq.s32.totalorder %s26, 1
      %p91 = scmp.ne.s32.totalorder %s86, %s88
      %p92 = scmp.eq.s32.totalorder %s26, 0
      %p93 = por %p91, %p92
      %p94 = scmp.ne.s32.totalorder %s86, %s88
      %p95 = scmp.eq.s32.totalorder %s31, 1
      %p96 = por %p94, %p95
      %p97 = scmp.ne.s32.totalorder %s88, %s89
      %p98 = scmp.eq.s32.totalorder %s31, 0
      %p99 = por %p97, %p98
      %p100 = scmp.ne.s32.totalorder %s88, %s89
      %p101 = scmp.eq.s32.totalorder %s32, 1
      %p102 = por %p100, %p101
      %p104 = scmp.ne.s32.totalorder %s89, %s103
      %p105 = scmp.eq.s32.totalorder %s32, 0
      %p106 = por %p104, %p105
      %s108 = sadd.s32 %s107, 1
      %p111 = scmp.eq.s32.totalorder %s26, 1
      %p112 = scmp.ne.s32.totalorder %s107, %s109
      %p113 = scmp.eq.s32.totalorder %s26, 0
      %p114 = por %p112, %p113
      %p115 = scmp.ne.s32.totalorder %s107, %s109
      %p116 = scmp.eq.s32.totalorder %s31, 1
      %p117 = por %p115, %p116
      %p118 = scmp.ne.s32.totalorder %s109, %s110
      %p119 = scmp.eq.s32.totalorder %s31, 0
      %p120 = por %p118, %p119
      %p121 = scmp.ne.s32.totalorder %s109, %s110
      %p122 = scmp.eq.s32.totalorder %s32, 1
      %p123 = por %p121, %p122
      %p125 = scmp.ne.s32.totalorder %s110, %s124
      %p126 = scmp.eq.s32.totalorder %s32, 0
      %p127 = por %p125, %p126
      %s129 = sadd.s32 %s128, 1
      %p132 = scmp.eq.s32.totalorder %s26, 1
      %p133 = scmp.ne.s32.totalorder %s128, %s130
      %p134 = scmp.eq.s32.totalorder %s26, 0
      %p135 = por %p133, %p134
      %p136 = scmp.ne.s32.totalorder %s128, %s130
      %p137 = scmp.eq.s32.totalorder %s31, 1
      %p138 = por %p136, %p137
      %p139 = scmp.ne.s32.totalorder %s130, %s131
      %p140 = scmp.eq.s32.totalorder %s31, 0
      %p141 = por %p139, %p140
      %p142 = scmp.ne.s32.totalorder %s130, %s131
      %p143 = scmp.eq.s32.totalorder %s32, 1
      %p144 = por %p142, %p143
      %p146 = scmp.ne.s32.totalorder %s131, %s145
      %p147 = scmp.eq.s32.totalorder %s32, 0
      %p148 = por %p146, %p147
      %s150 = sadd.s32 %s149, 1
      %p153 = scmp.eq.s32.totalorder %s26, 1
      %p154 = scmp.ne.s32.totalorder %s149, %s151
      %p155 = scmp.eq.s32.totalorder %s26, 0
      %p156 = por %p154, %p155
      %p157 = scmp.ne.s32.totalorder %s149, %s151
      %p158 = scmp.eq.s32.totalorder %s31, 1
      %p159 = por %p157, %p158
      %p160 = scmp.ne.s32.totalorder %s151, %s152
      %p161 = scmp.eq.s32.totalorder %s31, 0
      %p162 = por %p160, %p161
      %p163 = scmp.ne.s32.totalorder %s151, %s152
      %p164 = scmp.eq.s32.totalorder %s32, 1
      %p165 = por %p163, %p164
      %p167 = scmp.ne.s32.totalorder %s152, %s166
      %p168 = scmp.eq.s32.totalorder %s32, 0
      %p169 = por %p167, %p168
      %s171 = sadd.s32 %s170, 1
      %p174 = scmp.eq.s32.totalorder %s26, 1
      %p175 = scmp.ne.s32.totalorder %s170, %s172
      %p176 = scmp.eq.s32.totalorder %s26, 0
      %p177 = por %p175, %p176
      %p178 = scmp.ne.s32.totalorder %s170, %s172
      %p179 = scmp.eq.s32.totalorder %s31, 1
      %p180 = por %p178, %p179
      %p181 = scmp.ne.s32.totalorder %s172, %s173
      %p182 = scmp.eq.s32.totalorder %s31, 0
      %p183 = por %p181, %p182
      %p184 = scmp.ne.s32.totalorder %s172, %s173
      %p185 = scmp.eq.s32.totalorder %s32, 1
      %p186 = por %p184, %p185
      %p188 = scmp.ne.s32.totalorder %s173, %s187
      %p189 = scmp.eq.s32.totalorder %s32, 0
      %p190 = por %p188, %p189
      %s192 = sadd.s32 %s191, 1
      %p195 = scmp.eq.s32.totalorder %s26, 1
      %p196 = scmp.ne.s32.totalorder %s191, %s193
      %p197 = scmp.eq.s32.totalorder %s26, 0
      %p198 = por %p196, %p197
      %p199 = scmp.ne.s32.totalorder %s191, %s193
      %p200 = scmp.eq.s32.totalorder %s31, 1
      %p201 = por %p199, %p200
      %p202 = scmp.ne.s32.totalorder %s193, %s194
      %p203 = scmp.eq.s32.totalorder %s31, 0
      %p204 = por %p202, %p203
      %p205 = scmp.ne.s32.totalorder %s193, %s194
      %p206 = scmp.eq.s32.totalorder %s32, 1
      %p207 = por %p205, %p206
      %p209 = scmp.ne.s32.totalorder %s194, %s208
      %p210 = scmp.eq.s32.totalorder %s32, 0
      %p211 = por %p209, %p210
      %s213 = sadd.s32 %s212, 1
      %p216 = scmp.eq.s32.totalorder %s26, 1
      %p217 = scmp.ne.s32.totalorder %s212, %s214
      %p218 = scmp.eq.s32.totalorder %s26, 0
      %p219 = por %p217, %p218
      %p220 = scmp.ne.s32.totalorder %s212, %s214
      %p221 = scmp.eq.s32.totalorder %s31, 1
      %p222 = por %p220, %p221
      %p223 = scmp.ne.s32.totalorder %s214, %s215
      %p224 = scmp.eq.s32.totalorder %s31, 0
      %p225 = por %p223, %p224
      %p226 = scmp.ne.s32.totalorder %s214, %s215
      %p227 = scmp.eq.s32.totalorder %s32, 1
      %p228 = por %p226, %p227
      %p230 = scmp.ne.s32.totalorder %s215, %s229
      %p231 = scmp.eq.s32.totalorder %s32, 0
      %p232 = por %p230, %p231
      %s234 = sadd.s32 %s233, 1
      %p237 = scmp.eq.s32.totalorder %s26, 1
      %p238 = scmp.ne.s32.totalorder %s233, %s235
      %p239 = scmp.eq.s32.totalorder %s26, 0
      %p240 = por %p238, %p239
      %p241 = scmp.ne.s32.totalorder %s233, %s235
      %p242 = scmp.eq.s32.totalorder %s31, 1
      %p243 = por %p241, %p242
      %p244 = scmp.ne.s32.totalorder %s235, %s236
      %p245 = scmp.eq.s32.totalorder %s31, 0
      %p246 = por %p244, %p245
      %p247 = scmp.ne.s32.totalorder %s235, %s236
      %p248 = scmp.eq.s32.totalorder %s32, 1
      %p249 = por %p247, %p248
      %p251 = scmp.ne.s32.totalorder %s236, %s250
      %p252 = scmp.eq.s32.totalorder %s32, 0
      %p253 = por %p251, %p252
      %s255 = sadd.s32 %s254, 1
      %p258 = scmp.eq.s32.totalorder %s26, 1
      %p259 = scmp.ne.s32.totalorder %s254, %s256
      %p260 = scmp.eq.s32.totalorder %s26, 0
      %p261 = por %p259, %p260
      %p262 = scmp.ne.s32.totalorder %s254, %s256
      %p263 = scmp.eq.s32.totalorder %s31, 1
      %p264 = por %p262, %p263
      %p265 = scmp.ne.s32.totalorder %s256, %s257
      %p266 = scmp.eq.s32.totalorder %s31, 0
      %p267 = por %p265, %p266
      %p268 = scmp.ne.s32.totalorder %s256, %s257
      %p269 = scmp.eq.s32.totalorder %s32, 1
      %p270 = por %p268, %p269
      %p272 = scmp.ne.s32.totalorder %s257, %s271
      %p273 = scmp.eq.s32.totalorder %s32, 0
      %p274 = por %p272, %p273
      %s276 = sadd.s32 %s275, 1
      %p279 = scmp.eq.s32.totalorder %s26, 1
      %p280 = scmp.ne.s32.totalorder %s275, %s277
      %p281 = scmp.eq.s32.totalorder %s26, 0
      %p282 = por %p280, %p281
      %p283 = scmp.ne.s32.totalorder %s275, %s277
      %p284 = scmp.eq.s32.totalorder %s31, 1
      %p285 = por %p283, %p284
      %p286 = scmp.ne.s32.totalorder %s277, %s278
      %p287 = scmp.eq.s32.totalorder %s31, 0
      %p288 = por %p286, %p287
      %p289 = scmp.ne.s32.totalorder %s277, %s278
      %p290 = scmp.eq.s32.totalorder %s32, 1
      %p291 = por %p289, %p290
      %p293 = scmp.ne.s32.totalorder %s278, %s292
      %p294 = scmp.eq.s32.totalorder %s32, 0
      %p295 = por %p293, %p294
      %s297 = sadd.s32 %s296, 1
      %p300 = scmp.eq.s32.totalorder %s26, 1
      %p301 = scmp.ne.s32.totalorder %s296, %s298
      %p302 = scmp.eq.s32.totalorder %s26, 0
      %p303 = por %p301, %p302
      %p304 = scmp.ne.s32.totalorder %s296, %s298
      %p305 = scmp.eq.s32.totalorder %s31, 1
      %p306 = por %p304, %p305
      %p307 = scmp.ne.s32.totalorder %s298, %s299
      %p308 = scmp.eq.s32.totalorder %s31, 0
      %p309 = por %p307, %p308
      %p310 = scmp.ne.s32.totalorder %s298, %s299
      %p311 = scmp.eq.s32.totalorder %s32, 1
      %p312 = por %p310, %p311
      %p314 = scmp.ne.s32.totalorder %s299, %s313
      %p315 = scmp.eq.s32.totalorder %s32, 0
      %p316 = por %p314, %p315
      %s318 = sadd.s32 %s317, 1
      %p321 = scmp.eq.s32.totalorder %s26, 1
      %p322 = scmp.ne.s32.totalorder %s317, %s319
      %p323 = scmp.eq.s32.totalorder %s26, 0
      %p324 = por %p322, %p323
      %p325 = scmp.ne.s32.totalorder %s317, %s319
      %p326 = scmp.eq.s32.totalorder %s31, 1
      %p327 = por %p325, %p326
      %p328 = scmp.ne.s32.totalorder %s319, %s320
      %p329 = scmp.eq.s32.totalorder %s31, 0
      %p330 = por %p328, %p329
      %p331 = scmp.ne.s32.totalorder %s319, %s320
      %p332 = scmp.eq.s32.totalorder %s32, 1
      %p333 = por %p331, %p332
      %p335 = scmp.ne.s32.totalorder %s320, %s334
      %p336 = scmp.eq.s32.totalorder %s32, 0
      %p337 = por %p335, %p336
      %s339 = sadd.s32 %s338, 1
      %p342 = scmp.eq.s32.totalorder %s26, 1
      %p343 = scmp.ne.s32.totalorder %s338, %s340
      %p344 = scmp.eq.s32.totalorder %s26, 0
      %p345 = por %p343, %p344
      %p346 = scmp.ne.s32.totalorder %s338, %s340
      %p347 = scmp.eq.s32.totalorder %s31, 1
      %p348 = por %p346, %p347
      %p349 = scmp.ne.s32.totalorder %s340, %s341
      %p350 = scmp.eq.s32.totalorder %s31, 0
      %p351 = por %p349, %p350
      %p352 = scmp.ne.s32.totalorder %s340, %s341
      %p353 = scmp.eq.s32.totalorder %s32, 1
      %p354 = por %p352, %p353
      %p356 = scmp.ne.s32.totalorder %s341, %s355
      %p357 = scmp.eq.s32.totalorder %s32, 0
      %p358 = por %p356, %p357
      %s360 = sadd.s32 %s359, 1
      %p363 = scmp.eq.s32.totalorder %s26, 1
      %p364 = scmp.ne.s32.totalorder %s359, %s361
      %p365 = scmp.eq.s32.totalorder %s26, 0
      %p366 = por %p364, %p365
      %p367 = scmp.ne.s32.totalorder %s359, %s361
      %p368 = scmp.eq.s32.totalorder %s31, 1
      %p369 = por %p367, %p368
      %p370 = scmp.ne.s32.totalorder %s361, %s362
      %p371 = scmp.eq.s32.totalorder %s31, 0
      %p372 = por %p370, %p371
      %p373 = scmp.ne.s32.totalorder %s361, %s362
      %p374 = scmp.eq.s32.totalorder %s32, 1
      %p375 = por %p373, %p374
      %p377 = scmp.ne.s32.totalorder %s362, %s376
      %p378 = scmp.eq.s32.totalorder %s32, 0
      %p379 = por %p377, %p378
      %s381 = sadd.s32 %s380, 1
      %p384 = scmp.eq.s32.totalorder %s26, 1
      %p385 = scmp.ne.s32.totalorder %s380, %s382
      %p386 = scmp.eq.s32.totalorder %s26, 0
      %p387 = por %p385, %p386
      %p388 = scmp.ne.s32.totalorder %s380, %s382
      %p389 = scmp.eq.s32.totalorder %s31, 1
      %p390 = por %p388, %p389
      %p391 = scmp.ne.s32.totalorder %s382, %s383
      %p392 = scmp.eq.s32.totalorder %s31, 0
      %p393 = por %p391, %p392
      %p394 = scmp.ne.s32.totalorder %s382, %s383
      %p395 = scmp.eq.s32.totalorder %s32, 1
      %p396 = por %p394, %p395
      %p398 = scmp.ne.s32.totalorder %s383, %s397
      %p399 = scmp.eq.s32.totalorder %s32, 0
      %p400 = por %p398, %p399
      %s401 = ssub.s32 %s26, %s33
      %p402 = scmp.eq.s32.totalorder %s401, 0
      %s404 = sadd.s32 %s403, 1
      %s405 = scalar_select %p402, %s403, %s404
      %p408 = pneg %p402
      %p409 = scmp.eq.s32.totalorder %s26, 1
      %p410 = por %p408, %p409
      %p411 = scmp.ne.s32.totalorder %s403, %s406
      %p412 = scmp.eq.s32.totalorder %s26, 0
      %p413 = por %p411, %p412
      %p414 = scmp.ne.s32.totalorder %s403, %s406
      %p415 = scmp.eq.s32.totalorder %s31, 1
      %p416 = por %p414, %p415
      %p417 = scmp.ne.s32.totalorder %s406, %s407
      %p418 = scmp.eq.s32.totalorder %s31, 0
      %p419 = por %p417, %p418
      %p420 = scmp.ne.s32.totalorder %s406, %s407
      %p421 = scmp.eq.s32.totalorder %s32, 1
      %p422 = por %p420, %p421
      %p424 = scmp.ne.s32.totalorder %s407, %s423
      %p425 = scmp.eq.s32.totalorder %s32, 0
      %p426 = por %p424, %p425
      %p427 = scmp.le.s32.totalorder 1, %s26
      %p428 = scmp.lt.s32.totalorder %s26, 3
      %p429 = pnand %p427, %p428
      %p430 = pneg %p429
      // Predicated region
      $region9: #{tpu_custom_call.1} parent=5 // pred_check
        _
      $region10: #{tpu_custom_call.1} parent=5 // pred_check_branch
        %432 = sbr.rel (%p429) target = $region12
      $region11: #{tpu_custom_call.1} parent=5 // pred_region
        %s433 = ssub.s32 %s26, 1
        // Predicated region
        $region13: #{tpu_custom_call.1} parent=11 // pred_check
          %p434 = pneg %p99
        $region14: #{tpu_custom_call.1} parent=11 // pred_check_branch
          %436 = sbr.rel (%p434) target = $region16
        $region15: #{tpu_custom_call.1} parent=11 // pred_region
          _
        $region16: #{tpu_custom_call.1} parent=11 // pred_fallthru
          _
        // Predicated region
        $region17: #{tpu_custom_call.1} parent=11 // pred_check
          %p437 = pneg %p120
        $region18: #{tpu_custom_call.1} parent=11 // pred_check_branch
          %439 = sbr.rel (%p437) target = $region20
        $region19: #{tpu_custom_call.1} parent=11 // pred_region
          _
        $region20: #{tpu_custom_call.1} parent=11 // pred_fallthru
          _
        // Predicated region
        $region21: #{tpu_custom_call.1} parent=11 // pred_check
          %p440 = pneg %p141
        $region22: #{tpu_custom_call.1} parent=11 // pred_check_branch
          %442 = sbr.rel (%p440) target = $region24
        $region23: #{tpu_custom_call.1} parent=11 // pred_region
          _
        $region24: #{tpu_custom_call.1} parent=11 // pred_fallthru
          _
        // Predicated region
        $region25: #{tpu_custom_call.1} parent=11 // pred_check
          %p443 = pneg %p162
        $region26: #{tpu_custom_call.1} parent=11 // pred_check_branch
          %445 = sbr.rel (%p443) target = $region28
        $region27: #{tpu_custom_call.1} parent=11 // pred_region
          _
        $region28: #{tpu_custom_call.1} parent=11 // pred_fallthru
          _
        // Predicated region
        $region29: #{tpu_custom_call.1} parent=11 // pred_check
          %p446 = pneg %p183
        $region30: #{tpu_custom_call.1} parent=11 // pred_check_branch
          %448 = sbr.rel (%p446) target = $region32
        $region31: #{tpu_custom_call.1} parent=11 // pred_region
          _
        $region32: #{tpu_custom_call.1} parent=11 // pred_fallthru
          _
        // Predicated region
        $region33: #{tpu_custom_call.1} parent=11 // pred_check
          %p449 = pneg %p204
        $region34: #{tpu_custom_call.1} parent=11 // pred_check_branch
          %451 = sbr.rel (%p449) target = $region36
        $region35: #{tpu_custom_call.1} parent=11 // pred_region
          _
        $region36: #{tpu_custom_call.1} parent=11 // pred_fallthru
          _
        // Predicated region
        $region37: #{tpu_custom_call.1} parent=11 // pred_check
          %p452 = pneg %p225
        $region38: #{tpu_custom_call.1} parent=11 // pred_check_branch
          %454 = sbr.rel (%p452) target = $region40
        $region39: #{tpu_custom_call.1} parent=11 // pred_region
          _
        $region40: #{tpu_custom_call.1} parent=11 // pred_fallthru
          _
        // Predicated region
        $region41: #{tpu_custom_call.1} parent=11 // pred_check
          %p455 = pneg %p246
        $region42: #{tpu_custom_call.1} parent=11 // pred_check_branch
          %457 = sbr.rel (%p455) target = $region44
        $region43: #{tpu_custom_call.1} parent=11 // pred_region
          _
        $region44: #{tpu_custom_call.1} parent=11 // pred_fallthru
          _
        // Predicated region
        $region45: #{tpu_custom_call.1} parent=11 // pred_check
          %p458 = pneg %p267
        $region46: #{tpu_custom_call.1} parent=11 // pred_check_branch
          %460 = sbr.rel (%p458) target = $region48
        $region47: #{tpu_custom_call.1} parent=11 // pred_region
          _
        $region48: #{tpu_custom_call.1} parent=11 // pred_fallthru
          _
        // Predicated region
        $region49: #{tpu_custom_call.1} parent=11 // pred_check
          %p461 = pneg %p288
        $region50: #{tpu_custom_call.1} parent=11 // pred_check_branch
          %463 = sbr.rel (%p461) target = $region52
        $region51: #{tpu_custom_call.1} parent=11 // pred_region
          _
        $region52: #{tpu_custom_call.1} parent=11 // pred_fallthru
          _
        // Predicated region
        $region53: #{tpu_custom_call.1} parent=11 // pred_check
          %p464 = pneg %p309
        $region54: #{tpu_custom_call.1} parent=11 // pred_check_branch
          %466 = sbr.rel (%p464) target = $region56
        $region55: #{tpu_custom_call.1} parent=11 // pred_region
          _
        $region56: #{tpu_custom_call.1} parent=11 // pred_fallthru
          _
        // Predicated region
        $region57: #{tpu_custom_call.1} parent=11 // pred_check
          %p467 = pneg %p330
        $region58: #{tpu_custom_call.1} parent=11 // pred_check_branch
          %469 = sbr.rel (%p467) target = $region60
        $region59: #{tpu_custom_call.1} parent=11 // pred_region
          _
        $region60: #{tpu_custom_call.1} parent=11 // pred_fallthru
          _
        // Predicated region
        $region61: #{tpu_custom_call.1} parent=11 // pred_check
          %p470 = pneg %p351
        $region62: #{tpu_custom_call.1} parent=11 // pred_check_branch
          %472 = sbr.rel (%p470) target = $region64
        $region63: #{tpu_custom_call.1} parent=11 // pred_region
          _
        $region64: #{tpu_custom_call.1} parent=11 // pred_fallthru
          _
        // Predicated region
        $region65: #{tpu_custom_call.1} parent=11 // pred_check
          %p473 = pneg %p372
        $region66: #{tpu_custom_call.1} parent=11 // pred_check_branch
          %475 = sbr.rel (%p473) target = $region68
        $region67: #{tpu_custom_call.1} parent=11 // pred_region
          _
        $region68: #{tpu_custom_call.1} parent=11 // pred_fallthru
          _
        // Predicated region
        $region69: #{tpu_custom_call.1} parent=11 // pred_check
          %p476 = pneg %p393
        $region70: #{tpu_custom_call.1} parent=11 // pred_check_branch
          %478 = sbr.rel (%p476) target = $region72
        $region71: #{tpu_custom_call.1} parent=11 // pred_region
          _
        $region72: #{tpu_custom_call.1} parent=11 // pred_fallthru
          _
      $region12: #{tpu_custom_call.1} parent=5 // pred_fallthru
        _
      %p479 = scmp.lt.s32.totalorder %s26, 2
      // Predicated region
      $region73: #{tpu_custom_call.1} parent=5 // pred_check
        %p480 = pneg %p479
      $region74: #{tpu_custom_call.1} parent=5 // pred_check_branch
        %482 = sbr.rel (%p480) target = $region76
      $region75: #{tpu_custom_call.1} parent=5 // pred_region
        // Predicated region
        $region77: #{tpu_custom_call.1} parent=75 // pred_check
          %p483 = pneg %p46
        $region78: #{tpu_custom_call.1} parent=75 // pred_check_branch
          %485 = sbr.rel (%p483) target = $region80
        $region79: #{tpu_custom_call.1} parent=75 // pred_region
          %p486 = scmp.lt.s32.totalorder %s26, 1
          %s487 = scalar_select %p486, %s26, 1
          %s488 = smul.addr %s487, 8
          %s489 = scalar_lea.vmem %s0, %s488
        $region80: #{tpu_custom_call.1} parent=75 // pred_fallthru
          _
        // Predicated region
        $region81: #{tpu_custom_call.1} parent=75 // pred_check
          %p490 = pneg %p72
        $region82: #{tpu_custom_call.1} parent=75 // pred_check_branch
          %492 = sbr.rel (%p490) target = $region84
        $region83: #{tpu_custom_call.1} parent=75 // pred_region
          %p493 = scmp.lt.s32.totalorder %s26, 1
          %s494 = scalar_select %p493, %s26, 1
          %s495 = scalar_lea.vmem %s1, %s494
        $region84: #{tpu_custom_call.1} parent=75 // pred_fallthru
          _
      $region76: #{tpu_custom_call.1} parent=5 // pred_fallthru
        _
      %p496 = scmp.le.s32.totalorder 1, %s26
      %p497 = scmp.lt.s32.totalorder %s26, 3
      %p498 = pnand %p496, %p497
      %p499 = pneg %p498
      // Predicated region
      $region85: #{tpu_custom_call.1} parent=5 // pred_check
        _
      $region86: #{tpu_custom_call.1} parent=5 // pred_check_branch
        %501 = sbr.rel (%p498) target = $region88
      $region87: #{tpu_custom_call.1} parent=5 // pred_region
        %s502 = ssub.s32 %s26, 1
        %p503 = scmp.lt.s32.totalorder %s31, 1
        %s504 = scalar_select %p503, %s31, 1
        %s505 = smul.addr %s504, 8
        %s506 = scalar_lea.vmem %s0, %s505
        %p507 = pneg %p52
        %p508 = pneg %p49
        %p509 = scmp.lt.s32.totalorder %s31, 1
        %s510 = scalar_select %p509, %s31, 1
        %s511 = scalar_lea.vmem %s1, %s510
        %p512 = pneg %p78
        %p513 = pneg %p75
        %p514 = pneg %p99
        %p515 = pneg %p96
        %p516 = pneg %p120
        %p517 = pneg %p117
        %p518 = pneg %p141
        %p519 = pneg %p138
        %p520 = pneg %p162
        %p521 = pneg %p159
        %p522 = pneg %p183
        %p523 = pneg %p180
        %p524 = pneg %p204
        %p525 = pneg %p201
        %p526 = pneg %p225
        %p527 = pneg %p222
        %p528 = pneg %p246
        %p529 = pneg %p243
        %p530 = pneg %p267
        %p531 = pneg %p264
        %p532 = pneg %p288
        %p533 = pneg %p285
        %p534 = pneg %p309
        %p535 = pneg %p306
        %p536 = pneg %p330
        %p537 = pneg %p327
        %p538 = pneg %p351
        %p539 = pneg %p348
        %p540 = pneg %p372
        %p541 = pneg %p369
        %p542 = pneg %p393
        %p543 = pneg %p390
        %p544 = pneg %p419
        %p545 = pneg %p416
        %s546 = sand.u32 %s406, 1
        %s547 = scalar_lea.sflag [#allocation3], %s546
        %s548 = sand.u32 %s406, 1
        %s549 = scalar_lea.vmem [#allocation2], %s548
        %p550 = scmp.lt.s32.totalorder %s31, 1
        %s551 = scalar_select %p550, %s31, 1
        %s552 = smul.addr %s551, 8
        %s553 = scalar_lea.vmem %s0, %s552
        %p554 = scmp.lt.s32.totalorder %s31, 1
        %s555 = scalar_select %p554, %s31, 1
        %s556 = scalar_lea.vmem %s1, %s555
        %v557 = vld [vmem:[%s553] sm:$0xff]
        %v558 = vld [vmem:[%s556] sm:$0x1]
        %v559 = vld [vmem:[%s2] sm:$0xff]
        %v560 = vld [vmem:[%s2 + $0x8] sm:$0xff]
        %v561 = vld [vmem:[%s3] sm:$0x1]
        %v563 = vlaneseq
        %v564 = vshrl.u32 %v563, 7
        %v565 = vsub.s32 0, %v564
        %v566 = vrot.slane %v561, %v565
        %vm568 = vcmask 130048
        %v570 = vsel %vm568, %v557, 0
        %572 = vmatprep.subr.mxu0 0.0
        %573 = vmatpush1.msra.mxu0 %v559
        %574 = vmatprep.subr.mxu0 0.0
        %575 = vmatpush1.msra.mxu0 %v560
        %576 = vmatprep.subr.mxu0 0.0
        %577 = vmatpush1.msra.mxu0 0.0
        %578 = vmatprep.subr.mxu0 0.0
        %579 = vmatpush1.msra.mxu0 0.0
        %580 = vmatprep.subr.mxu0 0.0
        %581 = vmatpush1.msra.mxu0 0.0
        %582 = vmatprep.subr.mxu0 0.0
        %583 = vmatpush1.msra.mxu0 0.0
        %584 = vmatprep.subr.mxu0 0.0
        %585 = vmatpush1.msra.mxu0 0.0
        %586 = vmatprep.subr.mxu0 0.0
        %587 = vmatpush1.msra.mxu0 0.0
        %588 = vmatprep.subr.mxu0 0.0
        %589 = vmatpush1.msra.mxu0 0.0
        %590 = vmatprep.subr.mxu0 0.0
        %591 = vmatpush1.msra.mxu0 0.0
        %592 = vmatprep.subr.mxu0 0.0
        %593 = vmatpush1.msra.mxu0 0.0
        %594 = vmatprep.subr.mxu0 0.0
        %595 = vmatpush1.msra.mxu0 0.0
        %596 = vmatprep.subr.mxu0 0.0
        %597 = vmatpush1.msra.mxu0 0.0
        %598 = vmatprep.subr.mxu0 0.0
        %599 = vmatpush1.msra.mxu0 0.0
        %600 = vmatprep.subr.mxu0 0.0
        %601 = vmatpush1.msra.mxu0 0.0
        %602 = vmatprep.subr.mxu0 0.0
        %603 = vmatpush1.msra.mxu0 0.0
        %604 = vmatprep.subr.mxu0 0.0
        %605 = vmatpush1.msra.mxu0 0.0
        %606 = vmatprep.subr.mxu0 0.0
        %607 = vmatpush1.msra.mxu0 0.0
        %608 = vmatprep.subr.mxu0 0.0
        %609 = vmatpush1.msra.mxu0 0.0
        %610 = vmatprep.subr.mxu0 0.0
        %611 = vmatpush1.msra.mxu0 0.0
        %612 = vmatprep.subr.mxu0 0.0
        %613 = vmatpush1.msra.mxu0 0.0
        %614 = vmatprep.subr.mxu0 0.0
        %615 = vmatpush1.msra.mxu0 0.0
        %616 = vmatprep.subr.mxu0 0.0
        %617 = vmatpush1.msra.mxu0 0.0
        %618 = vmatprep.subr.mxu0 0.0
        %619 = vmatpush1.msra.mxu0 0.0
        %620 = vmatprep.subr.mxu0 0.0
        %621 = vmatpush1.msra.mxu0 0.0
        %622 = vmatprep.subr.mxu0 0.0
        %623 = vmatpush1.msra.mxu0 0.0
        %624 = vmatprep.subr.mxu0 0.0
        %625 = vmatpush1.msra.mxu0 0.0
        %626 = vmatprep.subr.mxu0 0.0
        %627 = vmatpush1.msra.mxu0 0.0
        %628 = vmatprep.subr.mxu0 0.0
        %629 = vmatpush1.msra.mxu0 0.0
        %630 = vmatprep.subr.mxu0 0.0
        %631 = vmatpush1.msra.mxu0 0.0
        %632 = vmatprep.subr.mxu0 0.0
        %633 = vmatpush1.msra.mxu0 0.0
        %634 = vmatprep.subr.mxu0 0.0
        %635 = vmatpush1.msra.mxu0 0.0
        %636 = vmatprep.mubr.f32.mxu0 0.0
        %637 = vmatmul.mubr.f32.gmra.mrb[0].mxu0 %v570
        %v638 = vpop.f32.mrb[0].mxu0
        %v639 = vadd.f32 %v566, %v638
        %v640 = vpop.f32.mrb[0].mxu0
        %641 = vdwg.mxu0
        %v642 = vld [vmem:[%s4] sm:$0xff]
        %v643 = vadd.f32 %v639, %v642
        %v644 = vsel %vm568, %v557, 0.0
        %645 = vadd.xlane.f32.xlu0 %v644
        %v646 = vpop.xlane.xlu0 %645
        %vm647 = vcmp.ne.f32.partialorder %v646, 0.0
        %v648 = vsel %vm647, 1, 0
        %v649 = vcvt.s32.f32 %v648
        %v650 = vld [vmem:[%s5] sm:$0x1]
        %v651 = vld [vmem:[%s6] sm:$0x1]
        %vm652 = vcmask 261120
        %v653 = vsel %vm652, %v643, 0.0
        %654 = vadd.xlane.f32.xlu0 %v653
        %v655 = vpop.xlane.xlu0 %654
        %v656 = vrcp.pop 32.0
        %v657 = vmul.f32 %v655, %v656
        %v658 = vsub.f32 %v643, %v657
        %v659 = vmul.f32 %v658, %v658
        %v660 = vsel %vm652, %v659, 0.0
        %661 = vadd.xlane.f32.xlu0 %v660
        %v662 = vpop.xlane.xlu0 %661
        %v663 = vmul.f32 %v662, %v656
        %v664 = vadd.f32 %v663, 1e-05
        %v665 = vrsqrt.pop %v664
        %v666 = vmul.f32 %v658, %v665
        %v668 = vlaneseq
        %v669 = vshrl.u32 %v668, 7
        %v670 = vsub.s32 0, %v669
        %v671 = vrot.slane %v650, %v670
        %v673 = vmul.f32 %v666, %v671
        %v675 = vlaneseq
        %v676 = vshrl.u32 %v675, 7
        %v677 = vsub.s32 0, %v676
        %v678 = vrot.slane %v651, %v677
        %v680 = vadd.f32 %v673, %v678
        %v681 = vld [vmem:[%s7] sm:$0xff]
        %v682 = vld [vmem:[%s7 + $0x8] sm:$0xff]
        %v683 = vld [vmem:[%s7 + $0x10] sm:$0xff]
        %v684 = vld [vmem:[%s7 + $0x18] sm:$0xff]
        %v685 = vld [vmem:[%s8] sm:$0x1]
        %v687 = vlaneseq
        %v688 = vshrl.u32 %v687, 7
        %v689 = vsub.s32 0, %v688
        %v690 = vrot.slane %v685, %v689
        %v693 = vsel %vm652, %v680, 0
        %695 = vmatprep.subr.mxu0 0.0
        %696 = vmatpush1.msra.mxu0 %v681
        %697 = vmatprep.subr.mxu0 0.0
        %698 = vmatpush1.msra.mxu0 %v682
        %699 = vmatprep.subr.mxu0 0.0
        %700 = vmatpush1.msra.mxu0 %v683
        %701 = vmatprep.subr.mxu0 0.0
        %702 = vmatpush1.msra.mxu0 %v684
        %703 = vmatprep.subr.mxu0 0.0
        %704 = vmatpush1.msra.mxu0 0.0
        %705 = vmatprep.subr.mxu0 0.0
        %706 = vmatpush1.msra.mxu0 0.0
        %707 = vmatprep.subr.mxu0 0.0
        %708 = vmatpush1.msra.mxu0 0.0
        %709 = vmatprep.subr.mxu0 0.0
        %710 = vmatpush1.msra.mxu0 0.0
        %711 = vmatprep.subr.mxu0 0.0
        %712 = vmatpush1.msra.mxu0 0.0
        %713 = vmatprep.subr.mxu0 0.0
        %714 = vmatpush1.msra.mxu0 0.0
        %715 = vmatprep.subr.mxu0 0.0
        %716 = vmatpush1.msra.mxu0 0.0
        %717 = vmatprep.subr.mxu0 0.0
        %718 = vmatpush1.msra.mxu0 0.0
        %719 = vmatprep.subr.mxu0 0.0
        %720 = vmatpush1.msra.mxu0 0.0
        %721 = vmatprep.subr.mxu0 0.0
        %722 = vmatpush1.msra.mxu0 0.0
        %723 = vmatprep.subr.mxu0 0.0
        %724 = vmatpush1.msra.mxu0 0.0
        %725 = vmatprep.subr.mxu0 0.0
        %726 = vmatpush1.msra.mxu0 0.0
        %727 = vmatprep.subr.mxu0 0.0
        %728 = vmatpush1.msra.mxu0 0.0
        %729 = vmatprep.subr.mxu0 0.0
        %730 = vmatpush1.msra.mxu0 0.0
        %731 = vmatprep.subr.mxu0 0.0
        %732 = vmatpush1.msra.mxu0 0.0
        %733 = vmatprep.subr.mxu0 0.0
        %734 = vmatpush1.msra.mxu0 0.0
        %735 = vmatprep.subr.mxu0 0.0
        %736 = vmatpush1.msra.mxu0 0.0
        %737 = vmatprep.subr.mxu0 0.0
        %738 = vmatpush1.msra.mxu0 0.0
        %739 = vmatprep.subr.mxu0 0.0
        %740 = vmatpush1.msra.mxu0 0.0
        %741 = vmatprep.subr.mxu0 0.0
        %742 = vmatpush1.msra.mxu0 0.0
        %743 = vmatprep.subr.mxu0 0.0
        %744 = vmatpush1.msra.mxu0 0.0
        %745 = vmatprep.subr.mxu0 0.0
        %746 = vmatpush1.msra.mxu0 0.0
        %747 = vmatprep.subr.mxu0 0.0
        %748 = vmatpush1.msra.mxu0 0.0
        %749 = vmatprep.subr.mxu0 0.0
        %750 = vmatpush1.msra.mxu0 0.0
        %751 = vmatprep.subr.mxu0 0.0
        %752 = vmatpush1.msra.mxu0 0.0
        %753 = vmatprep.subr.mxu0 0.0
        %754 = vmatpush1.msra.mxu0 0.0
        %755 = vmatprep.subr.mxu0 0.0
        %756 = vmatpush1.msra.mxu0 0.0
        %757 = vmatprep.subr.mxu0 0.0
        %758 = vmatpush1.msra.mxu0 0.0
        %759 = vmatprep.mubr.f32.mxu0 0.0
        %760 = vmatmul.mubr.f32.gmra.mrb[0].mxu0 %v693
        %v761 = vpop.f32.mrb[0].mxu0
        %v762 = vadd.f32 %v690, %v761
        %v763 = vpop.f32.mrb[0].mxu0
        %764 = vdwg.mxu0
        %v765 = vld [vmem:[%s9] sm:$0xff]
        %v766 = vld [vmem:[%s9 + $0x8] sm:$0xff]
        %v767 = vld [vmem:[%s9 + $0x10] sm:$0xff]
        %v768 = vld [vmem:[%s9 + $0x18] sm:$0xff]
        %v769 = vmul.f32 %v762, 0.35355338
        %v771 = vlaneseq
        %v772 = vshrl.u32 %v771, 7
        %v773 = vsub.s32 0, %v772
        %v774 = vrot.slane %v558, %v773
        %777 = vrot.lane.b32.xlu0 %v762, 96
        %v778 = vpop.permute.xlu0 %777
        %vm779 = vcmask 64512
        %v781 = vsel %vm779, %v769, 0
        %v783 = vsel %vm779, %v778, 0
        %785 = vmatprep.subr.mxu0 0.0
        %786 = vmatpush1.xpose.msra.mxu0 %v783
        %787 = vmatprep.subr.mxu0 0.0
        %788 = vmatpush1.xpose.msra.mxu0 0.0
        %789 = vmatprep.subr.mxu0 0.0
        %790 = vmatpush1.xpose.msra.mxu0 0.0
        %791 = vmatprep.subr.mxu0 0.0
        %792 = vmatpush1.xpose.msra.mxu0 0.0
        %793 = vmatprep.subr.mxu0 0.0
        %794 = vmatpush1.xpose.msra.mxu0 0.0
        %795 = vmatprep.subr.mxu0 0.0
        %796 = vmatpush1.xpose.msra.mxu0 0.0
        %797 = vmatprep.subr.mxu0 0.0
        %798 = vmatpush1.xpose.msra.mxu0 0.0
        %799 = vmatprep.subr.mxu0 0.0
        %800 = vmatpush1.xpose.msra.mxu0 0.0
        %801 = vmatprep.subr.mxu0 0.0
        %802 = vmatpush1.xpose.msra.mxu0 0.0
        %803 = vmatprep.subr.mxu0 0.0
        %804 = vmatpush1.xpose.msra.mxu0 0.0
        %805 = vmatprep.subr.mxu0 0.0
        %806 = vmatpush1.xpose.msra.mxu0 0.0
        %807 = vmatprep.subr.mxu0 0.0
        %808 = vmatpush1.xpose.msra.mxu0 0.0
        %809 = vmatprep.subr.mxu0 0.0
        %810 = vmatpush1.xpose.msra.mxu0 0.0
        %811 = vmatprep.subr.mxu0 0.0
        %812 = vmatpush1.xpose.msra.mxu0 0.0
        %813 = vmatprep.subr.mxu0 0.0
        %814 = vmatpush1.xpose.msra.mxu0 0.0
        %815 = vmatprep.subr.mxu0 0.0
        %816 = vmatpush1.xpose.msra.mxu0 0.0
        %817 = vmatprep.subr.mxu0 0.0
        %818 = vmatpush1.xpose.msra.mxu0 0.0
        %819 = vmatprep.subr.mxu0 0.0
        %820 = vmatpush1.xpose.msra.mxu0 0.0
        %821 = vmatprep.subr.mxu0 0.0
        %822 = vmatpush1.xpose.msra.mxu0 0.0
        %823 = vmatprep.subr.mxu0 0.0
        %824 = vmatpush1.xpose.msra.mxu0 0.0
        %825 = vmatprep.subr.mxu0 0.0
        %826 = vmatpush1.xpose.msra.mxu0 0.0
        %827 = vmatprep.subr.mxu0 0.0
        %828 = vmatpush1.xpose.msra.mxu0 0.0
        %829 = vmatprep.subr.mxu0 0.0
        %830 = vmatpush1.xpose.msra.mxu0 0.0
        %831 = vmatprep.subr.mxu0 0.0
        %832 = vmatpush1.xpose.msra.mxu0 0.0
        %833 = vmatprep.subr.mxu0 0.0
        %834 = vmatpush1.xpose.msra.mxu0 0.0
        %835 = vmatprep.subr.mxu0 0.0
        %836 = vmatpush1.xpose.msra.mxu0 0.0
        %837 = vmatprep.subr.mxu0 0.0
        %838 = vmatpush1.xpose.msra.mxu0 0.0
        %839 = vmatprep.subr.mxu0 0.0
        %840 = vmatpush1.xpose.msra.mxu0 0.0
        %841 = vmatprep.subr.mxu0 0.0
        %842 = vmatpush1.xpose.msra.mxu0 0.0
        %843 = vmatprep.subr.mxu0 0.0
        %844 = vmatpush1.xpose.msra.mxu0 0.0
        %845 = vmatprep.subr.mxu0 0.0
        %846 = vmatpush1.xpose.msra.mxu0 0.0
        %847 = vmatprep.subr.mxu0 0.0
        %848 = vmatpush1.xpose.msra.mxu0 0.0
        %849 = vmatprep.mubr.f32.mxu0 0.0
        %850 = vmatmul.mubr.f32.gmra.mrb[0].mxu0 %v781
        %v851 = vpop.f32.mrb[0].mxu0
        %v852 = vadd.f32 %v774, %v851
        %v853 = vpop.f32.mrb[0].mxu0
        %854 = vdwg.mxu0
        %v855 = vsel %vm779, %v852, -inf
        %856 = vmax.xlane.f32.xlu0 %v855
        %v857 = vpop.xlane.xlu0 %856
        %v858 = vsub.f32 %v852, %v857
        %v859 = vmul.f32 %v858, 1.442695
        %v860 = vpow.pop %v859
        %v861 = vsel %vm779, %v860, 0.0
        %862 = vadd.xlane.f32.xlu0 %v861
        %v863 = vpop.xlane.xlu0 %862
        %v864 = vrcp.pop %v863
        %v865 = vmul.f32 %v860, %v864
        %866 = vrot.lane.b32.xlu0 %v762, 64
        %v867 = vpop.permute.xlu0 %866
        %v870 = vsel %vm779, %v865, 0
        %872 = vmatprep.subr.mxu0 0.0
        %873 = vmatpush1.msra.mxu0 %v867
        %874 = vmatprep.subr.mxu0 0.0
        %875 = vmatpush1.msra.mxu0 0.0
        %876 = vmatprep.subr.mxu0 0.0
        %877 = vmatpush1.msra.mxu0 0.0
        %878 = vmatprep.subr.mxu0 0.0
        %879 = vmatpush1.msra.mxu0 0.0
        %880 = vmatprep.subr.mxu0 0.0
        %881 = vmatpush1.msra.mxu0 0.0
        %882 = vmatprep.subr.mxu0 0.0
        %883 = vmatpush1.msra.mxu0 0.0
        %884 = vmatprep.subr.mxu0 0.0
        %885 = vmatpush1.msra.mxu0 0.0
        %886 = vmatprep.subr.mxu0 0.0
        %887 = vmatpush1.msra.mxu0 0.0
        %888 = vmatprep.subr.mxu0 0.0
        %889 = vmatpush1.msra.mxu0 0.0
        %890 = vmatprep.subr.mxu0 0.0
        %891 = vmatpush1.msra.mxu0 0.0
        %892 = vmatprep.subr.mxu0 0.0
        %893 = vmatpush1.msra.mxu0 0.0
        %894 = vmatprep.subr.mxu0 0.0
        %895 = vmatpush1.msra.mxu0 0.0
        %896 = vmatprep.subr.mxu0 0.0
        %897 = vmatpush1.msra.mxu0 0.0
        %898 = vmatprep.subr.mxu0 0.0
        %899 = vmatpush1.msra.mxu0 0.0
        %900 = vmatprep.subr.mxu0 0.0
        %901 = vmatpush1.msra.mxu0 0.0
        %902 = vmatprep.subr.mxu0 0.0
        %903 = vmatpush1.msra.mxu0 0.0
        %904 = vmatprep.subr.mxu0 0.0
        %905 = vmatpush1.msra.mxu0 0.0
        %906 = vmatprep.subr.mxu0 0.0
        %907 = vmatpush1.msra.mxu0 0.0
        %908 = vmatprep.subr.mxu0 0.0
        %909 = vmatpush1.msra.mxu0 0.0
        %910 = vmatprep.subr.mxu0 0.0
        %911 = vmatpush1.msra.mxu0 0.0
        %912 = vmatprep.subr.mxu0 0.0
        %913 = vmatpush1.msra.mxu0 0.0
        %914 = vmatprep.subr.mxu0 0.0
        %915 = vmatpush1.msra.mxu0 0.0
        %916 = vmatprep.subr.mxu0 0.0
        %917 = vmatpush1.msra.mxu0 0.0
        %918 = vmatprep.subr.mxu0 0.0
        %919 = vmatpush1.msra.mxu0 0.0
        %920 = vmatprep.subr.mxu0 0.0
        %921 = vmatpush1.msra.mxu0 0.0
        %922 = vmatprep.subr.mxu0 0.0
        %923 = vmatpush1.msra.mxu0 0.0
        %924 = vmatprep.subr.mxu0 0.0
        %925 = vmatpush1.msra.mxu0 0.0
        %926 = vmatprep.subr.mxu0 0.0
        %927 = vmatpush1.msra.mxu0 0.0
        %928 = vmatprep.subr.mxu0 0.0
        %929 = vmatpush1.msra.mxu0 0.0
        %930 = vmatprep.subr.mxu0 0.0
        %931 = vmatpush1.msra.mxu0 0.0
        %932 = vmatprep.subr.mxu0 0.0
        %933 = vmatpush1.msra.mxu0 0.0
        %934 = vmatprep.subr.mxu0 0.0
        %935 = vmatpush1.msra.mxu0 0.0
        %936 = vmatprep.mubr.f32.mxu0 0.0
        %937 = vmatmul.mubr.f32.gmra.mrb[0].mxu0 %v870
        %v938 = vpop.f32.mrb[0].mxu0
        %v939 = vadd.f32 0.0, %v938
        %v940 = vpop.f32.mrb[0].mxu0
        %941 = vdwg.mxu0
        %942 = vrot.lane.b32.xlu0 %v769, 120
        %v943 = vpop.permute.xlu0 %942
        %944 = vrot.lane.b32.xlu0 %v762, 88
        %v945 = vpop.permute.xlu0 %944
        %v946 = vsel %vm779, %v943, 0
        %v948 = vsel %vm779, %v945, 0
        %950 = vmatprep.subr.mxu0 0.0
        %951 = vmatpush1.xpose.msra.mxu0 %v948
        %952 = vmatprep.subr.mxu0 0.0
        %953 = vmatpush1.xpose.msra.mxu0 0.0
        %954 = vmatprep.subr.mxu0 0.0
        %955 = vmatpush1.xpose.msra.mxu0 0.0
        %956 = vmatprep.subr.mxu0 0.0
        %957 = vmatpush1.xpose.msra.mxu0 0.0
        %958 = vmatprep.subr.mxu0 0.0
        %959 = vmatpush1.xpose.msra.mxu0 0.0
        %960 = vmatprep.subr.mxu0 0.0
        %961 = vmatpush1.xpose.msra.mxu0 0.0
        %962 = vmatprep.subr.mxu0 0.0
        %963 = vmatpush1.xpose.msra.mxu0 0.0
        %964 = vmatprep.subr.mxu0 0.0
        %965 = vmatpush1.xpose.msra.mxu0 0.0
        %966 = vmatprep.subr.mxu0 0.0
        %967 = vmatpush1.xpose.msra.mxu0 0.0
        %968 = vmatprep.subr.mxu0 0.0
        %969 = vmatpush1.xpose.msra.mxu0 0.0
        %970 = vmatprep.subr.mxu0 0.0
        %971 = vmatpush1.xpose.msra.mxu0 0.0
        %972 = vmatprep.subr.mxu0 0.0
        %973 = vmatpush1.xpose.msra.mxu0 0.0
        %974 = vmatprep.subr.mxu0 0.0
        %975 = vmatpush1.xpose.msra.mxu0 0.0
        %976 = vmatprep.subr.mxu0 0.0
        %977 = vmatpush1.xpose.msra.mxu0 0.0
        %978 = vmatprep.subr.mxu0 0.0
        %979 = vmatpush1.xpose.msra.mxu0 0.0
        %980 = vmatprep.subr.mxu0 0.0
        %981 = vmatpush1.xpose.msra.mxu0 0.0
        %982 = vmatprep.subr.mxu0 0.0
        %983 = vmatpush1.xpose.msra.mxu0 0.0
        %984 = vmatprep.subr.mxu0 0.0
        %985 = vmatpush1.xpose.msra.mxu0 0.0
        %986 = vmatprep.subr.mxu0 0.0
        %987 = vmatpush1.xpose.msra.mxu0 0.0
        %988 = vmatprep.subr.mxu0 0.0
        %989 = vmatpush1.xpose.msra.mxu0 0.0
        %990 = vmatprep.subr.mxu0 0.0
        %991 = vmatpush1.xpose.msra.mxu0 0.0
        %992 = vmatprep.subr.mxu0 0.0
        %993 = vmatpush1.xpose.msra.mxu0 0.0
        %994 = vmatprep.subr.mxu0 0.0
        %995 = vmatpush1.xpose.msra.mxu0 0.0
        %996 = vmatprep.subr.mxu0 0.0
        %997 = vmatpush1.xpose.msra.mxu0 0.0
        %998 = vmatprep.subr.mxu0 0.0
        %999 = vmatpush1.xpose.msra.mxu0 0.0
        %1000 = vmatprep.subr.mxu0 0.0
        %1001 = vmatpush1.xpose.msra.mxu0 0.0
        %1002 = vmatprep.subr.mxu0 0.0
        %1003 = vmatpush1.xpose.msra.mxu0 0.0
        %1004 = vmatprep.subr.mxu0 0.0
        %1005 = vmatpush1.xpose.msra.mxu0 0.0
        %1006 = vmatprep.subr.mxu0 0.0
        %1007 = vmatpush1.xpose.msra.mxu0 0.0
        %1008 = vmatprep.subr.mxu0 0.0
        %1009 = vmatpush1.xpose.msra.mxu0 0.0
        %1010 = vmatprep.subr.mxu0 0.0
        %1011 = vmatpush1.xpose.msra.mxu0 0.0
        %1012 = vmatprep.subr.mxu0 0.0
        %1013 = vmatpush1.xpose.msra.mxu0 0.0
        %1014 = vmatprep.mubr.f32.mxu0 0.0
        %1015 = vmatmul.mubr.f32.gmra.mrb[0].mxu0 %v946
        %v1016 = vpop.f32.mrb[0].mxu0
        %v1017 = vadd.f32 %v774, %v1016
        %v1018 = vpop.f32.mrb[0].mxu0
        %1019 = vdwg.mxu0
        %v1020 = vsel %vm779, %v1017, -inf
        %1021 = vmax.xlane.f32.xlu0 %v1020
        %v1022 = vpop.xlane.xlu0 %1021
        %v1023 = vsub.f32 %v1017, %v1022
        %v1024 = vmul.f32 %v1023, 1.442695
        %v1025 = vpow.pop %v1024
        %v1026 = vsel %vm779, %v1025, 0.0
        %1027 = vadd.xlane.f32.xlu0 %v1026
        %v1028 = vpop.xlane.xlu0 %1027
        %v1029 = vrcp.pop %v1028
        %v1030 = vmul.f32 %v1025, %v1029
        %1031 = vrot.lane.b32.xlu0 %v762, 56
        %v1032 = vpop.permute.xlu0 %1031
        %v1035 = vsel %vm779, %v1030, 0
        %1037 = vmatprep.subr.mxu0 0.0
        %1038 = vmatpush1.msra.mxu0 %v1032
        %1039 = vmatprep.subr.mxu0 0.0
        %1040 = vmatpush1.msra.mxu0 0.0
        %1041 = vmatprep.subr.mxu0 0.0
        %1042 = vmatpush1.msra.mxu0 0.0
        %1043 = vmatprep.subr.mxu0 0.0
        %1044 = vmatpush1.msra.mxu0 0.0
        %1045 = vmatprep.subr.mxu0 0.0
        %1046 = vmatpush1.msra.mxu0 0.0
        %1047 = vmatprep.subr.mxu0 0.0
        %1048 = vmatpush1.msra.mxu0 0.0
        %1049 = vmatprep.subr.mxu0 0.0
        %1050 = vmatpush1.msra.mxu0 0.0
        %1051 = vmatprep.subr.mxu0 0.0
        %1052 = vmatpush1.msra.mxu0 0.0
        %1053 = vmatprep.subr.mxu0 0.0
        %1054 = vmatpush1.msra.mxu0 0.0
        %1055 = vmatprep.subr.mxu0 0.0
        %1056 = vmatpush1.msra.mxu0 0.0
        %1057 = vmatprep.subr.mxu0 0.0
        %1058 = vmatpush1.msra.mxu0 0.0
        %1059 = vmatprep.subr.mxu0 0.0
        %1060 = vmatpush1.msra.mxu0 0.0
        %1061 = vmatprep.subr.mxu0 0.0
        %1062 = vmatpush1.msra.mxu0 0.0
        %1063 = vmatprep.subr.mxu0 0.0
        %1064 = vmatpush1.msra.mxu0 0.0
        %1065 = vmatprep.subr.mxu0 0.0
        %1066 = vmatpush1.msra.mxu0 0.0
        %1067 = vmatprep.subr.mxu0 0.0
        %1068 = vmatpush1.msra.mxu0 0.0
        %1069 = vmatprep.subr.mxu0 0.0
        %1070 = vmatpush1.msra.mxu0 0.0
        %1071 = vmatprep.subr.mxu0 0.0
        %1072 = vmatpush1.msra.mxu0 0.0
        %1073 = vmatprep.subr.mxu0 0.0
        %1074 = vmatpush1.msra.mxu0 0.0
        %1075 = vmatprep.subr.mxu0 0.0
        %1076 = vmatpush1.msra.mxu0 0.0
        %1077 = vmatprep.subr.mxu0 0.0
        %1078 = vmatpush1.msra.mxu0 0.0
        %1079 = vmatprep.subr.mxu0 0.0
        %1080 = vmatpush1.msra.mxu0 0.0
        %1081 = vmatprep.subr.mxu0 0.0
        %1082 = vmatpush1.msra.mxu0 0.0
        %1083 = vmatprep.subr.mxu0 0.0
        %1084 = vmatpush1.msra.mxu0 0.0
        %1085 = vmatprep.subr.mxu0 0.0
        %1086 = vmatpush1.msra.mxu0 0.0
        %1087 = vmatprep.subr.mxu0 0.0
        %1088 = vmatpush1.msra.mxu0 0.0
        %1089 = vmatprep.subr.mxu0 0.0
        %1090 = vmatpush1.msra.mxu0 0.0
        %1091 = vmatprep.subr.mxu0 0.0
        %1092 = vmatpush1.msra.mxu0 0.0
        %1093 = vmatprep.subr.mxu0 0.0
        %1094 = vmatpush1.msra.mxu0 0.0
        %1095 = vmatprep.subr.mxu0 0.0
        %1096 = vmatpush1.msra.mxu0 0.0
        %1097 = vmatprep.subr.mxu0 0.0
        %1098 = vmatpush1.msra.mxu0 0.0
        %1099 = vmatprep.subr.mxu0 0.0
        %1100 = vmatpush1.msra.mxu0 0.0
        %1101 = vmatprep.mubr.f32.mxu0 0.0
        %1102 = vmatmul.mubr.f32.gmra.mrb[0].mxu0 %v1035
        %v1103 = vpop.f32.mrb[0].mxu0
        %v1104 = vadd.f32 0.0, %v1103
        %v1105 = vpop.f32.mrb[0].mxu0
        %1106 = vdwg.mxu0
        %v1108 = vsel %vm779, %v1104, 0
        %1110 = vmatprep.subr.mxu0 0.0
        %1111 = vmatpush1.msra.mxu0 %v766
        %1112 = vmatprep.subr.mxu0 0.0
        %1113 = vmatpush1.msra.mxu0 0.0
        %1114 = vmatprep.subr.mxu0 0.0
        %1115 = vmatpush1.msra.mxu0 0.0
        %1116 = vmatprep.subr.mxu0 0.0
        %1117 = vmatpush1.msra.mxu0 0.0
        %1118 = vmatprep.subr.mxu0 0.0
        %1119 = vmatpush1.msra.mxu0 0.0
        %1120 = vmatprep.subr.mxu0 0.0
        %1121 = vmatpush1.msra.mxu0 0.0
        %1122 = vmatprep.subr.mxu0 0.0
        %1123 = vmatpush1.msra.mxu0 0.0
        %1124 = vmatprep.subr.mxu0 0.0
        %1125 = vmatpush1.msra.mxu0 0.0
        %1126 = vmatprep.subr.mxu0 0.0
        %1127 = vmatpush1.msra.mxu0 0.0
        %1128 = vmatprep.subr.mxu0 0.0
        %1129 = vmatpush1.msra.mxu0 0.0
        %1130 = vmatprep.subr.mxu0 0.0
        %1131 = vmatpush1.msra.mxu0 0.0
        %1132 = vmatprep.subr.mxu0 0.0
        %1133 = vmatpush1.msra.mxu0 0.0
        %1134 = vmatprep.subr.mxu0 0.0
        %1135 = vmatpush1.msra.mxu0 0.0
        %1136 = vmatprep.subr.mxu0 0.0
        %1137 = vmatpush1.msra.mxu0 0.0
        %1138 = vmatprep.subr.mxu0 0.0
        %1139 = vmatpush1.msra.mxu0 0.0
        %1140 = vmatprep.subr.mxu0 0.0
        %1141 = vmatpush1.msra.mxu0 0.0
        %1142 = vmatprep.subr.mxu0 0.0
        %1143 = vmatpush1.msra.mxu0 0.0
        %1144 = vmatprep.subr.mxu0 0.0
        %1145 = vmatpush1.msra.mxu0 0.0
        %1146 = vmatprep.subr.mxu0 0.0
        %1147 = vmatpush1.msra.mxu0 0.0
        %1148 = vmatprep.subr.mxu0 0.0
        %1149 = vmatpush1.msra.mxu0 0.0
        %1150 = vmatprep.subr.mxu0 0.0
        %1151 = vmatpush1.msra.mxu0 0.0
        %1152 = vmatprep.subr.mxu0 0.0
        %1153 = vmatpush1.msra.mxu0 0.0
        %1154 = vmatprep.subr.mxu0 0.0
        %1155 = vmatpush1.msra.mxu0 0.0
        %1156 = vmatprep.subr.mxu0 0.0
        %1157 = vmatpush1.msra.mxu0 0.0
        %1158 = vmatprep.subr.mxu0 0.0
        %1159 = vmatpush1.msra.mxu0 0.0
        %1160 = vmatprep.subr.mxu0 0.0
        %1161 = vmatpush1.msra.mxu0 0.0
        %1162 = vmatprep.subr.mxu0 0.0
        %1163 = vmatpush1.msra.mxu0 0.0
        %1164 = vmatprep.subr.mxu0 0.0
        %1165 = vmatpush1.msra.mxu0 0.0
        %1166 = vmatprep.subr.mxu0 0.0
        %1167 = vmatpush1.msra.mxu0 0.0
        %1168 = vmatprep.subr.mxu0 0.0
        %1169 = vmatpush1.msra.mxu0 0.0
        %1170 = vmatprep.subr.mxu0 0.0
        %1171 = vmatpush1.msra.mxu0 0.0
        %1172 = vmatprep.subr.mxu0 0.0
        %1173 = vmatpush1.msra.mxu0 0.0
        %1174 = vmatprep.mubr.f32.mxu0 0.0
        %1175 = vmatmul.mubr.f32.gmra.mrb[0].mxu0 %v1108
        %v1176 = vpop.f32.mrb[0].mxu0
        %v1177 = vadd.f32 0.0, %v1176
        %v1178 = vpop.f32.mrb[0].mxu0
        %1179 = vdwg.mxu0
        %v1181 = vsel %vm779, %v939, 0
        %1183 = vmatprep.subr.mxu0 0.0
        %1184 = vmatpush1.msra.mxu0 %v765
        %1185 = vmatprep.subr.mxu0 0.0
        %1186 = vmatpush1.msra.mxu0 0.0
        %1187 = vmatprep.subr.mxu0 0.0
        %1188 = vmatpush1.msra.mxu0 0.0
        %1189 = vmatprep.subr.mxu0 0.0
        %1190 = vmatpush1.msra.mxu0 0.0
        %1191 = vmatprep.subr.mxu0 0.0
        %1192 = vmatpush1.msra.mxu0 0.0
        %1193 = vmatprep.subr.mxu0 0.0
        %1194 = vmatpush1.msra.mxu0 0.0
        %1195 = vmatprep.subr.mxu0 0.0
        %1196 = vmatpush1.msra.mxu0 0.0
        %1197 = vmatprep.subr.mxu0 0.0
        %1198 = vmatpush1.msra.mxu0 0.0
        %1199 = vmatprep.subr.mxu0 0.0
        %1200 = vmatpush1.msra.mxu0 0.0
        %1201 = vmatprep.subr.mxu0 0.0
        %1202 = vmatpush1.msra.mxu0 0.0
        %1203 = vmatprep.subr.mxu0 0.0
        %1204 = vmatpush1.msra.mxu0 0.0
        %1205 = vmatprep.subr.mxu0 0.0
        %1206 = vmatpush1.msra.mxu0 0.0
        %1207 = vmatprep.subr.mxu0 0.0
        %1208 = vmatpush1.msra.mxu0 0.0
        %1209 = vmatprep.subr.mxu0 0.0
        %1210 = vmatpush1.msra.mxu0 0.0
        %1211 = vmatprep.subr.mxu0 0.0
        %1212 = vmatpush1.msra.mxu0 0.0
        %1213 = vmatprep.subr.mxu0 0.0
        %1214 = vmatpush1.msra.mxu0 0.0
        %1215 = vmatprep.subr.mxu0 0.0
        %1216 = vmatpush1.msra.mxu0 0.0
        %1217 = vmatprep.subr.mxu0 0.0
        %1218 = vmatpush1.msra.mxu0 0.0
        %1219 = vmatprep.subr.mxu0 0.0
        %1220 = vmatpush1.msra.mxu0 0.0
        %1221 = vmatprep.subr.mxu0 0.0
        %1222 = vmatpush1.msra.mxu0 0.0
        %1223 = vmatprep.subr.mxu0 0.0
        %1224 = vmatpush1.msra.mxu0 0.0
        %1225 = vmatprep.subr.mxu0 0.0
        %1226 = vmatpush1.msra.mxu0 0.0
        %1227 = vmatprep.subr.mxu0 0.0
        %1228 = vmatpush1.msra.mxu0 0.0
        %1229 = vmatprep.subr.mxu0 0.0
        %1230 = vmatpush1.msra.mxu0 0.0
        %1231 = vmatprep.subr.mxu0 0.0
        %1232 = vmatpush1.msra.mxu0 0.0
        %1233 = vmatprep.subr.mxu0 0.0
        %1234 = vmatpush1.msra.mxu0 0.0
        %1235 = vmatprep.subr.mxu0 0.0
        %1236 = vmatpush1.msra.mxu0 0.0
        %1237 = vmatprep.subr.mxu0 0.0
        %1238 = vmatpush1.msra.mxu0 0.0
        %1239 = vmatprep.subr.mxu0 0.0
        %1240 = vmatpush1.msra.mxu0 0.0
        %1241 = vmatprep.subr.mxu0 0.0
        %1242 = vmatpush1.msra.mxu0 0.0
        %1243 = vmatprep.subr.mxu0 0.0
        %1244 = vmatpush1.msra.mxu0 0.0
        %1245 = vmatprep.subr.mxu0 0.0
        %1246 = vmatpush1.msra.mxu0 0.0
        %1247 = vmatprep.mubr.f32.mxu0 0.0
        %1248 = vmatmul.mubr.f32.gmra.mrb[0].mxu0 %v1181
        %v1249 = vpop.f32.mrb[0].mxu0
        %v1250 = vadd.f32 %v1177, %v1249
        %v1251 = vpop.f32.mrb[0].mxu0
        %1252 = vdwg.mxu0
        %1253 = vrot.lane.b32.xlu0 %v769, 112
        %v1254 = vpop.permute.xlu0 %1253
        %1255 = vrot.lane.b32.xlu0 %v762, 80
        %v1256 = vpop.permute.xlu0 %1255
        %v1257 = vsel %vm779, %v1254, 0
        %v1259 = vsel %vm779, %v1256, 0
        %1261 = vmatprep.subr.mxu0 0.0
        %1262 = vmatpush1.xpose.msra.mxu0 %v1259
        %1263 = vmatprep.subr.mxu0 0.0
        %1264 = vmatpush1.xpose.msra.mxu0 0.0
        %1265 = vmatprep.subr.mxu0 0.0
        %1266 = vmatpush1.xpose.msra.mxu0 0.0
        %1267 = vmatprep.subr.mxu0 0.0
        %1268 = vmatpush1.xpose.msra.mxu0 0.0
        %1269 = vmatprep.subr.mxu0 0.0
        %1270 = vmatpush1.xpose.msra.mxu0 0.0
        %1271 = vmatprep.subr.mxu0 0.0
        %1272 = vmatpush1.xpose.msra.mxu0 0.0
        %1273 = vmatprep.subr.mxu0 0.0
        %1274 = vmatpush1.xpose.msra.mxu0 0.0
        %1275 = vmatprep.subr.mxu0 0.0
        %1276 = vmatpush1.xpose.msra.mxu0 0.0
        %1277 = vmatprep.subr.mxu0 0.0
        %1278 = vmatpush1.xpose.msra.mxu0 0.0
        %1279 = vmatprep.subr.mxu0 0.0
        %1280 = vmatpush1.xpose.msra.mxu0 0.0
        %1281 = vmatprep.subr.mxu0 0.0
        %1282 = vmatpush1.xpose.msra.mxu0 0.0
        %1283 = vmatprep.subr.mxu0 0.0
        %1284 = vmatpush1.xpose.msra.mxu0 0.0
        %1285 = vmatprep.subr.mxu0 0.0
        %1286 = vmatpush1.xpose.msra.mxu0 0.0
        %1287 = vmatprep.subr.mxu0 0.0
        %1288 = vmatpush1.xpose.msra.mxu0 0.0
        %1289 = vmatprep.subr.mxu0 0.0
        %1290 = vmatpush1.xpose.msra.mxu0 0.0
        %1291 = vmatprep.subr.mxu0 0.0
        %1292 = vmatpush1.xpose.msra.mxu0 0.0
        %1293 = vmatprep.subr.mxu0 0.0
        %1294 = vmatpush1.xpose.msra.mxu0 0.0
        %1295 = vmatprep.subr.mxu0 0.0
        %1296 = vmatpush1.xpose.msra.mxu0 0.0
        %1297 = vmatprep.subr.mxu0 0.0
        %1298 = vmatpush1.xpose.msra.mxu0 0.0
        %1299 = vmatprep.subr.mxu0 0.0
        %1300 = vmatpush1.xpose.msra.mxu0 0.0
        %1301 = vmatprep.subr.mxu0 0.0
        %1302 = vmatpush1.xpose.msra.mxu0 0.0
        %1303 = vmatprep.subr.mxu0 0.0
        %1304 = vmatpush1.xpose.msra.mxu0 0.0
        %1305 = vmatprep.subr.mxu0 0.0
        %1306 = vmatpush1.xpose.msra.mxu0 0.0
        %1307 = vmatprep.subr.mxu0 0.0
        %1308 = vmatpush1.xpose.msra.mxu0 0.0
        %1309 = vmatprep.subr.mxu0 0.0
        %1310 = vmatpush1.xpose.msra.mxu0 0.0
        %1311 = vmatprep.subr.mxu0 0.0
        %1312 = vmatpush1.xpose.msra.mxu0 0.0
        %1313 = vmatprep.subr.mxu0 0.0
        %1314 = vmatpush1.xpose.msra.mxu0 0.0
        %1315 = vmatprep.subr.mxu0 0.0
        %1316 = vmatpush1.xpose.msra.mxu0 0.0
        %1317 = vmatprep.subr.mxu0 0.0
        %1318 = vmatpush1.xpose.msra.mxu0 0.0
        %1319 = vmatprep.subr.mxu0 0.0
        %1320 = vmatpush1.xpose.msra.mxu0 0.0
        %1321 = vmatprep.subr.mxu0 0.0
        %1322 = vmatpush1.xpose.msra.mxu0 0.0
        %1323 = vmatprep.subr.mxu0 0.0
        %1324 = vmatpush1.xpose.msra.mxu0 0.0
        %1325 = vmatprep.mubr.f32.mxu0 0.0
        %1326 = vmatmul.mubr.f32.gmra.mrb[0].mxu0 %v1257
        %v1327 = vpop.f32.mrb[0].mxu0
        %v1328 = vadd.f32 %v774, %v1327
        %v1329 = vpop.f32.mrb[0].mxu0
        %1330 = vdwg.mxu0
        %v1331 = vsel %vm779, %v1328, -inf
        %1332 = vmax.xlane.f32.xlu0 %v1331
        %v1333 = vpop.xlane.xlu0 %1332
        %v1334 = vsub.f32 %v1328, %v1333
        %v1335 = vmul.f32 %v1334, 1.442695
        %v1336 = vpow.pop %v1335
        %v1337 = vsel %vm779, %v1336, 0.0
        %1338 = vadd.xlane.f32.xlu0 %v1337
        %v1339 = vpop.xlane.xlu0 %1338
        %v1340 = vrcp.pop %v1339
        %v1341 = vmul.f32 %v1336, %v1340
        %1342 = vrot.lane.b32.xlu0 %v762, 48
        %v1343 = vpop.permute.xlu0 %1342
        %v1346 = vsel %vm779, %v1341, 0
        %1348 = vmatprep.subr.mxu0 0.0
        %1349 = vmatpush1.msra.mxu0 %v1343
        %1350 = vmatprep.subr.mxu0 0.0
        %1351 = vmatpush1.msra.mxu0 0.0
        %1352 = vmatprep.subr.mxu0 0.0
        %1353 = vmatpush1.msra.mxu0 0.0
        %1354 = vmatprep.subr.mxu0 0.0
        %1355 = vmatpush1.msra.mxu0 0.0
        %1356 = vmatprep.subr.mxu0 0.0
        %1357 = vmatpush1.msra.mxu0 0.0
        %1358 = vmatprep.subr.mxu0 0.0
        %1359 = vmatpush1.msra.mxu0 0.0
        %1360 = vmatprep.subr.mxu0 0.0
        %1361 = vmatpush1.msra.mxu0 0.0
        %1362 = vmatprep.subr.mxu0 0.0
        %1363 = vmatpush1.msra.mxu0 0.0
        %1364 = vmatprep.subr.mxu0 0.0
        %1365 = vmatpush1.msra.mxu0 0.0
        %1366 = vmatprep.subr.mxu0 0.0
        %1367 = vmatpush1.msra.mxu0 0.0
        %1368 = vmatprep.subr.mxu0 0.0
        %1369 = vmatpush1.msra.mxu0 0.0
        %1370 = vmatprep.subr.mxu0 0.0
        %1371 = vmatpush1.msra.mxu0 0.0
        %1372 = vmatprep.subr.mxu0 0.0
        %1373 = vmatpush1.msra.mxu0 0.0
        %1374 = vmatprep.subr.mxu0 0.0
        %1375 = vmatpush1.msra.mxu0 0.0
        %1376 = vmatprep.subr.mxu0 0.0
        %1377 = vmatpush1.msra.mxu0 0.0
        %1378 = vmatprep.subr.mxu0 0.0
        %1379 = vmatpush1.msra.mxu0 0.0
        %1380 = vmatprep.subr.mxu0 0.0
        %1381 = vmatpush1.msra.mxu0 0.0
        %1382 = vmatprep.subr.mxu0 0.0
        %1383 = vmatpush1.msra.mxu0 0.0
        %1384 = vmatprep.subr.mxu0 0.0
        %1385 = vmatpush1.msra.mxu0 0.0
        %1386 = vmatprep.subr.mxu0 0.0
        %1387 = vmatpush1.msra.mxu0 0.0
        %1388 = vmatprep.subr.mxu0 0.0
        %1389 = vmatpush1.msra.mxu0 0.0
        %1390 = vmatprep.subr.mxu0 0.0
        %1391 = vmatpush1.msra.mxu0 0.0
        %1392 = vmatprep.subr.mxu0 0.0
        %1393 = vmatpush1.msra.mxu0 0.0
        %1394 = vmatprep.subr.mxu0 0.0
        %1395 = vmatpush1.msra.mxu0 0.0
        %1396 = vmatprep.subr.mxu0 0.0
        %1397 = vmatpush1.msra.mxu0 0.0
        %1398 = vmatprep.subr.mxu0 0.0
        %1399 = vmatpush1.msra.mxu0 0.0
        %1400 = vmatprep.subr.mxu0 0.0
        %1401 = vmatpush1.msra.mxu0 0.0
        %1402 = vmatprep.subr.mxu0 0.0
        %1403 = vmatpush1.msra.mxu0 0.0
        %1404 = vmatprep.subr.mxu0 0.0
        %1405 = vmatpush1.msra.mxu0 0.0
        %1406 = vmatprep.subr.mxu0 0.0
        %1407 = vmatpush1.msra.mxu0 0.0
        %1408 = vmatprep.subr.mxu0 0.0
        %1409 = vmatpush1.msra.mxu0 0.0
        %1410 = vmatprep.subr.mxu0 0.0
        %1411 = vmatpush1.msra.mxu0 0.0
        %1412 = vmatprep.mubr.f32.mxu0 0.0
        %1413 = vmatmul.mubr.f32.gmra.mrb[0].mxu0 %v1346
        %v1414 = vpop.f32.mrb[0].mxu0
        %v1415 = vadd.f32 0.0, %v1414
        %v1416 = vpop.f32.mrb[0].mxu0
        %1417 = vdwg.mxu0
        %v1419 = vsel %vm779, %v1415, 0
        %1421 = vmatprep.subr.mxu0 0.0
        %1422 = vmatpush1.msra.mxu0 %v767
        %1423 = vmatprep.subr.mxu0 0.0
        %1424 = vmatpush1.msra.mxu0 0.0
        %1425 = vmatprep.subr.mxu0 0.0
        %1426 = vmatpush1.msra.mxu0 0.0
        %1427 = vmatprep.subr.mxu0 0.0
        %1428 = vmatpush1.msra.mxu0 0.0
        %1429 = vmatprep.subr.mxu0 0.0
        %1430 = vmatpush1.msra.mxu0 0.0
        %1431 = vmatprep.subr.mxu0 0.0
        %1432 = vmatpush1.msra.mxu0 0.0
        %1433 = vmatprep.subr.mxu0 0.0
        %1434 = vmatpush1.msra.mxu0 0.0
        %1435 = vmatprep.subr.mxu0 0.0
        %1436 = vmatpush1.msra.mxu0 0.0
        %1437 = vmatprep.subr.mxu0 0.0
        %1438 = vmatpush1.msra.mxu0 0.0
        %1439 = vmatprep.subr.mxu0 0.0
        %1440 = vmatpush1.msra.mxu0 0.0
        %1441 = vmatprep.subr.mxu0 0.0
        %1442 = vmatpush1.msra.mxu0 0.0
        %1443 = vmatprep.subr.mxu0 0.0
        %1444 = vmatpush1.msra.mxu0 0.0
        %1445 = vmatprep.subr.mxu0 0.0
        %1446 = vmatpush1.msra.mxu0 0.0
        %1447 = vmatprep.subr.mxu0 0.0
        %1448 = vmatpush1.msra.mxu0 0.0
        %1449 = vmatprep.subr.mxu0 0.0
        %1450 = vmatpush1.msra.mxu0 0.0
        %1451 = vmatprep.subr.mxu0 0.0
        %1452 = vmatpush1.msra.mxu0 0.0
        %1453 = vmatprep.subr.mxu0 0.0
        %1454 = vmatpush1.msra.mxu0 0.0
        %1455 = vmatprep.subr.mxu0 0.0
        %1456 = vmatpush1.msra.mxu0 0.0
        %1457 = vmatprep.subr.mxu0 0.0
        %1458 = vmatpush1.msra.mxu0 0.0
        %1459 = vmatprep.subr.mxu0 0.0
        %1460 = vmatpush1.msra.mxu0 0.0
        %1461 = vmatprep.subr.mxu0 0.0
        %1462 = vmatpush1.msra.mxu0 0.0
        %1463 = vmatprep.subr.mxu0 0.0
        %1464 = vmatpush1.msra.mxu0 0.0
        %1465 = vmatprep.subr.mxu0 0.0
        %1466 = vmatpush1.msra.mxu0 0.0
        %1467 = vmatprep.subr.mxu0 0.0
        %1468 = vmatpush1.msra.mxu0 0.0
        %1469 = vmatprep.subr.mxu0 0.0
        %1470 = vmatpush1.msra.mxu0 0.0
        %1471 = vmatprep.subr.mxu0 0.0
        %1472 = vmatpush1.msra.mxu0 0.0
        %1473 = vmatprep.subr.mxu0 0.0
        %1474 = vmatpush1.msra.mxu0 0.0
        %1475 = vmatprep.subr.mxu0 0.0
        %1476 = vmatpush1.msra.mxu0 0.0
        %1477 = vmatprep.subr.mxu0 0.0
        %1478 = vmatpush1.msra.mxu0 0.0
        %1479 = vmatprep.subr.mxu0 0.0
        %1480 = vmatpush1.msra.mxu0 0.0
        %1481 = vmatprep.subr.mxu0 0.0
        %1482 = vmatpush1.msra.mxu0 0.0
        %1483 = vmatprep.subr.mxu0 0.0
        %1484 = vmatpush1.msra.mxu0 0.0
        %1485 = vmatprep.mubr.f32.mxu0 0.0
        %1486 = vmatmul.mubr.f32.gmra.mrb[0].mxu0 %v1419
        %v1487 = vpop.f32.mrb[0].mxu0
        %v1488 = vadd.f32 0.0, %v1487
        %v1489 = vpop.f32.mrb[0].mxu0
        %1490 = vdwg.mxu0
        %v1491 = vadd.f32 %v1250, %v1488
        %1492 = vrot.lane.b32.xlu0 %v769, 104
        %v1493 = vpop.permute.xlu0 %1492
        %1494 = vrot.lane.b32.xlu0 %v762, 72
        %v1495 = vpop.permute.xlu0 %1494
        %v1496 = vsel %vm779, %v1493, 0
        %v1498 = vsel %vm779, %v1495, 0
        %1500 = vmatprep.subr.mxu0 0.0
        %1501 = vmatpush1.xpose.msra.mxu0 %v1498
        %1502 = vmatprep.subr.mxu0 0.0
        %1503 = vmatpush1.xpose.msra.mxu0 0.0
        %1504 = vmatprep.subr.mxu0 0.0
        %1505 = vmatpush1.xpose.msra.mxu0 0.0
        %1506 = vmatprep.subr.mxu0 0.0
        %1507 = vmatpush1.xpose.msra.mxu0 0.0
        %1508 = vmatprep.subr.mxu0 0.0
        %1509 = vmatpush1.xpose.msra.mxu0 0.0
        %1510 = vmatprep.subr.mxu0 0.0
        %1511 = vmatpush1.xpose.msra.mxu0 0.0
        %1512 = vmatprep.subr.mxu0 0.0
        %1513 = vmatpush1.xpose.msra.mxu0 0.0
        %1514 = vmatprep.subr.mxu0 0.0
        %1515 = vmatpush1.xpose.msra.mxu0 0.0
        %1516 = vmatprep.subr.mxu0 0.0
        %1517 = vmatpush1.xpose.msra.mxu0 0.0
        %1518 = vmatprep.subr.mxu0 0.0
        %1519 = vmatpush1.xpose.msra.mxu0 0.0
        %1520 = vmatprep.subr.mxu0 0.0
        %1521 = vmatpush1.xpose.msra.mxu0 0.0
        %1522 = vmatprep.subr.mxu0 0.0
        %1523 = vmatpush1.xpose.msra.mxu0 0.0
        %1524 = vmatprep.subr.mxu0 0.0
        %1525 = vmatpush1.xpose.msra.mxu0 0.0
        %1526 = vmatprep.subr.mxu0 0.0
        %1527 = vmatpush1.xpose.msra.mxu0 0.0
        %1528 = vmatprep.subr.mxu0 0.0
        %1529 = vmatpush1.xpose.msra.mxu0 0.0
        %1530 = vmatprep.subr.mxu0 0.0
        %1531 = vmatpush1.xpose.msra.mxu0 0.0
        %1532 = vmatprep.subr.mxu0 0.0
        %1533 = vmatpush1.xpose.msra.mxu0 0.0
        %1534 = vmatprep.subr.mxu0 0.0
        %1535 = vmatpush1.xpose.msra.mxu0 0.0
        %1536 = vmatprep.subr.mxu0 0.0
        %1537 = vmatpush1.xpose.msra.mxu0 0.0
        %1538 = vmatprep.subr.mxu0 0.0
        %1539 = vmatpush1.xpose.msra.mxu0 0.0
        %1540 = vmatprep.subr.mxu0 0.0
        %1541 = vmatpush1.xpose.msra.mxu0 0.0
        %1542 = vmatprep.subr.mxu0 0.0
        %1543 = vmatpush1.xpose.msra.mxu0 0.0
        %1544 = vmatprep.subr.mxu0 0.0
        %1545 = vmatpush1.xpose.msra.mxu0 0.0
        %1546 = vmatprep.subr.mxu0 0.0
        %1547 = vmatpush1.xpose.msra.mxu0 0.0
        %1548 = vmatprep.subr.mxu0 0.0
        %1549 = vmatpush1.xpose.msra.mxu0 0.0
        %1550 = vmatprep.subr.mxu0 0.0
        %1551 = vmatpush1.xpose.msra.mxu0 0.0
        %1552 = vmatprep.subr.mxu0 0.0
        %1553 = vmatpush1.xpose.msra.mxu0 0.0
        %1554 = vmatprep.subr.mxu0 0.0
        %1555 = vmatpush1.xpose.msra.mxu0 0.0
        %1556 = vmatprep.subr.mxu0 0.0
        %1557 = vmatpush1.xpose.msra.mxu0 0.0
        %1558 = vmatprep.subr.mxu0 0.0
        %1559 = vmatpush1.xpose.msra.mxu0 0.0
        %1560 = vmatprep.subr.mxu0 0.0
        %1561 = vmatpush1.xpose.msra.mxu0 0.0
        %1562 = vmatprep.subr.mxu0 0.0
        %1563 = vmatpush1.xpose.msra.mxu0 0.0
        %1564 = vmatprep.mubr.f32.mxu0 0.0
        %1565 = vmatmul.mubr.f32.gmra.mrb[0].mxu0 %v1496
        %v1566 = vpop.f32.mrb[0].mxu0
        %v1567 = vadd.f32 %v774, %v1566
        %v1568 = vpop.f32.mrb[0].mxu0
        %1569 = vdwg.mxu0
        %v1570 = vsel %vm779, %v1567, -inf
        %1571 = vmax.xlane.f32.xlu0 %v1570
        %v1572 = vpop.xlane.xlu0 %1571
        %v1573 = vsub.f32 %v1567, %v1572
        %v1574 = vmul.f32 %v1573, 1.442695
        %v1575 = vpow.pop %v1574
        %v1576 = vsel %vm779, %v1575, 0.0
        %1577 = vadd.xlane.f32.xlu0 %v1576
        %v1578 = vpop.xlane.xlu0 %1577
        %v1579 = vrcp.pop %v1578
        %v1580 = vmul.f32 %v1575, %v1579
        %1581 = vrot.lane.b32.xlu0 %v762, 40
        %v1582 = vpop.permute.xlu0 %1581
        %v1585 = vsel %vm779, %v1580, 0
        %1587 = vmatprep.subr.mxu0 0.0
        %1588 = vmatpush1.msra.mxu0 %v1582
        %1589 = vmatprep.subr.mxu0 0.0
        %1590 = vmatpush1.msra.mxu0 0.0
        %1591 = vmatprep.subr.mxu0 0.0
        %1592 = vmatpush1.msra.mxu0 0.0
        %1593 = vmatprep.subr.mxu0 0.0
        %1594 = vmatpush1.msra.mxu0 0.0
        %1595 = vmatprep.subr.mxu0 0.0
        %1596 = vmatpush1.msra.mxu0 0.0
        %1597 = vmatprep.subr.mxu0 0.0
        %1598 = vmatpush1.msra.mxu0 0.0
        %1599 = vmatprep.subr.mxu0 0.0
        %1600 = vmatpush1.msra.mxu0 0.0
        %1601 = vmatprep.subr.mxu0 0.0
        %1602 = vmatpush1.msra.mxu0 0.0
        %1603 = vmatprep.subr.mxu0 0.0
        %1604 = vmatpush1.msra.mxu0 0.0
        %1605 = vmatprep.subr.mxu0 0.0
        %1606 = vmatpush1.msra.mxu0 0.0
        %1607 = vmatprep.subr.mxu0 0.0
        %1608 = vmatpush1.msra.mxu0 0.0
        %1609 = vmatprep.subr.mxu0 0.0
        %1610 = vmatpush1.msra.mxu0 0.0
        %1611 = vmatprep.subr.mxu0 0.0
        %1612 = vmatpush1.msra.mxu0 0.0
        %1613 = vmatprep.subr.mxu0 0.0
        %1614 = vmatpush1.msra.mxu0 0.0
        %1615 = vmatprep.subr.mxu0 0.0
        %1616 = vmatpush1.msra.mxu0 0.0
        %1617 = vmatprep.subr.mxu0 0.0
        %1618 = vmatpush1.msra.mxu0 0.0
        %1619 = vmatprep.subr.mxu0 0.0
        %1620 = vmatpush1.msra.mxu0 0.0
        %1621 = vmatprep.subr.mxu0 0.0
        %1622 = vmatpush1.msra.mxu0 0.0
        %1623 = vmatprep.subr.mxu0 0.0
        %1624 = vmatpush1.msra.mxu0 0.0
        %1625 = vmatprep.subr.mxu0 0.0
        %1626 = vmatpush1.msra.mxu0 0.0
        %1627 = vmatprep.subr.mxu0 0.0
        %1628 = vmatpush1.msra.mxu0 0.0
        %1629 = vmatprep.subr.mxu0 0.0
        %1630 = vmatpush1.msra.mxu0 0.0
        %1631 = vmatprep.subr.mxu0 0.0
        %1632 = vmatpush1.msra.mxu0 0.0
        %1633 = vmatprep.subr.mxu0 0.0
        %1634 = vmatpush1.msra.mxu0 0.0
        %1635 = vmatprep.subr.mxu0 0.0
        %1636 = vmatpush1.msra.mxu0 0.0
        %1637 = vmatprep.subr.mxu0 0.0
        %1638 = vmatpush1.msra.mxu0 0.0
        %1639 = vmatprep.subr.mxu0 0.0
        %1640 = vmatpush1.msra.mxu0 0.0
        %1641 = vmatprep.subr.mxu0 0.0
        %1642 = vmatpush1.msra.mxu0 0.0
        %1643 = vmatprep.subr.mxu0 0.0
        %1644 = vmatpush1.msra.mxu0 0.0
        %1645 = vmatprep.subr.mxu0 0.0
        %1646 = vmatpush1.msra.mxu0 0.0
        %1647 = vmatprep.subr.mxu0 0.0
        %1648 = vmatpush1.msra.mxu0 0.0
        %1649 = vmatprep.subr.mxu0 0.0
        %1650 = vmatpush1.msra.mxu0 0.0
        %1651 = vmatprep.mubr.f32.mxu0 0.0
        %1652 = vmatmul.mubr.f32.gmra.mrb[0].mxu0 %v1585
        %v1653 = vpop.f32.mrb[0].mxu0
        %v1654 = vadd.f32 0.0, %v1653
        %v1655 = vpop.f32.mrb[0].mxu0
        %1656 = vdwg.mxu0
        %v1658 = vsel %vm779, %v1654, 0
        %1660 = vmatprep.subr.mxu0 0.0
        %1661 = vmatpush1.msra.mxu0 %v768
        %1662 = vmatprep.subr.mxu0 0.0
        %1663 = vmatpush1.msra.mxu0 0.0
        %1664 = vmatprep.subr.mxu0 0.0
        %1665 = vmatpush1.msra.mxu0 0.0
        %1666 = vmatprep.subr.mxu0 0.0
        %1667 = vmatpush1.msra.mxu0 0.0
        %1668 = vmatprep.subr.mxu0 0.0
        %1669 = vmatpush1.msra.mxu0 0.0
        %1670 = vmatprep.subr.mxu0 0.0
        %1671 = vmatpush1.msra.mxu0 0.0
        %1672 = vmatprep.subr.mxu0 0.0
        %1673 = vmatpush1.msra.mxu0 0.0
        %1674 = vmatprep.subr.mxu0 0.0
        %1675 = vmatpush1.msra.mxu0 0.0
        %1676 = vmatprep.subr.mxu0 0.0
        %1677 = vmatpush1.msra.mxu0 0.0
        %1678 = vmatprep.subr.mxu0 0.0
        %1679 = vmatpush1.msra.mxu0 0.0
        %1680 = vmatprep.subr.mxu0 0.0
        %1681 = vmatpush1.msra.mxu0 0.0
        %1682 = vmatprep.subr.mxu0 0.0
        %1683 = vmatpush1.msra.mxu0 0.0
        %1684 = vmatprep.subr.mxu0 0.0
        %1685 = vmatpush1.msra.mxu0 0.0
        %1686 = vmatprep.subr.mxu0 0.0
        %1687 = vmatpush1.msra.mxu0 0.0
        %1688 = vmatprep.subr.mxu0 0.0
        %1689 = vmatpush1.msra.mxu0 0.0
        %1690 = vmatprep.subr.mxu0 0.0
        %1691 = vmatpush1.msra.mxu0 0.0
        %1692 = vmatprep.subr.mxu0 0.0
        %1693 = vmatpush1.msra.mxu0 0.0
        %1694 = vmatprep.subr.mxu0 0.0
        %1695 = vmatpush1.msra.mxu0 0.0
        %1696 = vmatprep.subr.mxu0 0.0
        %1697 = vmatpush1.msra.mxu0 0.0
        %1698 = vmatprep.subr.mxu0 0.0
        %1699 = vmatpush1.msra.mxu0 0.0
        %1700 = vmatprep.subr.mxu0 0.0
        %1701 = vmatpush1.msra.mxu0 0.0
        %1702 = vmatprep.subr.mxu0 0.0
        %1703 = vmatpush1.msra.mxu0 0.0
        %1704 = vmatprep.subr.mxu0 0.0
        %1705 = vmatpush1.msra.mxu0 0.0
        %1706 = vmatprep.subr.mxu0 0.0
        %1707 = vmatpush1.msra.mxu0 0.0
        %1708 = vmatprep.subr.mxu0 0.0
        %1709 = vmatpush1.msra.mxu0 0.0
        %1710 = vmatprep.subr.mxu0 0.0
        %1711 = vmatpush1.msra.mxu0 0.0
        %1712 = vmatprep.subr.mxu0 0.0
        %1713 = vmatpush1.msra.mxu0 0.0
        %1714 = vmatprep.subr.mxu0 0.0
        %1715 = vmatpush1.msra.mxu0 0.0
        %1716 = vmatprep.subr.mxu0 0.0
        %1717 = vmatpush1.msra.mxu0 0.0
        %1718 = vmatprep.subr.mxu0 0.0
        %1719 = vmatpush1.msra.mxu0 0.0
        %1720 = vmatprep.subr.mxu0 0.0
        %1721 = vmatpush1.msra.mxu0 0.0
        %1722 = vmatprep.subr.mxu0 0.0
        %1723 = vmatpush1.msra.mxu0 0.0
        %1724 = vmatprep.mubr.f32.mxu0 0.0
        %1725 = vmatmul.mubr.f32.gmra.mrb[0].mxu0 %v1658
        %v1726 = vpop.f32.mrb[0].mxu0
        %v1727 = vadd.f32 0.0, %v1726
        %v1728 = vpop.f32.mrb[0].mxu0
        %1729 = vdwg.mxu0
        %v1730 = vadd.f32 %v1491, %v1727
        %v1731 = vadd.f32 %v643, %v1730
        %v1732 = vld [vmem:[%s10] sm:$0x1]
        %v1734 = vlaneseq
        %v1735 = vshrl.u32 %v1734, 7
        %v1736 = vsub.s32 0, %v1735
        %v1737 = vrot.slane %v1732, %v1736
        %v1739 = vadd.f32 %v1731, %v1737
        %v1740 = vld [vmem:[%s11] sm:$0x1]
        %v1741 = vld [vmem:[%s12] sm:$0x1]
        %v1742 = vsel %vm652, %v1739, 0.0
        %1743 = vadd.xlane.f32.xlu0 %v1742
        %v1744 = vpop.xlane.xlu0 %1743
        %v1745 = vmul.f32 %v1744, %v656
        %v1746 = vsub.f32 %v1739, %v1745
        %v1747 = vmul.f32 %v1746, %v1746
        %v1748 = vsel %vm652, %v1747, 0.0
        %1749 = vadd.xlane.f32.xlu0 %v1748
        %v1750 = vpop.xlane.xlu0 %1749
        %v1751 = vmul.f32 %v1750, %v656
        %v1752 = vadd.f32 %v1751, 1e-05
        %v1753 = vrsqrt.pop %v1752
        %v1754 = vmul.f32 %v1746, %v1753
        %v1756 = vlaneseq
        %v1757 = vshrl.u32 %v1756, 7
        %v1758 = vsub.s32 0, %v1757
        %v1759 = vrot.slane %v1740, %v1758
        %v1761 = vmul.f32 %v1754, %v1759
        %v1763 = vlaneseq
        %v1764 = vshrl.u32 %v1763, 7
        %v1765 = vsub.s32 0, %v1764
        %v1766 = vrot.slane %v1741, %v1765
        %v1768 = vadd.f32 %v1761, %v1766
        %v1769 = vld [vmem:[%s13] sm:$0xff]
        %v1770 = vld [vmem:[%s13 + $0x8] sm:$0xff]
        %v1771 = vld [vmem:[%s13 + $0x10] sm:$0xff]
        %v1772 = vld [vmem:[%s13 + $0x18] sm:$0xff]
        %v1773 = vld [vmem:[%s14] sm:$0x1]
        %v1775 = vlaneseq
        %v1776 = vshrl.u32 %v1775, 7
        %v1777 = vsub.s32 0, %v1776
        %v1778 = vrot.slane %v1773, %v1777
        %v1781 = vsel %vm652, %v1768, 0
        %1783 = vmatprep.subr.mxu0 0.0
        %1784 = vmatpush1.msra.mxu0 %v1769
        %1785 = vmatprep.subr.mxu0 0.0
        %1786 = vmatpush1.msra.mxu0 %v1770
        %1787 = vmatprep.subr.mxu0 0.0
        %1788 = vmatpush1.msra.mxu0 %v1771
        %1789 = vmatprep.subr.mxu0 0.0
        %1790 = vmatpush1.msra.mxu0 %v1772
        %1791 = vmatprep.subr.mxu0 0.0
        %1792 = vmatpush1.msra.mxu0 0.0
        %1793 = vmatprep.subr.mxu0 0.0
        %1794 = vmatpush1.msra.mxu0 0.0
        %1795 = vmatprep.subr.mxu0 0.0
        %1796 = vmatpush1.msra.mxu0 0.0
        %1797 = vmatprep.subr.mxu0 0.0
        %1798 = vmatpush1.msra.mxu0 0.0
        %1799 = vmatprep.subr.mxu0 0.0
        %1800 = vmatpush1.msra.mxu0 0.0
        %1801 = vmatprep.subr.mxu0 0.0
        %1802 = vmatpush1.msra.mxu0 0.0
        %1803 = vmatprep.subr.mxu0 0.0
        %1804 = vmatpush1.msra.mxu0 0.0
        %1805 = vmatprep.subr.mxu0 0.0
        %1806 = vmatpush1.msra.mxu0 0.0
        %1807 = vmatprep.subr.mxu0 0.0
        %1808 = vmatpush1.msra.mxu0 0.0
        %1809 = vmatprep.subr.mxu0 0.0
        %1810 = vmatpush1.msra.mxu0 0.0
        %1811 = vmatprep.subr.mxu0 0.0
        %1812 = vmatpush1.msra.mxu0 0.0
        %1813 = vmatprep.subr.mxu0 0.0
        %1814 = vmatpush1.msra.mxu0 0.0
        %1815 = vmatprep.subr.mxu0 0.0
        %1816 = vmatpush1.msra.mxu0 0.0
        %1817 = vmatprep.subr.mxu0 0.0
        %1818 = vmatpush1.msra.mxu0 0.0
        %1819 = vmatprep.subr.mxu0 0.0
        %1820 = vmatpush1.msra.mxu0 0.0
        %1821 = vmatprep.subr.mxu0 0.0
        %1822 = vmatpush1.msra.mxu0 0.0
        %1823 = vmatprep.subr.mxu0 0.0
        %1824 = vmatpush1.msra.mxu0 0.0
        %1825 = vmatprep.subr.mxu0 0.0
        %1826 = vmatpush1.msra.mxu0 0.0
        %1827 = vmatprep.subr.mxu0 0.0
        %1828 = vmatpush1.msra.mxu0 0.0
        %1829 = vmatprep.subr.mxu0 0.0
        %1830 = vmatpush1.msra.mxu0 0.0
        %1831 = vmatprep.subr.mxu0 0.0
        %1832 = vmatpush1.msra.mxu0 0.0
        %1833 = vmatprep.subr.mxu0 0.0
        %1834 = vmatpush1.msra.mxu0 0.0
        %1835 = vmatprep.subr.mxu0 0.0
        %1836 = vmatpush1.msra.mxu0 0.0
        %1837 = vmatprep.subr.mxu0 0.0
        %1838 = vmatpush1.msra.mxu0 0.0
        %1839 = vmatprep.subr.mxu0 0.0
        %1840 = vmatpush1.msra.mxu0 0.0
        %1841 = vmatprep.subr.mxu0 0.0
        %1842 = vmatpush1.msra.mxu0 0.0
        %1843 = vmatprep.subr.mxu0 0.0
        %1844 = vmatpush1.msra.mxu0 0.0
        %1845 = vmatprep.subr.mxu0 0.0
        %1846 = vmatpush1.msra.mxu0 0.0
        %1847 = vmatprep.mubr.f32.mxu0 0.0
        %1848 = vmatmul.mubr.f32.gmra.mrb[0].mxu0 %v1781
        %v1849 = vpop.f32.mrb[0].mxu0
        %v1850 = vadd.f32 %v1778, %v1849
        %v1851 = vpop.f32.mrb[0].mxu0
        %1852 = vdwg.mxu0
        %v1853 = vmul.f32 %v1850, 0.5
        %v1854 = vmul.f32 %v1850, 0.044715
        %v1855 = vmul.f32 %v1854, %v1850
        %v1856 = vmul.f32 %v1855, %v1850
        %v1857 = vadd.f32 %v1850, %v1856
        %v1858 = vmul.f32 %v1857, 0.7978846
        %v1859 = vtanh.pop %v1858
        %v1860 = vadd.f32 %v1859, 1.0
        %v1861 = vmul.f32 %v1853, %v1860
        %v1862 = vld [vmem:[%s15] sm:$0xff]
        %v1863 = vld [vmem:[%s15 + $0x8] sm:$0xff]
        %v1864 = vld [vmem:[%s15 + $0x10] sm:$0xff]
        %v1865 = vld [vmem:[%s15 + $0x18] sm:$0xff]
        %v1866 = vld [vmem:[%s15 + $0x20] sm:$0xff]
        %v1867 = vld [vmem:[%s15 + $0x28] sm:$0xff]
        %v1868 = vld [vmem:[%s15 + $0x30] sm:$0xff]
        %v1869 = vld [vmem:[%s15 + $0x38] sm:$0xff]
        %v1870 = vld [vmem:[%s15 + $0x40] sm:$0xff]
        %v1871 = vld [vmem:[%s15 + $0x48] sm:$0xff]
        %v1872 = vld [vmem:[%s15 + $0x50] sm:$0xff]
        %v1873 = vld [vmem:[%s15 + $0x58] sm:$0xff]
        %v1874 = vld [vmem:[%s15 + $0x60] sm:$0xff]
        %v1875 = vld [vmem:[%s15 + $0x68] sm:$0xff]
        %v1876 = vld [vmem:[%s15 + $0x70] sm:$0xff]
        %v1877 = vld [vmem:[%s15 + $0x78] sm:$0xff]
        %1878 = vmatprep.subr.mxu0 0.0
        %1879 = vmatpush1.msra.mxu0 %v1862
        %1880 = vmatprep.subr.mxu0 0.0
        %1881 = vmatpush1.msra.mxu0 %v1863
        %1882 = vmatprep.subr.mxu0 0.0
        %1883 = vmatpush1.msra.mxu0 %v1864
        %1884 = vmatprep.subr.mxu0 0.0
        %1885 = vmatpush1.msra.mxu0 %v1865
        %1886 = vmatprep.subr.mxu0 0.0
        %1887 = vmatpush1.msra.mxu0 %v1866
        %1888 = vmatprep.subr.mxu0 0.0
        %1889 = vmatpush1.msra.mxu0 %v1867
        %1890 = vmatprep.subr.mxu0 0.0
        %1891 = vmatpush1.msra.mxu0 %v1868
        %1892 = vmatprep.subr.mxu0 0.0
        %1893 = vmatpush1.msra.mxu0 %v1869
        %1894 = vmatprep.subr.mxu0 0.0
        %1895 = vmatpush1.msra.mxu0 %v1870
        %1896 = vmatprep.subr.mxu0 0.0
        %1897 = vmatpush1.msra.mxu0 %v1871
        %1898 = vmatprep.subr.mxu0 0.0
        %1899 = vmatpush1.msra.mxu0 %v1872
        %1900 = vmatprep.subr.mxu0 0.0
        %1901 = vmatpush1.msra.mxu0 %v1873
        %1902 = vmatprep.subr.mxu0 0.0
        %1903 = vmatpush1.msra.mxu0 %v1874
        %1904 = vmatprep.subr.mxu0 0.0
        %1905 = vmatpush1.msra.mxu0 %v1875
        %1906 = vmatprep.subr.mxu0 0.0
        %1907 = vmatpush1.msra.mxu0 %v1876
        %1908 = vmatprep.subr.mxu0 0.0
        %1909 = vmatpush1.msra.mxu0 %v1877
        %1910 = vmatprep.subr.mxu0 0.0
        %1911 = vmatpush1.msra.mxu0 0.0
        %1912 = vmatprep.subr.mxu0 0.0
        %1913 = vmatpush1.msra.mxu0 0.0
        %1914 = vmatprep.subr.mxu0 0.0
        %1915 = vmatpush1.msra.mxu0 0.0
        %1916 = vmatprep.subr.mxu0 0.0
        %1917 = vmatpush1.msra.mxu0 0.0
        %1918 = vmatprep.subr.mxu0 0.0
        %1919 = vmatpush1.msra.mxu0 0.0
        %1920 = vmatprep.subr.mxu0 0.0
        %1921 = vmatpush1.msra.mxu0 0.0
        %1922 = vmatprep.subr.mxu0 0.0
        %1923 = vmatpush1.msra.mxu0 0.0
        %1924 = vmatprep.subr.mxu0 0.0
        %1925 = vmatpush1.msra.mxu0 0.0
        %1926 = vmatprep.subr.mxu0 0.0
        %1927 = vmatpush1.msra.mxu0 0.0
        %1928 = vmatprep.subr.mxu0 0.0
        %1929 = vmatpush1.msra.mxu0 0.0
        %1930 = vmatprep.subr.mxu0 0.0
        %1931 = vmatpush1.msra.mxu0 0.0
        %1932 = vmatprep.subr.mxu0 0.0
        %1933 = vmatpush1.msra.mxu0 0.0
        %1934 = vmatprep.subr.mxu0 0.0
        %1935 = vmatpush1.msra.mxu0 0.0
        %1936 = vmatprep.subr.mxu0 0.0
        %1937 = vmatpush1.msra.mxu0 0.0
        %1938 = vmatprep.subr.mxu0 0.0
        %1939 = vmatpush1.msra.mxu0 0.0
        %1940 = vmatprep.subr.mxu0 0.0
        %1941 = vmatpush1.msra.mxu0 0.0
        %1942 = vmatprep.mubr.f32.mxu0 0.0
        %1943 = vmatmul.mubr.f32.gmra.mrb[0].mxu0 %v1861
        %v1944 = vpop.f32.mrb[0].mxu0
        %v1945 = vadd.f32 0.0, %v1944
        %v1946 = vpop.f32.mrb[0].mxu0
        %1947 = vdwg.mxu0
        %v1948 = vadd.f32 %v1739, %v1945
        %v1949 = vld [vmem:[%s16] sm:$0x1]
        %v1951 = vlaneseq
        %v1952 = vshrl.u32 %v1951, 7
        %v1953 = vsub.s32 0, %v1952
        %v1954 = vrot.slane %v1949, %v1953
        %v1956 = vadd.f32 %v1948, %v1954
        %s1957 = scalar_lea.vmem %s5, 1
        %v1958 = vld [vmem:[%s1957] sm:$0x1]
        %s1959 = scalar_lea.vmem %s6, 1
        %v1960 = vld [vmem:[%s1959] sm:$0x1]
        %v1961 = vsel %vm652, %v1956, 0.0
        %1962 = vadd.xlane.f32.xlu0 %v1961
        %v1963 = vpop.xlane.xlu0 %1962
        %v1964 = vmul.f32 %v1963, %v656
        %v1965 = vsub.f32 %v1956, %v1964
        %v1966 = vmul.f32 %v1965, %v1965
        %v1967 = vsel %vm652, %v1966, 0.0
        %1968 = vadd.xlane.f32.xlu0 %v1967
        %v1969 = vpop.xlane.xlu0 %1968
        %v1970 = vmul.f32 %v1969, %v656
        %v1971 = vadd.f32 %v1970, 1e-05
        %v1972 = vrsqrt.pop %v1971
        %v1973 = vmul.f32 %v1965, %v1972
        %v1975 = vlaneseq
        %v1976 = vshrl.u32 %v1975, 7
        %v1977 = vsub.s32 0, %v1976
        %v1978 = vrot.slane %v1958, %v1977
        %v1980 = vmul.f32 %v1973, %v1978
        %v1982 = vlaneseq
        %v1983 = vshrl.u32 %v1982, 7
        %v1984 = vsub.s32 0, %v1983
        %v1985 = vrot.slane %v1960, %v1984
        %v1987 = vadd.f32 %v1980, %v1985
        %s1988 = scalar_lea.vmem %s7, 32
        %v1989 = vld [vmem:[%s1988] sm:$0xff]
        %v1990 = vld [vmem:[%s1988 + $0x8] sm:$0xff]
        %v1991 = vld [vmem:[%s1988 + $0x10] sm:$0xff]
        %v1992 = vld [vmem:[%s1988 + $0x18] sm:$0xff]
        %s1993 = scalar_lea.vmem %s8, 1
        %v1994 = vld [vmem:[%s1993] sm:$0x1]
        %v1996 = vlaneseq
        %v1997 = vshrl.u32 %v1996, 7
        %v1998 = vsub.s32 0, %v1997
        %v1999 = vrot.slane %v1994, %v1998
        %v2002 = vsel %vm652, %v1987, 0
        %2004 = vmatprep.subr.mxu0 0.0
        %2005 = vmatpush1.msra.mxu0 %v1989
        %2006 = vmatprep.subr.mxu0 0.0
        %2007 = vmatpush1.msra.mxu0 %v1990
        %2008 = vmatprep.subr.mxu0 0.0
        %2009 = vmatpush1.msra.mxu0 %v1991
        %2010 = vmatprep.subr.mxu0 0.0
        %2011 = vmatpush1.msra.mxu0 %v1992
        %2012 = vmatprep.subr.mxu0 0.0
        %2013 = vmatpush1.msra.mxu0 0.0
        %2014 = vmatprep.subr.mxu0 0.0
        %2015 = vmatpush1.msra.mxu0 0.0
        %2016 = vmatprep.subr.mxu0 0.0
        %2017 = vmatpush1.msra.mxu0 0.0
        %2018 = vmatprep.subr.mxu0 0.0
        %2019 = vmatpush1.msra.mxu0 0.0
        %2020 = vmatprep.subr.mxu0 0.0
        %2021 = vmatpush1.msra.mxu0 0.0
        %2022 = vmatprep.subr.mxu0 0.0
        %2023 = vmatpush1.msra.mxu0 0.0
        %2024 = vmatprep.subr.mxu0 0.0
        %2025 = vmatpush1.msra.mxu0 0.0
        %2026 = vmatprep.subr.mxu0 0.0
        %2027 = vmatpush1.msra.mxu0 0.0
        %2028 = vmatprep.subr.mxu0 0.0
        %2029 = vmatpush1.msra.mxu0 0.0
        %2030 = vmatprep.subr.mxu0 0.0
        %2031 = vmatpush1.msra.mxu0 0.0
        %2032 = vmatprep.subr.mxu0 0.0
        %2033 = vmatpush1.msra.mxu0 0.0
        %2034 = vmatprep.subr.mxu0 0.0
        %2035 = vmatpush1.msra.mxu0 0.0
        %2036 = vmatprep.subr.mxu0 0.0
        %2037 = vmatpush1.msra.mxu0 0.0
        %2038 = vmatprep.subr.mxu0 0.0
        %2039 = vmatpush1.msra.mxu0 0.0
        %2040 = vmatprep.subr.mxu0 0.0
        %2041 = vmatpush1.msra.mxu0 0.0
        %2042 = vmatprep.subr.mxu0 0.0
        %2043 = vmatpush1.msra.mxu0 0.0
        %2044 = vmatprep.subr.mxu0 0.0
        %2045 = vmatpush1.msra.mxu0 0.0
        %2046 = vmatprep.subr.mxu0 0.0
        %2047 = vmatpush1.msra.mxu0 0.0
        %2048 = vmatprep.subr.mxu0 0.0
        %2049 = vmatpush1.msra.mxu0 0.0
        %2050 = vmatprep.subr.mxu0 0.0
        %2051 = vmatpush1.msra.mxu0 0.0
        %2052 = vmatprep.subr.mxu0 0.0
        %2053 = vmatpush1.msra.mxu0 0.0
        %2054 = vmatprep.subr.mxu0 0.0
        %2055 = vmatpush1.msra.mxu0 0.0
        %2056 = vmatprep.subr.mxu0 0.0
        %2057 = vmatpush1.msra.mxu0 0.0
        %2058 = vmatprep.subr.mxu0 0.0
        %2059 = vmatpush1.msra.mxu0 0.0
        %2060 = vmatprep.subr.mxu0 0.0
        %2061 = vmatpush1.msra.mxu0 0.0
        %2062 = vmatprep.subr.mxu0 0.0
        %2063 = vmatpush1.msra.mxu0 0.0
        %2064 = vmatprep.subr.mxu0 0.0
        %2065 = vmatpush1.msra.mxu0 0.0
        %2066 = vmatprep.subr.mxu0 0.0
        %2067 = vmatpush1.msra.mxu0 0.0
        %2068 = vmatprep.mubr.f32.mxu0 0.0
        %2069 = vmatmul.mubr.f32.gmra.mrb[0].mxu0 %v2002
        %v2070 = vpop.f32.mrb[0].mxu0
        %v2071 = vadd.f32 %v1999, %v2070
        %v2072 = vpop.f32.mrb[0].mxu0
        %2073 = vdwg.mxu0
        %s2074 = scalar_lea.vmem %s9, 32
        %v2075 = vld [vmem:[%s2074] sm:$0xff]
        %v2076 = vld [vmem:[%s2074 + $0x8] sm:$0xff]
        %v2077 = vld [vmem:[%s2074 + $0x10] sm:$0xff]
        %v2078 = vld [vmem:[%s2074 + $0x18] sm:$0xff]
        %v2079 = vmul.f32 %v2071, 0.35355338
        %2081 = vrot.lane.b32.xlu0 %v2071, 96
        %v2082 = vpop.permute.xlu0 %2081
        %v2084 = vsel %vm779, %v2079, 0
        %v2086 = vsel %vm779, %v2082, 0
        %2088 = vmatprep.subr.mxu0 0.0
        %2089 = vmatpush1.xpose.msra.mxu0 %v2086
        %2090 = vmatprep.subr.mxu0 0.0
        %2091 = vmatpush1.xpose.msra.mxu0 0.0
        %2092 = vmatprep.subr.mxu0 0.0
        %2093 = vmatpush1.xpose.msra.mxu0 0.0
        %2094 = vmatprep.subr.mxu0 0.0
        %2095 = vmatpush1.xpose.msra.mxu0 0.0
        %2096 = vmatprep.subr.mxu0 0.0
        %2097 = vmatpush1.xpose.msra.mxu0 0.0
        %2098 = vmatprep.subr.mxu0 0.0
        %2099 = vmatpush1.xpose.msra.mxu0 0.0
        %2100 = vmatprep.subr.mxu0 0.0
        %2101 = vmatpush1.xpose.msra.mxu0 0.0
        %2102 = vmatprep.subr.mxu0 0.0
        %2103 = vmatpush1.xpose.msra.mxu0 0.0
        %2104 = vmatprep.subr.mxu0 0.0
        %2105 = vmatpush1.xpose.msra.mxu0 0.0
        %2106 = vmatprep.subr.mxu0 0.0
        %2107 = vmatpush1.xpose.msra.mxu0 0.0
        %2108 = vmatprep.subr.mxu0 0.0
        %2109 = vmatpush1.xpose.msra.mxu0 0.0
        %2110 = vmatprep.subr.mxu0 0.0
        %2111 = vmatpush1.xpose.msra.mxu0 0.0
        %2112 = vmatprep.subr.mxu0 0.0
        %2113 = vmatpush1.xpose.msra.mxu0 0.0
        %2114 = vmatprep.subr.mxu0 0.0
        %2115 = vmatpush1.xpose.msra.mxu0 0.0
        %2116 = vmatprep.subr.mxu0 0.0
        %2117 = vmatpush1.xpose.msra.mxu0 0.0
        %2118 = vmatprep.subr.mxu0 0.0
        %2119 = vmatpush1.xpose.msra.mxu0 0.0
        %2120 = vmatprep.subr.mxu0 0.0
        %2121 = vmatpush1.xpose.msra.mxu0 0.0
        %2122 = vmatprep.subr.mxu0 0.0
        %2123 = vmatpush1.xpose.msra.mxu0 0.0
        %2124 = vmatprep.subr.mxu0 0.0
        %2125 = vmatpush1.xpose.msra.mxu0 0.0
        %2126 = vmatprep.subr.mxu0 0.0
        %2127 = vmatpush1.xpose.msra.mxu0 0.0
        %2128 = vmatprep.subr.mxu0 0.0
        %2129 = vmatpush1.xpose.msra.mxu0 0.0
        %2130 = vmatprep.subr.mxu0 0.0
        %2131 = vmatpush1.xpose.msra.mxu0 0.0
        %2132 = vmatprep.subr.mxu0 0.0
        %2133 = vmatpush1.xpose.msra.mxu0 0.0
        %2134 = vmatprep.subr.mxu0 0.0
        %2135 = vmatpush1.xpose.msra.mxu0 0.0
        %2136 = vmatprep.subr.mxu0 0.0
        %2137 = vmatpush1.xpose.msra.mxu0 0.0
        %2138 = vmatprep.subr.mxu0 0.0
        %2139 = vmatpush1.xpose.msra.mxu0 0.0
        %2140 = vmatprep.subr.mxu0 0.0
        %2141 = vmatpush1.xpose.msra.mxu0 0.0
        %2142 = vmatprep.subr.mxu0 0.0
        %2143 = vmatpush1.xpose.msra.mxu0 0.0
        %2144 = vmatprep.subr.mxu0 0.0
        %2145 = vmatpush1.xpose.msra.mxu0 0.0
        %2146 = vmatprep.subr.mxu0 0.0
        %2147 = vmatpush1.xpose.msra.mxu0 0.0
        %2148 = vmatprep.subr.mxu0 0.0
        %2149 = vmatpush1.xpose.msra.mxu0 0.0
        %2150 = vmatprep.subr.mxu0 0.0
        %2151 = vmatpush1.xpose.msra.mxu0 0.0
        %2152 = vmatprep.mubr.f32.mxu0 0.0
        %2153 = vmatmul.mubr.f32.gmra.mrb[0].mxu0 %v2084
        %v2154 = vpop.f32.mrb[0].mxu0
        %v2155 = vadd.f32 %v774, %v2154
        %v2156 = vpop.f32.mrb[0].mxu0
        %2157 = vdwg.mxu0
        %v2158 = vsel %vm779, %v2155, -inf
        %2159 = vmax.xlane.f32.xlu0 %v2158
        %v2160 = vpop.xlane.xlu0 %2159
        %v2161 = vsub.f32 %v2155, %v2160
        %v2162 = vmul.f32 %v2161, 1.442695
        %v2163 = vpow.pop %v2162
        %v2164 = vsel %vm779, %v2163, 0.0
        %2165 = vadd.xlane.f32.xlu0 %v2164
        %v2166 = vpop.xlane.xlu0 %2165
        %v2167 = vrcp.pop %v2166
        %v2168 = vmul.f32 %v2163, %v2167
        %2169 = vrot.lane.b32.xlu0 %v2071, 64
        %v2170 = vpop.permute.xlu0 %2169
        %v2173 = vsel %vm779, %v2168, 0
        %2175 = vmatprep.subr.mxu0 0.0
        %2176 = vmatpush1.msra.mxu0 %v2170
        %2177 = vmatprep.subr.mxu0 0.0
        %2178 = vmatpush1.msra.mxu0 0.0
        %2179 = vmatprep.subr.mxu0 0.0
        %2180 = vmatpush1.msra.mxu0 0.0
        %2181 = vmatprep.subr.mxu0 0.0
        %2182 = vmatpush1.msra.mxu0 0.0
        %2183 = vmatprep.subr.mxu0 0.0
        %2184 = vmatpush1.msra.mxu0 0.0
        %2185 = vmatprep.subr.mxu0 0.0
        %2186 = vmatpush1.msra.mxu0 0.0
        %2187 = vmatprep.subr.mxu0 0.0
        %2188 = vmatpush1.msra.mxu0 0.0
        %2189 = vmatprep.subr.mxu0 0.0
        %2190 = vmatpush1.msra.mxu0 0.0
        %2191 = vmatprep.subr.mxu0 0.0
        %2192 = vmatpush1.msra.mxu0 0.0
        %2193 = vmatprep.subr.mxu0 0.0
        %2194 = vmatpush1.msra.mxu0 0.0
        %2195 = vmatprep.subr.mxu0 0.0
        %2196 = vmatpush1.msra.mxu0 0.0
        %2197 = vmatprep.subr.mxu0 0.0
        %2198 = vmatpush1.msra.mxu0 0.0
        %2199 = vmatprep.subr.mxu0 0.0
        %2200 = vmatpush1.msra.mxu0 0.0
        %2201 = vmatprep.subr.mxu0 0.0
        %2202 = vmatpush1.msra.mxu0 0.0
        %2203 = vmatprep.subr.mxu0 0.0
        %2204 = vmatpush1.msra.mxu0 0.0
        %2205 = vmatprep.subr.mxu0 0.0
        %2206 = vmatpush1.msra.mxu0 0.0
        %2207 = vmatprep.subr.mxu0 0.0
        %2208 = vmatpush1.msra.mxu0 0.0
        %2209 = vmatprep.subr.mxu0 0.0
        %2210 = vmatpush1.msra.mxu0 0.0
        %2211 = vmatprep.subr.mxu0 0.0
        %2212 = vmatpush1.msra.mxu0 0.0
        %2213 = vmatprep.subr.mxu0 0.0
        %2214 = vmatpush1.msra.mxu0 0.0
        %2215 = vmatprep.subr.mxu0 0.0
        %2216 = vmatpush1.msra.mxu0 0.0
        %2217 = vmatprep.subr.mxu0 0.0
        %2218 = vmatpush1.msra.mxu0 0.0
        %2219 = vmatprep.subr.mxu0 0.0
        %2220 = vmatpush1.msra.mxu0 0.0
        %2221 = vmatprep.subr.mxu0 0.0
        %2222 = vmatpush1.msra.mxu0 0.0
        %2223 = vmatprep.subr.mxu0 0.0
        %2224 = vmatpush1.msra.mxu0 0.0
        %2225 = vmatprep.subr.mxu0 0.0
        %2226 = vmatpush1.msra.mxu0 0.0
        %2227 = vmatprep.subr.mxu0 0.0
        %2228 = vmatpush1.msra.mxu0 0.0
        %2229 = vmatprep.subr.mxu0 0.0
        %2230 = vmatpush1.msra.mxu0 0.0
        %2231 = vmatprep.subr.mxu0 0.0
        %2232 = vmatpush1.msra.mxu0 0.0
        %2233 = vmatprep.subr.mxu0 0.0
        %2234 = vmatpush1.msra.mxu0 0.0
        %2235 = vmatprep.subr.mxu0 0.0
        %2236 = vmatpush1.msra.mxu0 0.0
        %2237 = vmatprep.subr.mxu0 0.0
        %2238 = vmatpush1.msra.mxu0 0.0
        %2239 = vmatprep.mubr.f32.mxu0 0.0
        %2240 = vmatmul.mubr.f32.gmra.mrb[0].mxu0 %v2173
        %v2241 = vpop.f32.mrb[0].mxu0
        %v2242 = vadd.f32 0.0, %v2241
        %v2243 = vpop.f32.mrb[0].mxu0
        %2244 = vdwg.mxu0
        %2245 = vrot.lane.b32.xlu0 %v2079, 120
        %v2246 = vpop.permute.xlu0 %2245
        %2247 = vrot.lane.b32.xlu0 %v2071, 88
        %v2248 = vpop.permute.xlu0 %2247
        %v2249 = vsel %vm779, %v2246, 0
        %v2251 = vsel %vm779, %v2248, 0
        %2253 = vmatprep.subr.mxu0 0.0
        %2254 = vmatpush1.xpose.msra.mxu0 %v2251
        %2255 = vmatprep.subr.mxu0 0.0
        %2256 = vmatpush1.xpose.msra.mxu0 0.0
        %2257 = vmatprep.subr.mxu0 0.0
        %2258 = vmatpush1.xpose.msra.mxu0 0.0
        %2259 = vmatprep.subr.mxu0 0.0
        %2260 = vmatpush1.xpose.msra.mxu0 0.0
        %2261 = vmatprep.subr.mxu0 0.0
        %2262 = vmatpush1.xpose.msra.mxu0 0.0
        %2263 = vmatprep.subr.mxu0 0.0
        %2264 = vmatpush1.xpose.msra.mxu0 0.0
        %2265 = vmatprep.subr.mxu0 0.0
        %2266 = vmatpush1.xpose.msra.mxu0 0.0
        %2267 = vmatprep.subr.mxu0 0.0
        %2268 = vmatpush1.xpose.msra.mxu0 0.0
        %2269 = vmatprep.subr.mxu0 0.0
        %2270 = vmatpush1.xpose.msra.mxu0 0.0
        %2271 = vmatprep.subr.mxu0 0.0
        %2272 = vmatpush1.xpose.msra.mxu0 0.0
        %2273 = vmatprep.subr.mxu0 0.0
        %2274 = vmatpush1.xpose.msra.mxu0 0.0
        %2275 = vmatprep.subr.mxu0 0.0
        %2276 = vmatpush1.xpose.msra.mxu0 0.0
        %2277 = vmatprep.subr.mxu0 0.0
        %2278 = vmatpush1.xpose.msra.mxu0 0.0
        %2279 = vmatprep.subr.mxu0 0.0
        %2280 = vmatpush1.xpose.msra.mxu0 0.0
        %2281 = vmatprep.subr.mxu0 0.0
        %2282 = vmatpush1.xpose.msra.mxu0 0.0
        %2283 = vmatprep.subr.mxu0 0.0
        %2284 = vmatpush1.xpose.msra.mxu0 0.0
        %2285 = vmatprep.subr.mxu0 0.0
        %2286 = vmatpush1.xpose.msra.mxu0 0.0
        %2287 = vmatprep.subr.mxu0 0.0
        %2288 = vmatpush1.xpose.msra.mxu0 0.0
        %2289 = vmatprep.subr.mxu0 0.0
        %2290 = vmatpush1.xpose.msra.mxu0 0.0
        %2291 = vmatprep.subr.mxu0 0.0
        %2292 = vmatpush1.xpose.msra.mxu0 0.0
        %2293 = vmatprep.subr.mxu0 0.0
        %2294 = vmatpush1.xpose.msra.mxu0 0.0
        %2295 = vmatprep.subr.mxu0 0.0
        %2296 = vmatpush1.xpose.msra.mxu0 0.0
        %2297 = vmatprep.subr.mxu0 0.0
        %2298 = vmatpush1.xpose.msra.mxu0 0.0
        %2299 = vmatprep.subr.mxu0 0.0
        %2300 = vmatpush1.xpose.msra.mxu0 0.0
        %2301 = vmatprep.subr.mxu0 0.0
        %2302 = vmatpush1.xpose.msra.mxu0 0.0
        %2303 = vmatprep.subr.mxu0 0.0
        %2304 = vmatpush1.xpose.msra.mxu0 0.0
        %2305 = vmatprep.subr.mxu0 0.0
        %2306 = vmatpush1.xpose.msra.mxu0 0.0
        %2307 = vmatprep.subr.mxu0 0.0
        %2308 = vmatpush1.xpose.msra.mxu0 0.0
        %2309 = vmatprep.subr.mxu0 0.0
        %2310 = vmatpush1.xpose.msra.mxu0 0.0
        %2311 = vmatprep.subr.mxu0 0.0
        %2312 = vmatpush1.xpose.msra.mxu0 0.0
        %2313 = vmatprep.subr.mxu0 0.0
        %2314 = vmatpush1.xpose.msra.mxu0 0.0
        %2315 = vmatprep.subr.mxu0 0.0
        %2316 = vmatpush1.xpose.msra.mxu0 0.0
        %2317 = vmatprep.mubr.f32.mxu0 0.0
        %2318 = vmatmul.mubr.f32.gmra.mrb[0].mxu0 %v2249
        %v2319 = vpop.f32.mrb[0].mxu0
        %v2320 = vadd.f32 %v774, %v2319
        %v2321 = vpop.f32.mrb[0].mxu0
        %2322 = vdwg.mxu0
        %v2323 = vsel %vm779, %v2320, -inf
        %2324 = vmax.xlane.f32.xlu0 %v2323
        %v2325 = vpop.xlane.xlu0 %2324
        %v2326 = vsub.f32 %v2320, %v2325
        %v2327 = vmul.f32 %v2326, 1.442695
        %v2328 = vpow.pop %v2327
        %v2329 = vsel %vm779, %v2328, 0.0
        %2330 = vadd.xlane.f32.xlu0 %v2329
        %v2331 = vpop.xlane.xlu0 %2330
        %v2332 = vrcp.pop %v2331
        %v2333 = vmul.f32 %v2328, %v2332
        %2334 = vrot.lane.b32.xlu0 %v2071, 56
        %v2335 = vpop.permute.xlu0 %2334
        %v2338 = vsel %vm779, %v2333, 0
        %2340 = vmatprep.subr.mxu0 0.0
        %2341 = vmatpush1.msra.mxu0 %v2335
        %2342 = vmatprep.subr.mxu0 0.0
        %2343 = vmatpush1.msra.mxu0 0.0
        %2344 = vmatprep.subr.mxu0 0.0
        %2345 = vmatpush1.msra.mxu0 0.0
        %2346 = vmatprep.subr.mxu0 0.0
        %2347 = vmatpush1.msra.mxu0 0.0
        %2348 = vmatprep.subr.mxu0 0.0
        %2349 = vmatpush1.msra.mxu0 0.0
        %2350 = vmatprep.subr.mxu0 0.0
        %2351 = vmatpush1.msra.mxu0 0.0
        %2352 = vmatprep.subr.mxu0 0.0
        %2353 = vmatpush1.msra.mxu0 0.0
        %2354 = vmatprep.subr.mxu0 0.0
        %2355 = vmatpush1.msra.mxu0 0.0
        %2356 = vmatprep.subr.mxu0 0.0
        %2357 = vmatpush1.msra.mxu0 0.0
        %2358 = vmatprep.subr.mxu0 0.0
        %2359 = vmatpush1.msra.mxu0 0.0
        %2360 = vmatprep.subr.mxu0 0.0
        %2361 = vmatpush1.msra.mxu0 0.0
        %2362 = vmatprep.subr.mxu0 0.0
        %2363 = vmatpush1.msra.mxu0 0.0
        %2364 = vmatprep.subr.mxu0 0.0
        %2365 = vmatpush1.msra.mxu0 0.0
        %2366 = vmatprep.subr.mxu0 0.0
        %2367 = vmatpush1.msra.mxu0 0.0
        %2368 = vmatprep.subr.mxu0 0.0
        %2369 = vmatpush1.msra.mxu0 0.0
        %2370 = vmatprep.subr.mxu0 0.0
        %2371 = vmatpush1.msra.mxu0 0.0
        %2372 = vmatprep.subr.mxu0 0.0
        %2373 = vmatpush1.msra.mxu0 0.0
        %2374 = vmatprep.subr.mxu0 0.0
        %2375 = vmatpush1.msra.mxu0 0.0
        %2376 = vmatprep.subr.mxu0 0.0
        %2377 = vmatpush1.msra.mxu0 0.0
        %2378 = vmatprep.subr.mxu0 0.0
        %2379 = vmatpush1.msra.mxu0 0.0
        %2380 = vmatprep.subr.mxu0 0.0
        %2381 = vmatpush1.msra.mxu0 0.0
        %2382 = vmatprep.subr.mxu0 0.0
        %2383 = vmatpush1.msra.mxu0 0.0
        %2384 = vmatprep.subr.mxu0 0.0
        %2385 = vmatpush1.msra.mxu0 0.0
        %2386 = vmatprep.subr.mxu0 0.0
        %2387 = vmatpush1.msra.mxu0 0.0
        %2388 = vmatprep.subr.mxu0 0.0
        %2389 = vmatpush1.msra.mxu0 0.0
        %2390 = vmatprep.subr.mxu0 0.0
        %2391 = vmatpush1.msra.mxu0 0.0
        %2392 = vmatprep.subr.mxu0 0.0
        %2393 = vmatpush1.msra.mxu0 0.0
        %2394 = vmatprep.subr.mxu0 0.0
        %2395 = vmatpush1.msra.mxu0 0.0
        %2396 = vmatprep.subr.mxu0 0.0
        %2397 = vmatpush1.msra.mxu0 0.0
        %2398 = vmatprep.subr.mxu0 0.0
        %2399 = vmatpush1.msra.mxu0 0.0
        %2400 = vmatprep.subr.mxu0 0.0
        %2401 = vmatpush1.msra.mxu0 0.0
        %2402 = vmatprep.subr.mxu0 0.0
        %2403 = vmatpush1.msra.mxu0 0.0
        %2404 = vmatprep.mubr.f32.mxu0 0.0
        %2405 = vmatmul.mubr.f32.gmra.mrb[0].mxu0 %v2338
        %v2406 = vpop.f32.mrb[0].mxu0
        %v2407 = vadd.f32 0.0, %v2406
        %v2408 = vpop.f32.mrb[0].mxu0
        %2409 = vdwg.mxu0
        %v2411 = vsel %vm779, %v2407, 0
        %2413 = vmatprep.subr.mxu0 0.0
        %2414 = vmatpush1.msra.mxu0 %v2076
        %2415 = vmatprep.subr.mxu0 0.0
        %2416 = vmatpush1.msra.mxu0 0.0
        %2417 = vmatprep.subr.mxu0 0.0
        %2418 = vmatpush1.msra.mxu0 0.0
        %2419 = vmatprep.subr.mxu0 0.0
        %2420 = vmatpush1.msra.mxu0 0.0
        %2421 = vmatprep.subr.mxu0 0.0
        %2422 = vmatpush1.msra.mxu0 0.0
        %2423 = vmatprep.subr.mxu0 0.0
        %2424 = vmatpush1.msra.mxu0 0.0
        %2425 = vmatprep.subr.mxu0 0.0
        %2426 = vmatpush1.msra.mxu0 0.0
        %2427 = vmatprep.subr.mxu0 0.0
        %2428 = vmatpush1.msra.mxu0 0.0
        %2429 = vmatprep.subr.mxu0 0.0
        %2430 = vmatpush1.msra.mxu0 0.0
        %2431 = vmatprep.subr.mxu0 0.0
        %2432 = vmatpush1.msra.mxu0 0.0
        %2433 = vmatprep.subr.mxu0 0.0
        %2434 = vmatpush1.msra.mxu0 0.0
        %2435 = vmatprep.subr.mxu0 0.0
        %2436 = vmatpush1.msra.mxu0 0.0
        %2437 = vmatprep.subr.mxu0 0.0
        %2438 = vmatpush1.msra.mxu0 0.0
        %2439 = vmatprep.subr.mxu0 0.0
        %2440 = vmatpush1.msra.mxu0 0.0
        %2441 = vmatprep.subr.mxu0 0.0
        %2442 = vmatpush1.msra.mxu0 0.0
        %2443 = vmatprep.subr.mxu0 0.0
        %2444 = vmatpush1.msra.mxu0 0.0
        %2445 = vmatprep.subr.mxu0 0.0
        %2446 = vmatpush1.msra.mxu0 0.0
        %2447 = vmatprep.subr.mxu0 0.0
        %2448 = vmatpush1.msra.mxu0 0.0
        %2449 = vmatprep.subr.mxu0 0.0
        %2450 = vmatpush1.msra.mxu0 0.0
        %2451 = vmatprep.subr.mxu0 0.0
        %2452 = vmatpush1.msra.mxu0 0.0
        %2453 = vmatprep.subr.mxu0 0.0
        %2454 = vmatpush1.msra.mxu0 0.0
        %2455 = vmatprep.subr.mxu0 0.0
        %2456 = vmatpush1.msra.mxu0 0.0
        %2457 = vmatprep.subr.mxu0 0.0
        %2458 = vmatpush1.msra.mxu0 0.0
        %2459 = vmatprep.subr.mxu0 0.0
        %2460 = vmatpush1.msra.mxu0 0.0
        %2461 = vmatprep.subr.mxu0 0.0
        %2462 = vmatpush1.msra.mxu0 0.0
        %2463 = vmatprep.subr.mxu0 0.0
        %2464 = vmatpush1.msra.mxu0 0.0
        %2465 = vmatprep.subr.mxu0 0.0
        %2466 = vmatpush1.msra.mxu0 0.0
        %2467 = vmatprep.subr.mxu0 0.0
        %2468 = vmatpush1.msra.mxu0 0.0
        %2469 = vmatprep.subr.mxu0 0.0
        %2470 = vmatpush1.msra.mxu0 0.0
        %2471 = vmatprep.subr.mxu0 0.0
        %2472 = vmatpush1.msra.mxu0 0.0
        %2473 = vmatprep.subr.mxu0 0.0
        %2474 = vmatpush1.msra.mxu0 0.0
        %2475 = vmatprep.subr.mxu0 0.0
        %2476 = vmatpush1.msra.mxu0 0.0
        %2477 = vmatprep.mubr.f32.mxu0 0.0
        %2478 = vmatmul.mubr.f32.gmra.mrb[0].mxu0 %v2411
        %v2479 = vpop.f32.mrb[0].mxu0
        %v2480 = vadd.f32 0.0, %v2479
        %v2481 = vpop.f32.mrb[0].mxu0
        %2482 = vdwg.mxu0
        %v2484 = vsel %vm779, %v2242, 0
        %2486 = vmatprep.subr.mxu0 0.0
        %2487 = vmatpush1.msra.mxu0 %v2075
        %2488 = vmatprep.subr.mxu0 0.0
        %2489 = vmatpush1.msra.mxu0 0.0
        %2490 = vmatprep.subr.mxu0 0.0
        %2491 = vmatpush1.msra.mxu0 0.0
        %2492 = vmatprep.subr.mxu0 0.0
        %2493 = vmatpush1.msra.mxu0 0.0
        %2494 = vmatprep.subr.mxu0 0.0
        %2495 = vmatpush1.msra.mxu0 0.0
        %2496 = vmatprep.subr.mxu0 0.0
        %2497 = vmatpush1.msra.mxu0 0.0
        %2498 = vmatprep.subr.mxu0 0.0
        %2499 = vmatpush1.msra.mxu0 0.0
        %2500 = vmatprep.subr.mxu0 0.0
        %2501 = vmatpush1.msra.mxu0 0.0
        %2502 = vmatprep.subr.mxu0 0.0
        %2503 = vmatpush1.msra.mxu0 0.0
        %2504 = vmatprep.subr.mxu0 0.0
        %2505 = vmatpush1.msra.mxu0 0.0
        %2506 = vmatprep.subr.mxu0 0.0
        %2507 = vmatpush1.msra.mxu0 0.0
        %2508 = vmatprep.subr.mxu0 0.0
        %2509 = vmatpush1.msra.mxu0 0.0
        %2510 = vmatprep.subr.mxu0 0.0
        %2511 = vmatpush1.msra.mxu0 0.0
        %2512 = vmatprep.subr.mxu0 0.0
        %2513 = vmatpush1.msra.mxu0 0.0
        %2514 = vmatprep.subr.mxu0 0.0
        %2515 = vmatpush1.msra.mxu0 0.0
        %2516 = vmatprep.subr.mxu0 0.0
        %2517 = vmatpush1.msra.mxu0 0.0
        %2518 = vmatprep.subr.mxu0 0.0
        %2519 = vmatpush1.msra.mxu0 0.0
        %2520 = vmatprep.subr.mxu0 0.0
        %2521 = vmatpush1.msra.mxu0 0.0
        %2522 = vmatprep.subr.mxu0 0.0
        %2523 = vmatpush1.msra.mxu0 0.0
        %2524 = vmatprep.subr.mxu0 0.0
        %2525 = vmatpush1.msra.mxu0 0.0
        %2526 = vmatprep.subr.mxu0 0.0
        %2527 = vmatpush1.msra.mxu0 0.0
        %2528 = vmatprep.subr.mxu0 0.0
        %2529 = vmatpush1.msra.mxu0 0.0
        %2530 = vmatprep.subr.mxu0 0.0
        %2531 = vmatpush1.msra.mxu0 0.0
        %2532 = vmatprep.subr.mxu0 0.0
        %2533 = vmatpush1.msra.mxu0 0.0
        %2534 = vmatprep.subr.mxu0 0.0
        %2535 = vmatpush1.msra.mxu0 0.0
        %2536 = vmatprep.subr.mxu0 0.0
        %2537 = vmatpush1.msra.mxu0 0.0
        %2538 = vmatprep.subr.mxu0 0.0
        %2539 = vmatpush1.msra.mxu0 0.0
        %2540 = vmatprep.subr.mxu0 0.0
        %2541 = vmatpush1.msra.mxu0 0.0
        %2542 = vmatprep.subr.mxu0 0.0
        %2543 = vmatpush1.msra.mxu0 0.0
        %2544 = vmatprep.subr.mxu0 0.0
        %2545 = vmatpush1.msra.mxu0 0.0
        %2546 = vmatprep.subr.mxu0 0.0
        %2547 = vmatpush1.msra.mxu0 0.0
        %2548 = vmatprep.subr.mxu0 0.0
        %2549 = vmatpush1.msra.mxu0 0.0
        %2550 = vmatprep.mubr.f32.mxu0 0.0
        %2551 = vmatmul.mubr.f32.gmra.mrb[0].mxu0 %v2484
        %v2552 = vpop.f32.mrb[0].mxu0
        %v2553 = vadd.f32 %v2480, %v2552
        %v2554 = vpop.f32.mrb[0].mxu0
        %2555 = vdwg.mxu0
        %2556 = vrot.lane.b32.xlu0 %v2079, 112
        %v2557 = vpop.permute.xlu0 %2556
        %2558 = vrot.lane.b32.xlu0 %v2071, 80
        %v2559 = vpop.permute.xlu0 %2558
        %v2560 = vsel %vm779, %v2557, 0
        %v2562 = vsel %vm779, %v2559, 0
        %2564 = vmatprep.subr.mxu0 0.0
        %2565 = vmatpush1.xpose.msra.mxu0 %v2562
        %2566 = vmatprep.subr.mxu0 0.0
        %2567 = vmatpush1.xpose.msra.mxu0 0.0
        %2568 = vmatprep.subr.mxu0 0.0
        %2569 = vmatpush1.xpose.msra.mxu0 0.0
        %2570 = vmatprep.subr.mxu0 0.0
        %2571 = vmatpush1.xpose.msra.mxu0 0.0
        %2572 = vmatprep.subr.mxu0 0.0
        %2573 = vmatpush1.xpose.msra.mxu0 0.0
        %2574 = vmatprep.subr.mxu0 0.0
        %2575 = vmatpush1.xpose.msra.mxu0 0.0
        %2576 = vmatprep.subr.mxu0 0.0
        %2577 = vmatpush1.xpose.msra.mxu0 0.0
        %2578 = vmatprep.subr.mxu0 0.0
        %2579 = vmatpush1.xpose.msra.mxu0 0.0
        %2580 = vmatprep.subr.mxu0 0.0
        %2581 = vmatpush1.xpose.msra.mxu0 0.0
        %2582 = vmatprep.subr.mxu0 0.0
        %2583 = vmatpush1.xpose.msra.mxu0 0.0
        %2584 = vmatprep.subr.mxu0 0.0
        %2585 = vmatpush1.xpose.msra.mxu0 0.0
        %2586 = vmatprep.subr.mxu0 0.0
        %2587 = vmatpush1.xpose.msra.mxu0 0.0
        %2588 = vmatprep.subr.mxu0 0.0
        %2589 = vmatpush1.xpose.msra.mxu0 0.0
        %2590 = vmatprep.subr.mxu0 0.0
        %2591 = vmatpush1.xpose.msra.mxu0 0.0
        %2592 = vmatprep.subr.mxu0 0.0
        %2593 = vmatpush1.xpose.msra.mxu0 0.0
        %2594 = vmatprep.subr.mxu0 0.0
        %2595 = vmatpush1.xpose.msra.mxu0 0.0
        %2596 = vmatprep.subr.mxu0 0.0
        %2597 = vmatpush1.xpose.msra.mxu0 0.0
        %2598 = vmatprep.subr.mxu0 0.0
        %2599 = vmatpush1.xpose.msra.mxu0 0.0
        %2600 = vmatprep.subr.mxu0 0.0
        %2601 = vmatpush1.xpose.msra.mxu0 0.0
        %2602 = vmatprep.subr.mxu0 0.0
        %2603 = vmatpush1.xpose.msra.mxu0 0.0
        %2604 = vmatprep.subr.mxu0 0.0
        %2605 = vmatpush1.xpose.msra.mxu0 0.0
        %2606 = vmatprep.subr.mxu0 0.0
        %2607 = vmatpush1.xpose.msra.mxu0 0.0
        %2608 = vmatprep.subr.mxu0 0.0
        %2609 = vmatpush1.xpose.msra.mxu0 0.0
        %2610 = vmatprep.subr.mxu0 0.0
        %2611 = vmatpush1.xpose.msra.mxu0 0.0
        %2612 = vmatprep.subr.mxu0 0.0
        %2613 = vmatpush1.xpose.msra.mxu0 0.0
        %2614 = vmatprep.subr.mxu0 0.0
        %2615 = vmatpush1.xpose.msra.mxu0 0.0
        %2616 = vmatprep.subr.mxu0 0.0
        %2617 = vmatpush1.xpose.msra.mxu0 0.0
        %2618 = vmatprep.subr.mxu0 0.0
        %2619 = vmatpush1.xpose.msra.mxu0 0.0
        %2620 = vmatprep.subr.mxu0 0.0
        %2621 = vmatpush1.xpose.msra.mxu0 0.0
        %2622 = vmatprep.subr.mxu0 0.0
        %2623 = vmatpush1.xpose.msra.mxu0 0.0
        %2624 = vmatprep.subr.mxu0 0.0
        %2625 = vmatpush1.xpose.msra.mxu0 0.0
        %2626 = vmatprep.subr.mxu0 0.0
        %2627 = vmatpush1.xpose.msra.mxu0 0.0
        %2628 = vmatprep.mubr.f32.mxu0 0.0
        %2629 = vmatmul.mubr.f32.gmra.mrb[0].mxu0 %v2560
        %v2630 = vpop.f32.mrb[0].mxu0
        %v2631 = vadd.f32 %v774, %v2630
        %v2632 = vpop.f32.mrb[0].mxu0
        %2633 = vdwg.mxu0
        %v2634 = vsel %vm779, %v2631, -inf
        %2635 = vmax.xlane.f32.xlu0 %v2634
        %v2636 = vpop.xlane.xlu0 %2635
        %v2637 = vsub.f32 %v2631, %v2636
        %v2638 = vmul.f32 %v2637, 1.442695
        %v2639 = vpow.pop %v2638
        %v2640 = vsel %vm779, %v2639, 0.0
        %2641 = vadd.xlane.f32.xlu0 %v2640
        %v2642 = vpop.xlane.xlu0 %2641
        %v2643 = vrcp.pop %v2642
        %v2644 = vmul.f32 %v2639, %v2643
        %2645 = vrot.lane.b32.xlu0 %v2071, 48
        %v2646 = vpop.permute.xlu0 %2645
        %v2649 = vsel %vm779, %v2644, 0
        %2651 = vmatprep.subr.mxu0 0.0
        %2652 = vmatpush1.msra.mxu0 %v2646
        %2653 = vmatprep.subr.mxu0 0.0
        %2654 = vmatpush1.msra.mxu0 0.0
        %2655 = vmatprep.subr.mxu0 0.0
        %2656 = vmatpush1.msra.mxu0 0.0
        %2657 = vmatprep.subr.mxu0 0.0
        %2658 = vmatpush1.msra.mxu0 0.0
        %2659 = vmatprep.subr.mxu0 0.0
        %2660 = vmatpush1.msra.mxu0 0.0
        %2661 = vmatprep.subr.mxu0 0.0
        %2662 = vmatpush1.msra.mxu0 0.0
        %2663 = vmatprep.subr.mxu0 0.0
        %2664 = vmatpush1.msra.mxu0 0.0
        %2665 = vmatprep.subr.mxu0 0.0
        %2666 = vmatpush1.msra.mxu0 0.0
        %2667 = vmatprep.subr.mxu0 0.0
        %2668 = vmatpush1.msra.mxu0 0.0
        %2669 = vmatprep.subr.mxu0 0.0
        %2670 = vmatpush1.msra.mxu0 0.0
        %2671 = vmatprep.subr.mxu0 0.0
        %2672 = vmatpush1.msra.mxu0 0.0
        %2673 = vmatprep.subr.mxu0 0.0
        %2674 = vmatpush1.msra.mxu0 0.0
        %2675 = vmatprep.subr.mxu0 0.0
        %2676 = vmatpush1.msra.mxu0 0.0
        %2677 = vmatprep.subr.mxu0 0.0
        %2678 = vmatpush1.msra.mxu0 0.0
        %2679 = vmatprep.subr.mxu0 0.0
        %2680 = vmatpush1.msra.mxu0 0.0
        %2681 = vmatprep.subr.mxu0 0.0
        %2682 = vmatpush1.msra.mxu0 0.0
        %2683 = vmatprep.subr.mxu0 0.0
        %2684 = vmatpush1.msra.mxu0 0.0
        %2685 = vmatprep.subr.mxu0 0.0
        %2686 = vmatpush1.msra.mxu0 0.0
        %2687 = vmatprep.subr.mxu0 0.0
        %2688 = vmatpush1.msra.mxu0 0.0
        %2689 = vmatprep.subr.mxu0 0.0
        %2690 = vmatpush1.msra.mxu0 0.0
        %2691 = vmatprep.subr.mxu0 0.0
        %2692 = vmatpush1.msra.mxu0 0.0
        %2693 = vmatprep.subr.mxu0 0.0
        %2694 = vmatpush1.msra.mxu0 0.0
        %2695 = vmatprep.subr.mxu0 0.0
        %2696 = vmatpush1.msra.mxu0 0.0
        %2697 = vmatprep.subr.mxu0 0.0
        %2698 = vmatpush1.msra.mxu0 0.0
        %2699 = vmatprep.subr.mxu0 0.0
        %2700 = vmatpush1.msra.mxu0 0.0
        %2701 = vmatprep.subr.mxu0 0.0
        %2702 = vmatpush1.msra.mxu0 0.0
        %2703 = vmatprep.subr.mxu0 0.0
        %2704 = vmatpush1.msra.mxu0 0.0
        %2705 = vmatprep.subr.mxu0 0.0
        %2706 = vmatpush1.msra.mxu0 0.0
        %2707 = vmatprep.subr.mxu0 0.0
        %2708 = vmatpush1.msra.mxu0 0.0
        %2709 = vmatprep.subr.mxu0 0.0
        %2710 = vmatpush1.msra.mxu0 0.0
        %2711 = vmatprep.subr.mxu0 0.0
        %2712 = vmatpush1.msra.mxu0 0.0
        %2713 = vmatprep.subr.mxu0 0.0
        %2714 = vmatpush1.msra.mxu0 0.0
        %2715 = vmatprep.mubr.f32.mxu0 0.0
        %2716 = vmatmul.mubr.f32.gmra.mrb[0].mxu0 %v2649
        %v2717 = vpop.f32.mrb[0].mxu0
        %v2718 = vadd.f32 0.0, %v2717
        %v2719 = vpop.f32.mrb[0].mxu0
        %2720 = vdwg.mxu0
        %v2722 = vsel %vm779, %v2718, 0
        %2724 = vmatprep.subr.mxu0 0.0
        %2725 = vmatpush1.msra.mxu0 %v2077
        %2726 = vmatprep.subr.mxu0 0.0
        %2727 = vmatpush1.msra.mxu0 0.0
        %2728 = vmatprep.subr.mxu0 0.0
        %2729 = vmatpush1.msra.mxu0 0.0
        %2730 = vmatprep.subr.mxu0 0.0
        %2731 = vmatpush1.msra.mxu0 0.0
        %2732 = vmatprep.subr.mxu0 0.0
        %2733 = vmatpush1.msra.mxu0 0.0
        %2734 = vmatprep.subr.mxu0 0.0
        %2735 = vmatpush1.msra.mxu0 0.0
        %2736 = vmatprep.subr.mxu0 0.0
        %2737 = vmatpush1.msra.mxu0 0.0
        %2738 = vmatprep.subr.mxu0 0.0
        %2739 = vmatpush1.msra.mxu0 0.0
        %2740 = vmatprep.subr.mxu0 0.0
        %2741 = vmatpush1.msra.mxu0 0.0
        %2742 = vmatprep.subr.mxu0 0.0
        %2743 = vmatpush1.msra.mxu0 0.0
        %2744 = vmatprep.subr.mxu0 0.0
        %2745 = vmatpush1.msra.mxu0 0.0
        %2746 = vmatprep.subr.mxu0 0.0
        %2747 = vmatpush1.msra.mxu0 0.0
        %2748 = vmatprep.subr.mxu0 0.0
        %2749 = vmatpush1.msra.mxu0 0.0
        %2750 = vmatprep.subr.mxu0 0.0
        %2751 = vmatpush1.msra.mxu0 0.0
        %2752 = vmatprep.subr.mxu0 0.0
        %2753 = vmatpush1.msra.mxu0 0.0
        %2754 = vmatprep.subr.mxu0 0.0
        %2755 = vmatpush1.msra.mxu0 0.0
        %2756 = vmatprep.subr.mxu0 0.0
        %2757 = vmatpush1.msra.mxu0 0.0
        %2758 = vmatprep.subr.mxu0 0.0
        %2759 = vmatpush1.msra.mxu0 0.0
        %2760 = vmatprep.subr.mxu0 0.0
        %2761 = vmatpush1.msra.mxu0 0.0
        %2762 = vmatprep.subr.mxu0 0.0
        %2763 = vmatpush1.msra.mxu0 0.0
        %2764 = vmatprep.subr.mxu0 0.0
        %2765 = vmatpush1.msra.mxu0 0.0
        %2766 = vmatprep.subr.mxu0 0.0
        %2767 = vmatpush1.msra.mxu0 0.0
        %2768 = vmatprep.subr.mxu0 0.0
        %2769 = vmatpush1.msra.mxu0 0.0
        %2770 = vmatprep.subr.mxu0 0.0
        %2771 = vmatpush1.msra.mxu0 0.0
        %2772 = vmatprep.subr.mxu0 0.0
        %2773 = vmatpush1.msra.mxu0 0.0
        %2774 = vmatprep.subr.mxu0 0.0
        %2775 = vmatpush1.msra.mxu0 0.0
        %2776 = vmatprep.subr.mxu0 0.0
        %2777 = vmatpush1.msra.mxu0 0.0
        %2778 = vmatprep.subr.mxu0 0.0
        %2779 = vmatpush1.msra.mxu0 0.0
        %2780 = vmatprep.subr.mxu0 0.0
        %2781 = vmatpush1.msra.mxu0 0.0
        %2782 = vmatprep.subr.mxu0 0.0
        %2783 = vmatpush1.msra.mxu0 0.0
        %2784 = vmatprep.subr.mxu0 0.0
        %2785 = vmatpush1.msra.mxu0 0.0
        %2786 = vmatprep.subr.mxu0 0.0
        %2787 = vmatpush1.msra.mxu0 0.0
        %2788 = vmatprep.mubr.f32.mxu0 0.0
        %2789 = vmatmul.mubr.f32.gmra.mrb[0].mxu0 %v2722
        %v2790 = vpop.f32.mrb[0].mxu0
        %v2791 = vadd.f32 0.0, %v2790
        %v2792 = vpop.f32.mrb[0].mxu0
        %2793 = vdwg.mxu0
        %v2794 = vadd.f32 %v2553, %v2791
        %2795 = vrot.lane.b32.xlu0 %v2079, 104
        %v2796 = vpop.permute.xlu0 %2795
        %2797 = vrot.lane.b32.xlu0 %v2071, 72
        %v2798 = vpop.permute.xlu0 %2797
        %v2799 = vsel %vm779, %v2796, 0
        %v2801 = vsel %vm779, %v2798, 0
        %2803 = vmatprep.subr.mxu0 0.0
        %2804 = vmatpush1.xpose.msra.mxu0 %v2801
        %2805 = vmatprep.subr.mxu0 0.0
        %2806 = vmatpush1.xpose.msra.mxu0 0.0
        %2807 = vmatprep.subr.mxu0 0.0
        %2808 = vmatpush1.xpose.msra.mxu0 0.0
        %2809 = vmatprep.subr.mxu0 0.0
        %2810 = vmatpush1.xpose.msra.mxu0 0.0
        %2811 = vmatprep.subr.mxu0 0.0
        %2812 = vmatpush1.xpose.msra.mxu0 0.0
        %2813 = vmatprep.subr.mxu0 0.0
        %2814 = vmatpush1.xpose.msra.mxu0 0.0
        %2815 = vmatprep.subr.mxu0 0.0
        %2816 = vmatpush1.xpose.msra.mxu0 0.0
        %2817 = vmatprep.subr.mxu0 0.0
        %2818 = vmatpush1.xpose.msra.mxu0 0.0
        %2819 = vmatprep.subr.mxu0 0.0
        %2820 = vmatpush1.xpose.msra.mxu0 0.0
        %2821 = vmatprep.subr.mxu0 0.0
        %2822 = vmatpush1.xpose.msra.mxu0 0.0
        %2823 = vmatprep.subr.mxu0 0.0
        %2824 = vmatpush1.xpose.msra.mxu0 0.0
        %2825 = vmatprep.subr.mxu0 0.0
        %2826 = vmatpush1.xpose.msra.mxu0 0.0
        %2827 = vmatprep.subr.mxu0 0.0
        %2828 = vmatpush1.xpose.msra.mxu0 0.0
        %2829 = vmatprep.subr.mxu0 0.0
        %2830 = vmatpush1.xpose.msra.mxu0 0.0
        %2831 = vmatprep.subr.mxu0 0.0
        %2832 = vmatpush1.xpose.msra.mxu0 0.0
        %2833 = vmatprep.subr.mxu0 0.0
        %2834 = vmatpush1.xpose.msra.mxu0 0.0
        %2835 = vmatprep.subr.mxu0 0.0
        %2836 = vmatpush1.xpose.msra.mxu0 0.0
        %2837 = vmatprep.subr.mxu0 0.0
        %2838 = vmatpush1.xpose.msra.mxu0 0.0
        %2839 = vmatprep.subr.mxu0 0.0
        %2840 = vmatpush1.xpose.msra.mxu0 0.0
        %2841 = vmatprep.subr.mxu0 0.0
        %2842 = vmatpush1.xpose.msra.mxu0 0.0
        %2843 = vmatprep.subr.mxu0 0.0
        %2844 = vmatpush1.xpose.msra.mxu0 0.0
        %2845 = vmatprep.subr.mxu0 0.0
        %2846 = vmatpush1.xpose.msra.mxu0 0.0
        %2847 = vmatprep.subr.mxu0 0.0
        %2848 = vmatpush1.xpose.msra.mxu0 0.0
        %2849 = vmatprep.subr.mxu0 0.0
        %2850 = vmatpush1.xpose.msra.mxu0 0.0
        %2851 = vmatprep.subr.mxu0 0.0
        %2852 = vmatpush1.xpose.msra.mxu0 0.0
        %2853 = vmatprep.subr.mxu0 0.0
        %2854 = vmatpush1.xpose.msra.mxu0 0.0
        %2855 = vmatprep.subr.mxu0 0.0
        %2856 = vmatpush1.xpose.msra.mxu0 0.0
        %2857 = vmatprep.subr.mxu0 0.0
        %2858 = vmatpush1.xpose.msra.mxu0 0.0
        %2859 = vmatprep.subr.mxu0 0.0
        %2860 = vmatpush1.xpose.msra.mxu0 0.0
        %2861 = vmatprep.subr.mxu0 0.0
        %2862 = vmatpush1.xpose.msra.mxu0 0.0
        %2863 = vmatprep.subr.mxu0 0.0
        %2864 = vmatpush1.xpose.msra.mxu0 0.0
        %2865 = vmatprep.subr.mxu0 0.0
        %2866 = vmatpush1.xpose.msra.mxu0 0.0
        %2867 = vmatprep.mubr.f32.mxu0 0.0
        %2868 = vmatmul.mubr.f32.gmra.mrb[0].mxu0 %v2799
        %v2869 = vpop.f32.mrb[0].mxu0
        %v2870 = vadd.f32 %v774, %v2869
        %v2871 = vpop.f32.mrb[0].mxu0
        %2872 = vdwg.mxu0
        %v2873 = vsel %vm779, %v2870, -inf
        %2874 = vmax.xlane.f32.xlu0 %v2873
        %v2875 = vpop.xlane.xlu0 %2874
        %v2876 = vsub.f32 %v2870, %v2875
        %v2877 = vmul.f32 %v2876, 1.442695
        %v2878 = vpow.pop %v2877
        %v2879 = vsel %vm779, %v2878, 0.0
        %2880 = vadd.xlane.f32.xlu0 %v2879
        %v2881 = vpop.xlane.xlu0 %2880
        %v2882 = vrcp.pop %v2881
        %v2883 = vmul.f32 %v2878, %v2882
        %2884 = vrot.lane.b32.xlu0 %v2071, 40
        %v2885 = vpop.permute.xlu0 %2884
        %v2888 = vsel %vm779, %v2883, 0
        %2890 = vmatprep.subr.mxu0 0.0
        %2891 = vmatpush1.msra.mxu0 %v2885
        %2892 = vmatprep.subr.mxu0 0.0
        %2893 = vmatpush1.msra.mxu0 0.0
        %2894 = vmatprep.subr.mxu0 0.0
        %2895 = vmatpush1.msra.mxu0 0.0
        %2896 = vmatprep.subr.mxu0 0.0
        %2897 = vmatpush1.msra.mxu0 0.0
        %2898 = vmatprep.subr.mxu0 0.0
        %2899 = vmatpush1.msra.mxu0 0.0
        %2900 = vmatprep.subr.mxu0 0.0
        %2901 = vmatpush1.msra.mxu0 0.0
        %2902 = vmatprep.subr.mxu0 0.0
        %2903 = vmatpush1.msra.mxu0 0.0
        %2904 = vmatprep.subr.mxu0 0.0
        %2905 = vmatpush1.msra.mxu0 0.0
        %2906 = vmatprep.subr.mxu0 0.0
        %2907 = vmatpush1.msra.mxu0 0.0
        %2908 = vmatprep.subr.mxu0 0.0
        %2909 = vmatpush1.msra.mxu0 0.0
        %2910 = vmatprep.subr.mxu0 0.0
        %2911 = vmatpush1.msra.mxu0 0.0
        %2912 = vmatprep.subr.mxu0 0.0
        %2913 = vmatpush1.msra.mxu0 0.0
        %2914 = vmatprep.subr.mxu0 0.0
        %2915 = vmatpush1.msra.mxu0 0.0
        %2916 = vmatprep.subr.mxu0 0.0
        %2917 = vmatpush1.msra.mxu0 0.0
        %2918 = vmatprep.subr.mxu0 0.0
        %2919 = vmatpush1.msra.mxu0 0.0
        %2920 = vmatprep.subr.mxu0 0.0
        %2921 = vmatpush1.msra.mxu0 0.0
        %2922 = vmatprep.subr.mxu0 0.0
        %2923 = vmatpush1.msra.mxu0 0.0
        %2924 = vmatprep.subr.mxu0 0.0
        %2925 = vmatpush1.msra.mxu0 0.0
        %2926 = vmatprep.subr.mxu0 0.0
        %2927 = vmatpush1.msra.mxu0 0.0
        %2928 = vmatprep.subr.mxu0 0.0
        %2929 = vmatpush1.msra.mxu0 0.0
        %2930 = vmatprep.subr.mxu0 0.0
        %2931 = vmatpush1.msra.mxu0 0.0
        %2932 = vmatprep.subr.mxu0 0.0
        %2933 = vmatpush1.msra.mxu0 0.0
        %2934 = vmatprep.subr.mxu0 0.0
        %2935 = vmatpush1.msra.mxu0 0.0
        %2936 = vmatprep.subr.mxu0 0.0
        %2937 = vmatpush1.msra.mxu0 0.0
        %2938 = vmatprep.subr.mxu0 0.0
        %2939 = vmatpush1.msra.mxu0 0.0
        %2940 = vmatprep.subr.mxu0 0.0
        %2941 = vmatpush1.msra.mxu0 0.0
        %2942 = vmatprep.subr.mxu0 0.0
        %2943 = vmatpush1.msra.mxu0 0.0
        %2944 = vmatprep.subr.mxu0 0.0
        %2945 = vmatpush1.msra.mxu0 0.0
        %2946 = vmatprep.subr.mxu0 0.0
        %2947 = vmatpush1.msra.mxu0 0.0
        %2948 = vmatprep.subr.mxu0 0.0
        %2949 = vmatpush1.msra.mxu0 0.0
        %2950 = vmatprep.subr.mxu0 0.0
        %2951 = vmatpush1.msra.mxu0 0.0
        %2952 = vmatprep.subr.mxu0 0.0
        %2953 = vmatpush1.msra.mxu0 0.0
        %2954 = vmatprep.mubr.f32.mxu0 0.0
        %2955 = vmatmul.mubr.f32.gmra.mrb[0].mxu0 %v2888
        %v2956 = vpop.f32.mrb[0].mxu0
        %v2957 = vadd.f32 0.0, %v2956
        %v2958 = vpop.f32.mrb[0].mxu0
        %2959 = vdwg.mxu0
        %v2961 = vsel %vm779, %v2957, 0
        %2963 = vmatprep.subr.mxu0 0.0
        %2964 = vmatpush1.msra.mxu0 %v2078
        %2965 = vmatprep.subr.mxu0 0.0
        %2966 = vmatpush1.msra.mxu0 0.0
        %2967 = vmatprep.subr.mxu0 0.0
        %2968 = vmatpush1.msra.mxu0 0.0
        %2969 = vmatprep.subr.mxu0 0.0
        %2970 = vmatpush1.msra.mxu0 0.0
        %2971 = vmatprep.subr.mxu0 0.0
        %2972 = vmatpush1.msra.mxu0 0.0
        %2973 = vmatprep.subr.mxu0 0.0
        %2974 = vmatpush1.msra.mxu0 0.0
        %2975 = vmatprep.subr.mxu0 0.0
        %2976 = vmatpush1.msra.mxu0 0.0
        %2977 = vmatprep.subr.mxu0 0.0
        %2978 = vmatpush1.msra.mxu0 0.0
        %2979 = vmatprep.subr.mxu0 0.0
        %2980 = vmatpush1.msra.mxu0 0.0
        %2981 = vmatprep.subr.mxu0 0.0
        %2982 = vmatpush1.msra.mxu0 0.0
        %2983 = vmatprep.subr.mxu0 0.0
        %2984 = vmatpush1.msra.mxu0 0.0
        %2985 = vmatprep.subr.mxu0 0.0
        %2986 = vmatpush1.msra.mxu0 0.0
        %2987 = vmatprep.subr.mxu0 0.0
        %2988 = vmatpush1.msra.mxu0 0.0
        %2989 = vmatprep.subr.mxu0 0.0
        %2990 = vmatpush1.msra.mxu0 0.0
        %2991 = vmatprep.subr.mxu0 0.0
        %2992 = vmatpush1.msra.mxu0 0.0
        %2993 = vmatprep.subr.mxu0 0.0
        %2994 = vmatpush1.msra.mxu0 0.0
        %2995 = vmatprep.subr.mxu0 0.0
        %2996 = vmatpush1.msra.mxu0 0.0
        %2997 = vmatprep.subr.mxu0 0.0
        %2998 = vmatpush1.msra.mxu0 0.0
        %2999 = vmatprep.subr.mxu0 0.0
        %3000 = vmatpush1.msra.mxu0 0.0
        %3001 = vmatprep.subr.mxu0 0.0
        %3002 = vmatpush1.msra.mxu0 0.0
        %3003 = vmatprep.subr.mxu0 0.0
        %3004 = vmatpush1.msra.mxu0 0.0
        %3005 = vmatprep.subr.mxu0 0.0
        %3006 = vmatpush1.msra.mxu0 0.0
        %3007 = vmatprep.subr.mxu0 0.0
        %3008 = vmatpush1.msra.mxu0 0.0
        %3009 = vmatprep.subr.mxu0 0.0
        %3010 = vmatpush1.msra.mxu0 0.0
        %3011 = vmatprep.subr.mxu0 0.0
        %3012 = vmatpush1.msra.mxu0 0.0
        %3013 = vmatprep.subr.mxu0 0.0
        %3014 = vmatpush1.msra.mxu0 0.0
        %3015 = vmatprep.subr.mxu0 0.0
        %3016 = vmatpush1.msra.mxu0 0.0
        %3017 = vmatprep.subr.mxu0 0.0
        %3018 = vmatpush1.msra.mxu0 0.0
        %3019 = vmatprep.subr.mxu0 0.0
        %3020 = vmatpush1.msra.mxu0 0.0
        %3021 = vmatprep.subr.mxu0 0.0
        %3022 = vmatpush1.msra.mxu0 0.0
        %3023 = vmatprep.subr.mxu0 0.0
        %3024 = vmatpush1.msra.mxu0 0.0
        %3025 = vmatprep.subr.mxu0 0.0
        %3026 = vmatpush1.msra.mxu0 0.0
        %3027 = vmatprep.mubr.f32.mxu0 0.0
        %3028 = vmatmul.mubr.f32.gmra.mrb[0].mxu0 %v2961
        %v3029 = vpop.f32.mrb[0].mxu0
        %v3030 = vadd.f32 0.0, %v3029
        %v3031 = vpop.f32.mrb[0].mxu0
        %3032 = vdwg.mxu0
        %v3033 = vadd.f32 %v2794, %v3030
        %v3034 = vadd.f32 %v1956, %v3033
        %s3035 = scalar_lea.vmem %s10, 1
        %v3036 = vld [vmem:[%s3035] sm:$0x1]
        %v3038 = vlaneseq
        %v3039 = vshrl.u32 %v3038, 7
        %v3040 = vsub.s32 0, %v3039
        %v3041 = vrot.slane %v3036, %v3040
        %v3043 = vadd.f32 %v3034, %v3041
        %s3044 = scalar_lea.vmem %s11, 1
        %v3045 = vld [vmem:[%s3044] sm:$0x1]
        %s3046 = scalar_lea.vmem %s12, 1
        %v3047 = vld [vmem:[%s3046] sm:$0x1]
        %v3048 = vsel %vm652, %v3043, 0.0
        %3049 = vadd.xlane.f32.xlu0 %v3048
        %v3050 = vpop.xlane.xlu0 %3049
        %v3051 = vmul.f32 %v3050, %v656
        %v3052 = vsub.f32 %v3043, %v3051
        %v3053 = vmul.f32 %v3052, %v3052
        %v3054 = vsel %vm652, %v3053, 0.0
        %3055 = vadd.xlane.f32.xlu0 %v3054
        %v3056 = vpop.xlane.xlu0 %3055
        %v3057 = vmul.f32 %v3056, %v656
        %v3058 = vadd.f32 %v3057, 1e-05
        %v3059 = vrsqrt.pop %v3058
        %v3060 = vmul.f32 %v3052, %v3059
        %v3062 = vlaneseq
        %v3063 = vshrl.u32 %v3062, 7
        %v3064 = vsub.s32 0, %v3063
        %v3065 = vrot.slane %v3045, %v3064
        %v3067 = vmul.f32 %v3060, %v3065
        %v3069 = vlaneseq
        %v3070 = vshrl.u32 %v3069, 7
        %v3071 = vsub.s32 0, %v3070
        %v3072 = vrot.slane %v3047, %v3071
        %v3074 = vadd.f32 %v3067, %v3072
        %s3075 = scalar_lea.vmem %s13, 32
        %v3076 = vld [vmem:[%s3075] sm:$0xff]
        %v3077 = vld [vmem:[%s3075 + $0x8] sm:$0xff]
        %v3078 = vld [vmem:[%s3075 + $0x10] sm:$0xff]
        %v3079 = vld [vmem:[%s3075 + $0x18] sm:$0xff]
        %s3080 = scalar_lea.vmem %s14, 1
        %v3081 = vld [vmem:[%s3080] sm:$0x1]
        %v3083 = vlaneseq
        %v3084 = vshrl.u32 %v3083, 7
        %v3085 = vsub.s32 0, %v3084
        %v3086 = vrot.slane %v3081, %v3085
        %v3089 = vsel %vm652, %v3074, 0
        %3091 = vmatprep.subr.mxu0 0.0
        %3092 = vmatpush1.msra.mxu0 %v3076
        %3093 = vmatprep.subr.mxu0 0.0
        %3094 = vmatpush1.msra.mxu0 %v3077
        %3095 = vmatprep.subr.mxu0 0.0
        %3096 = vmatpush1.msra.mxu0 %v3078
        %3097 = vmatprep.subr.mxu0 0.0
        %3098 = vmatpush1.msra.mxu0 %v3079
        %3099 = vmatprep.subr.mxu0 0.0
        %3100 = vmatpush1.msra.mxu0 0.0
        %3101 = vmatprep.subr.mxu0 0.0
        %3102 = vmatpush1.msra.mxu0 0.0
        %3103 = vmatprep.subr.mxu0 0.0
        %3104 = vmatpush1.msra.mxu0 0.0
        %3105 = vmatprep.subr.mxu0 0.0
        %3106 = vmatpush1.msra.mxu0 0.0
        %3107 = vmatprep.subr.mxu0 0.0
        %3108 = vmatpush1.msra.mxu0 0.0
        %3109 = vmatprep.subr.mxu0 0.0
        %3110 = vmatpush1.msra.mxu0 0.0
        %3111 = vmatprep.subr.mxu0 0.0
        %3112 = vmatpush1.msra.mxu0 0.0
        %3113 = vmatprep.subr.mxu0 0.0
        %3114 = vmatpush1.msra.mxu0 0.0
        %3115 = vmatprep.subr.mxu0 0.0
        %3116 = vmatpush1.msra.mxu0 0.0
        %3117 = vmatprep.subr.mxu0 0.0
        %3118 = vmatpush1.msra.mxu0 0.0
        %3119 = vmatprep.subr.mxu0 0.0
        %3120 = vmatpush1.msra.mxu0 0.0
        %3121 = vmatprep.subr.mxu0 0.0
        %3122 = vmatpush1.msra.mxu0 0.0
        %3123 = vmatprep.subr.mxu0 0.0
        %3124 = vmatpush1.msra.mxu0 0.0
        %3125 = vmatprep.subr.mxu0 0.0
        %3126 = vmatpush1.msra.mxu0 0.0
        %3127 = vmatprep.subr.mxu0 0.0
        %3128 = vmatpush1.msra.mxu0 0.0
        %3129 = vmatprep.subr.mxu0 0.0
        %3130 = vmatpush1.msra.mxu0 0.0
        %3131 = vmatprep.subr.mxu0 0.0
        %3132 = vmatpush1.msra.mxu0 0.0
        %3133 = vmatprep.subr.mxu0 0.0
        %3134 = vmatpush1.msra.mxu0 0.0
        %3135 = vmatprep.subr.mxu0 0.0
        %3136 = vmatpush1.msra.mxu0 0.0
        %3137 = vmatprep.subr.mxu0 0.0
        %3138 = vmatpush1.msra.mxu0 0.0
        %3139 = vmatprep.subr.mxu0 0.0
        %3140 = vmatpush1.msra.mxu0 0.0
        %3141 = vmatprep.subr.mxu0 0.0
        %3142 = vmatpush1.msra.mxu0 0.0
        %3143 = vmatprep.subr.mxu0 0.0
        %3144 = vmatpush1.msra.mxu0 0.0
        %3145 = vmatprep.subr.mxu0 0.0
        %3146 = vmatpush1.msra.mxu0 0.0
        %3147 = vmatprep.subr.mxu0 0.0
        %3148 = vmatpush1.msra.mxu0 0.0
        %3149 = vmatprep.subr.mxu0 0.0
        %3150 = vmatpush1.msra.mxu0 0.0
        %3151 = vmatprep.subr.mxu0 0.0
        %3152 = vmatpush1.msra.mxu0 0.0
        %3153 = vmatprep.subr.mxu0 0.0
        %3154 = vmatpush1.msra.mxu0 0.0
        %3155 = vmatprep.mubr.f32.mxu0 0.0
        %3156 = vmatmul.mubr.f32.gmra.mrb[0].mxu0 %v3089
        %v3157 = vpop.f32.mrb[0].mxu0
        %v3158 = vadd.f32 %v3086, %v3157
        %v3159 = vpop.f32.mrb[0].mxu0
        %3160 = vdwg.mxu0
        %v3161 = vmul.f32 %v3158, 0.5
        %v3162 = vmul.f32 %v3158, 0.044715
        %v3163 = vmul.f32 %v3162, %v3158
        %v3164 = vmul.f32 %v3163, %v3158
        %v3165 = vadd.f32 %v3158, %v3164
        %v3166 = vmul.f32 %v3165, 0.7978846
        %v3167 = vtanh.pop %v3166
        %v3168 = vadd.f32 %v3167, 1.0
        %v3169 = vmul.f32 %v3161, %v3168
        %s3170 = scalar_lea.vmem %s15, 128
        %v3171 = vld [vmem:[%s3170] sm:$0xff]
        %v3172 = vld [vmem:[%s3170 + $0x8] sm:$0xff]
        %v3173 = vld [vmem:[%s3170 + $0x10] sm:$0xff]
        %v3174 = vld [vmem:[%s3170 + $0x18] sm:$0xff]
        %v3175 = vld [vmem:[%s3170 + $0x20] sm:$0xff]
        %v3176 = vld [vmem:[%s3170 + $0x28] sm:$0xff]
        %v3177 = vld [vmem:[%s3170 + $0x30] sm:$0xff]
        %v3178 = vld [vmem:[%s3170 + $0x38] sm:$0xff]
        %v3179 = vld [vmem:[%s3170 + $0x40] sm:$0xff]
        %v3180 = vld [vmem:[%s3170 + $0x48] sm:$0xff]
        %v3181 = vld [vmem:[%s3170 + $0x50] sm:$0xff]
        %v3182 = vld [vmem:[%s3170 + $0x58] sm:$0xff]
        %v3183 = vld [vmem:[%s3170 + $0x60] sm:$0xff]
        %v3184 = vld [vmem:[%s3170 + $0x68] sm:$0xff]
        %v3185 = vld [vmem:[%s3170 + $0x70] sm:$0xff]
        %v3186 = vld [vmem:[%s3170 + $0x78] sm:$0xff]
        %3187 = vmatprep.subr.mxu0 0.0
        %3188 = vmatpush1.msra.mxu0 %v3171
        %3189 = vmatprep.subr.mxu0 0.0
        %3190 = vmatpush1.msra.mxu0 %v3172
        %3191 = vmatprep.subr.mxu0 0.0
        %3192 = vmatpush1.msra.mxu0 %v3173
        %3193 = vmatprep.subr.mxu0 0.0
        %3194 = vmatpush1.msra.mxu0 %v3174
        %3195 = vmatprep.subr.mxu0 0.0
        %3196 = vmatpush1.msra.mxu0 %v3175
        %3197 = vmatprep.subr.mxu0 0.0
        %3198 = vmatpush1.msra.mxu0 %v3176
        %3199 = vmatprep.subr.mxu0 0.0
        %3200 = vmatpush1.msra.mxu0 %v3177
        %3201 = vmatprep.subr.mxu0 0.0
        %3202 = vmatpush1.msra.mxu0 %v3178
        %3203 = vmatprep.subr.mxu0 0.0
        %3204 = vmatpush1.msra.mxu0 %v3179
        %3205 = vmatprep.subr.mxu0 0.0
        %3206 = vmatpush1.msra.mxu0 %v3180
        %3207 = vmatprep.subr.mxu0 0.0
        %3208 = vmatpush1.msra.mxu0 %v3181
        %3209 = vmatprep.subr.mxu0 0.0
        %3210 = vmatpush1.msra.mxu0 %v3182
        %3211 = vmatprep.subr.mxu0 0.0
        %3212 = vmatpush1.msra.mxu0 %v3183
        %3213 = vmatprep.subr.mxu0 0.0
        %3214 = vmatpush1.msra.mxu0 %v3184
        %3215 = vmatprep.subr.mxu0 0.0
        %3216 = vmatpush1.msra.mxu0 %v3185
        %3217 = vmatprep.subr.mxu0 0.0
        %3218 = vmatpush1.msra.mxu0 %v3186
        %3219 = vmatprep.subr.mxu0 0.0
        %3220 = vmatpush1.msra.mxu0 0.0
        %3221 = vmatprep.subr.mxu0 0.0
        %3222 = vmatpush1.msra.mxu0 0.0
        %3223 = vmatprep.subr.mxu0 0.0
        %3224 = vmatpush1.msra.mxu0 0.0
        %3225 = vmatprep.subr.mxu0 0.0
        %3226 = vmatpush1.msra.mxu0 0.0
        %3227 = vmatprep.subr.mxu0 0.0
        %3228 = vmatpush1.msra.mxu0 0.0
        %3229 = vmatprep.subr.mxu0 0.0
        %3230 = vmatpush1.msra.mxu0 0.0
        %3231 = vmatprep.subr.mxu0 0.0
        %3232 = vmatpush1.msra.mxu0 0.0
        %3233 = vmatprep.subr.mxu0 0.0
        %3234 = vmatpush1.msra.mxu0 0.0
        %3235 = vmatprep.subr.mxu0 0.0
        %3236 = vmatpush1.msra.mxu0 0.0
        %3237 = vmatprep.subr.mxu0 0.0
        %3238 = vmatpush1.msra.mxu0 0.0
        %3239 = vmatprep.subr.mxu0 0.0
        %3240 = vmatpush1.msra.mxu0 0.0
        %3241 = vmatprep.subr.mxu0 0.0
        %3242 = vmatpush1.msra.mxu0 0.0
        %3243 = vmatprep.subr.mxu0 0.0
        %3244 = vmatpush1.msra.mxu0 0.0
        %3245 = vmatprep.subr.mxu0 0.0
        %3246 = vmatpush1.msra.mxu0 0.0
        %3247 = vmatprep.subr.mxu0 0.0
        %3248 = vmatpush1.msra.mxu0 0.0
        %3249 = vmatprep.subr.mxu0 0.0
        %3250 = vmatpush1.msra.mxu0 0.0
        %3251 = vmatprep.mubr.f32.mxu0 0.0
        %3252 = vmatmul.mubr.f32.gmra.mrb[0].mxu0 %v3169
        %v3253 = vpop.f32.mrb[0].mxu0
        %v3254 = vadd.f32 0.0, %v3253
        %v3255 = vpop.f32.mrb[0].mxu0
        %3256 = vdwg.mxu0
        %v3257 = vadd.f32 %v3043, %v3254
        %s3258 = scalar_lea.vmem %s16, 1
        %v3259 = vld [vmem:[%s3258] sm:$0x1]
        %v3261 = vlaneseq
        %v3262 = vshrl.u32 %v3261, 7
        %v3263 = vsub.s32 0, %v3262
        %v3264 = vrot.slane %v3259, %v3263
        %v3266 = vadd.f32 %v3257, %v3264
        %v3267 = vmul.f32 %v3266, %v649
        %v3268 = vsel %vm652, %v3267, 0.0
        %v3269 = vrot.slane %v3268, 4
        %v3270 = vadd.f32 %v3268, %v3269
        %v3271 = vrot.slane %v3270, 2
        %v3272 = vadd.f32 %v3270, %v3271
        %v3273 = vrot.slane %v3272, 1
        %v3274 = vadd.f32 %v3272, %v3273
        %v3275 = vrot.slane %v649, 4
        %v3276 = vadd.f32 %v649, %v3275
        %v3277 = vrot.slane %v3276, 2
        %v3278 = vadd.f32 %v3276, %v3277
        %v3279 = vrot.slane %v3278, 1
        %v3280 = vadd.f32 %v3278, %v3279
        %v3281 = vmax.f32 %v3280, 1e-09
        %v3282 = vrcp.pop %v3281
        %v3283 = vmul.f32 %v3274, %v3282
        %vm3284 = vcmask 253952
        %3285 = vst.msk [vmem:[%s549] sm:$0x1] %vm3284, %v3283
        %s3286 = sand.u32 %s406, 1
        %s3287 = scalar_lea.sflag [#allocation3], %s3286
        %s3288 = sand.u32 %s406, 1
        %s3289 = scalar_lea.vmem [#allocation2], %s3288
        // Predicated region
        $region89: #{tpu_custom_call.1} parent=87 // pred_check
          %p3290 = pneg %p416
        $region90: #{tpu_custom_call.1} parent=87 // pred_check_branch
          %3292 = sbr.rel (%p3290) target = $region92
        $region91: #{tpu_custom_call.1} parent=87 // pred_region
          %s3294 = ssub.s32 16, 16
          %3295 = vsyncadd %s3287, %s3294
          %s3296 = smul.addr %s31, 16
          %s3297 = scalar_lea.hbm %s17, %s3296
          %s3299 = sshll.u32 %s3289, 4
          %s3300 = int_to_ptr.vmem [resolvable:$true] %s3299
          %3302 = dma.vmem_to_hbm [thread:$0]  %s3300, 16, %s3297, %s3287
        $region92: #{tpu_custom_call.1} parent=87 // pred_fallthru
          _
      $region88: #{tpu_custom_call.1} parent=5 // pred_fallthru
        _
      %p3303 = scmp.le.s32.totalorder 2, %s26
      // Predicated region
      $region93: #{tpu_custom_call.1} parent=5 // pred_check
        %p3304 = pneg %p3303
      $region94: #{tpu_custom_call.1} parent=5 // pred_check_branch
        %3306 = sbr.rel (%p3304) target = $region96
      $region95: #{tpu_custom_call.1} parent=5 // pred_region
        %s3307 = ssub.s32 %s26, 2
        // Predicated region
        $region97: #{tpu_custom_call.1} parent=95 // pred_check
          %p3308 = pneg %p422
        $region98: #{tpu_custom_call.1} parent=95 // pred_check_branch
          %3310 = sbr.rel (%p3308) target = $region100
        $region99: #{tpu_custom_call.1} parent=95 // pred_region
          %s3311 = sand.u32 %s407, 1
          %s3312 = scalar_lea.sflag [#allocation3], %s3311
          %s3313 = sand.u32 %s407, 1
          %s3314 = scalar_lea.vmem [#allocation2], %s3313
          %3315 = dma.done %s3312, 16
        $region100: #{tpu_custom_call.1} parent=95 // pred_fallthru
          _
      $region96: #{tpu_custom_call.1} parent=5 // pred_fallthru
        _
    $region6: #{tpu_custom_call.1} parent=1 // loop_footer
      %s30 = sadd.s32 1, %s26
    $region7: #{tpu_custom_call.1} parent=1 // loop_footer_branch
      %25 = sbr.rel target = $region3
    $region8: #{tpu_custom_call.1} parent=1 // loop_exit
      _
    %3316 = vsyncpa [#allocation3], 1
    %s3317 = scalar_lea.sflag [#allocation3], 1
    %3318 = vsyncpa %s3317, 1

</llo_original>
